<compile_context>
chip_gen: v7x
topology: tpu7x:2x2x1
jax: 0.10.0
libtpu: 0.0.40
codegen_flags: <defaults>
</compile_context>

<pallas_src>
import math

import jax
import jax.numpy as jnp
from jax.experimental import pallas as pl
from jax.experimental.pallas import tpu as pltpu

BN_EPS = 1e-5
EXPANSION = 4  # Bottleneck.expansion


# ----------------------------------------------------------------------------
# Fused Bottleneck kernel (one batch image per grid step, all VMEM-resident)
# ----------------------------------------------------------------------------
def _bottleneck_kernel(x_ref, w1_ref, w2_ref, w3_ref,
                       s1_ref, b1_ref, s2_ref, b2_ref, s3_ref, b3_ref,
                       o_ref, pad_ref):
    _, H, W, Cin = x_ref.shape
    P = w1_ref.shape[1]
    Cout = w3_ref.shape[1]
    HW = H * W

    x_f32 = x_ref[...].reshape(HW, Cin)            # also the identity residual

    # ---- conv1 (1x1) + bn1 + relu ------------------------------------------
    h1 = jnp.dot(x_f32.astype(jnp.bfloat16), w1_ref[...],
                 preferred_element_type=jnp.float32)
    h1 = jnp.maximum(h1 * s1_ref[...] + b1_ref[...], 0.0)

    # ---- conv2 (3x3, stride=1, pad=1) + bn2 + relu --------------------------
    # Stage conv1 output into a zero-padded VMEM scratch, then accumulate
    # 9 shifted MXU matmuls (one per tap) in f32 -- no XLA im2col.
    pad_ref[...] = jnp.zeros_like(pad_ref)
    pad_ref[1:H + 1, 1:W + 1, :] = h1.reshape(H, W, P)

    acc = jnp.zeros((HW, P), jnp.float32)
    for dy in range(3):
        for dx in range(3):
            win = pad_ref[dy:dy + H, dx:dx + W, :].reshape(HW, P)
            acc = acc + jnp.dot(win.astype(jnp.bfloat16),
                                w2_ref[dy * 3 + dx],
                                preferred_element_type=jnp.float32)
    h2 = jnp.maximum(acc * s2_ref[...] + b2_ref[...], 0.0)

    # ---- conv3 (1x1) + bn3 + identity residual + relu -----------------------
    h3 = jnp.dot(h2.astype(jnp.bfloat16), w3_ref[...],
                 preferred_element_type=jnp.float32)
    h3 = h3 * s3_ref[...] + b3_ref[...]
    out = jnp.maximum(h3 + x_f32, 0.0)

    o_ref[...] = out.reshape(1, H, W, Cout)


# ----------------------------------------------------------------------------
# Wrapper
# ----------------------------------------------------------------------------
def _fold_bn(gamma, beta, mean, var, eps=BN_EPS):
    scale = gamma / jnp.sqrt(var + eps)
    bias = beta - mean * scale
    return (scale.reshape(1, -1).astype(jnp.float32),
            bias.reshape(1, -1).astype(jnp.float32))


def bottleneck_forward(x, params):
    """Fused Bottleneck forward (module defaults: stride=1, downsample=None)."""
    # TODO(synk): stride>1 and an explicit `downsample` module are not
    # implemented (the reference constructs stride=1, downsample=None by
    # default, so the residual is the identity).
    N, H, W, Cin = x.shape
    w1, w2, w3 = params["w1"], params["w2"], params["w3"]
    P = w1.shape[1]
    Cout = w3.shape[1]
    assert Cin == Cout, "identity residual requires inplanes == planes*expansion"

    s1, b1 = _fold_bn(*params["bn1"])
    s2, b2 = _fold_bn(*params["bn2"])
    s3, b3 = _fold_bn(*params["bn3"])

    # bf16 operands for the MXU (accumulation stays f32 inside the kernel).
    w1b = w1.astype(jnp.bfloat16)                      # (Cin, P)
    w2b = w2.reshape(9, P, P).astype(jnp.bfloat16)     # (3,3,P,P) HWIO -> (9,P,P)
    w3b = w3.astype(jnp.bfloat16)                      # (P, Cout)

    def full(shape):
        return pl.BlockSpec(shape, lambda n, _s=shape: (0,) * len(_s))

    return pl.pallas_call(
        _bottleneck_kernel,
        out_shape=jax.ShapeDtypeStruct((N, H, W, Cout), jnp.float32),
        grid=(N,),
        in_specs=[
            pl.BlockSpec((1, H, W, Cin), lambda n: (n, 0, 0, 0)),
            full((Cin, P)),
            full((9, P, P)),
            full((P, Cout)),
            full((1, P)), full((1, P)),        # bn1 scale / bias
            full((1, P)), full((1, P)),        # bn2 scale / bias
            full((1, Cout)), full((1, Cout)),  # bn3 scale / bias
        ],
        out_specs=pl.BlockSpec((1, H, W, Cout), lambda n: (n, 0, 0, 0)),
        scratch_shapes=[pltpu.VMEM((H + 2, W + 2, P), jnp.float32)],
        compiler_params=pltpu.CompilerParams(
            dimension_semantics=("parallel",)),
    )(x, w1b, w2b, w3b, s1, b1, s2, b2, s3, b3)


# ----------------------------------------------------------------------------
# Pure-JAX f32 reference (for a numerical sanity check)
# ----------------------------------------------------------------------------
def bottleneck_reference(x, params, eps=BN_EPS):
    def bn(y, p):
        gamma, beta, mean, var = p
        return (y - mean) * (gamma / jnp.sqrt(var + eps)) + beta

    h = jnp.einsum("nhwc,cp->nhwp", x, params["w1"])
    h = jax.nn.relu(bn(h, params["bn1"]))
    h = jax.lax.conv_general_dilated(
        h, params["w2"], window_strides=(1, 1), padding="SAME",
        dimension_numbers=("NHWC", "HWIO", "NHWC"))
    h = jax.nn.relu(bn(h, params["bn2"]))
    h = jnp.einsum("nhwp,po->nhwo", h, params["w3"])
    h = bn(h, params["bn3"])
    return jax.nn.relu(h + x)


# ----------------------------------------------------------------------------
# Deterministic parameter init (mirrors CPN's msra conv init; BN stats randomized
# so the eval-mode BN folding is actually exercised)
# ----------------------------------------------------------------------------
def init_bottleneck_params(key, inplanes, planes, expansion=EXPANSION):
    cout = planes * expansion
    ks = jax.random.split(key, 15)

    def conv_init(k, kh, kw, cin, co):
        std = math.sqrt(2.0 / (kh * kw * co))
        return std * jax.random.normal(k, (kh, kw, cin, co), jnp.float32)

    def bn_init(k4, c):
        gamma = 1.0 + 0.2 * jax.random.normal(k4[0], (c,), jnp.float32)
        beta = 0.1 * jax.random.normal(k4[1], (c,), jnp.float32)
        mean = 0.1 * jax.random.normal(k4[2], (c,), jnp.float32)
        var = 0.5 + jax.random.uniform(k4[3], (c,), jnp.float32)
        return (gamma, beta, mean, var)

    return {
        "w1": conv_init(ks[0], 1, 1, inplanes, planes).reshape(inplanes, planes),
        "w2": conv_init(ks[1], 3, 3, planes, planes),          # HWIO
        "w3": conv_init(ks[2], 1, 1, planes, cout).reshape(planes, cout),
        "bn1": bn_init(ks[3:7], planes),
        "bn2": bn_init(ks[7:11], planes),
        "bn3": bn_init(ks[11:15], cout),
    }


# ----------------------------------------------------------------------------
# Main
# ----------------------------------------------------------------------------
if __name__ == "__main__":
    planes = 64
    inplanes = planes * EXPANSION      # 256 -> identity residual (downsample=None)
    batch, H, W = 2, 16, 16

    root = jax.random.PRNGKey(0)
    k_params, k_data = jax.random.split(root)
    params = init_bottleneck_params(k_params, inplanes, planes)
    x = jax.random.normal(k_data, (batch, H, W, inplanes), jnp.float32)

    fwd = jax.jit(bottleneck_forward)
    out = jax.block_until_ready(fwd(x, params))

    assert out.shape == (batch, H, W, inplanes), out.shape
    assert out.dtype == jnp.float32
    assert bool(jnp.all(jnp.isfinite(out)))

    # Numerical sanity check vs. f32 reference (bf16 MXU operands -> loose tol).
    ref = bottleneck_reference(x, params)
    rel_err = float(jnp.max(jnp.abs(out - ref)) / (jnp.max(jnp.abs(ref)) + 1e-6))
    assert rel_err < 5e-2, rel_err

    print("KERNEL_OK")
</pallas_src>

<mosaic_0001>
module attributes {stable_mosaic.version = 11 : i64} {
  func.func @_bottleneck_kernel(%arg0: i32, %arg1: memref<1x16x16x256xf32, #tpu.memory_space<vmem>>, %arg2: memref<256x64xbf16, #tpu.memory_space<vmem>>, %arg3: memref<9x64x64xbf16, #tpu.memory_space<vmem>>, %arg4: memref<64x256xbf16, #tpu.memory_space<vmem>>, %arg5: memref<1x64xf32, #tpu.memory_space<vmem>>, %arg6: memref<1x64xf32, #tpu.memory_space<vmem>>, %arg7: memref<1x64xf32, #tpu.memory_space<vmem>>, %arg8: memref<1x64xf32, #tpu.memory_space<vmem>>, %arg9: memref<1x256xf32, #tpu.memory_space<vmem>>, %arg10: memref<1x256xf32, #tpu.memory_space<vmem>>, %arg11: memref<1x16x16x256xf32, #tpu.memory_space<vmem>>, %arg12: memref<18x18x64xf32, #tpu.memory_space<vmem>>) attributes {dimension_semantics = [#tpu.dimension_semantics<parallel>], iteration_bounds = array<i64: 2>, scalar_prefetch = 0 : i64, scratch_operands = 1 : i64, tpu.core_type = #tpu.core_type<tc>, window_params = [{transform_indices = @transform_0, window_bounds = array<i64: 1, 16, 16, 256>}, {pipeline_mode = #tpu.pipeline_mode<synchronous>, transform_indices = @transform_1, window_bounds = array<i64: 256, 64>}, {pipeline_mode = #tpu.pipeline_mode<synchronous>, transform_indices = @transform_2, window_bounds = array<i64: 9, 64, 64>}, {pipeline_mode = #tpu.pipeline_mode<synchronous>, transform_indices = @transform_3, window_bounds = array<i64: 64, 256>}, {pipeline_mode = #tpu.pipeline_mode<synchronous>, transform_indices = @transform_4, window_bounds = array<i64: 1, 64>}, {pipeline_mode = #tpu.pipeline_mode<synchronous>, transform_indices = @transform_5, window_bounds = array<i64: 1, 64>}, {pipeline_mode = #tpu.pipeline_mode<synchronous>, transform_indices = @transform_6, window_bounds = array<i64: 1, 64>}, {pipeline_mode = #tpu.pipeline_mode<synchronous>, transform_indices = @transform_7, window_bounds = array<i64: 1, 64>}, {pipeline_mode = #tpu.pipeline_mode<synchronous>, transform_indices = @transform_8, window_bounds = array<i64: 1, 256>}, {pipeline_mode = #tpu.pipeline_mode<synchronous>, transform_indices = @transform_9, window_bounds = array<i64: 1, 256>}, {transform_indices = @transform_10, window_bounds = array<i64: 1, 16, 16, 256>}]} {
    %c0 = arith.constant 0 : index
    %c0_0 = arith.constant 0 : index
    %c0_1 = arith.constant 0 : index
    %c0_2 = arith.constant 0 : index
    %0 = vector.load %arg1[%c0, %c0_0, %c0_1, %c0_2] : memref<1x16x16x256xf32, #tpu.memory_space<vmem>>, vector<1x16x16x256xf32>
    %1 = vector.shape_cast %0 : vector<1x16x16x256xf32> to vector<256x256xf32>
    %2 = arith.truncf %1 : vector<256x256xf32> to vector<256x256xbf16>
    %c0_3 = arith.constant 0 : index
    %c0_4 = arith.constant 0 : index
    %3 = vector.load %arg2[%c0_3, %c0_4] : memref<256x64xbf16, #tpu.memory_space<vmem>>, vector<256x64xbf16>
    %cst = arith.constant dense<0.000000e+00> : vector<256x64xf32>
    %4 = tpu.matmul %2, %3, %cst {dimension_numbers = #tpu.dot_dimension_numbers<[1], [0], [0], [1], [0, 0, 1, 1], [], []>} : vector<256x256xbf16>, vector<256x64xbf16>, vector<256x64xf32> -> vector<256x64xf32>
    %c0_5 = arith.constant 0 : index
    %c0_6 = arith.constant 0 : index
    %5 = vector.load %arg5[%c0_5, %c0_6] : memref<1x64xf32, #tpu.memory_space<vmem>>, vector<1x64xf32>
    %6 = vector.broadcast %5 : vector<1x64xf32> to vector<256x64xf32>
    %7 = arith.mulf %4, %6 : vector<256x64xf32>
    %c0_7 = arith.constant 0 : index
    %c0_8 = arith.constant 0 : index
    %8 = vector.load %arg6[%c0_7, %c0_8] : memref<1x64xf32, #tpu.memory_space<vmem>>, vector<1x64xf32>
    %9 = vector.broadcast %8 : vector<1x64xf32> to vector<256x64xf32>
    %10 = arith.addf %7, %9 : vector<256x64xf32>
    %cst_9 = arith.constant 0.000000e+00 : f32
    %11 = vector.broadcast %cst_9 : f32 to vector<256x64xf32>
    %12 = arith.maximumf %10, %11 : vector<256x64xf32>
    %cst_10 = arith.constant 0.000000e+00 : f32
    %13 = vector.broadcast %cst_10 : f32 to vector<18x18x64xf32>
    %c0_11 = arith.constant 0 : index
    %c0_12 = arith.constant 0 : index
    %c0_13 = arith.constant 0 : index
    %14 = vector.load %arg12[%c0_11, %c0_12, %c0_13] : memref<18x18x64xf32, #tpu.memory_space<vmem>>, vector<18x18x64xf32>
    tpu.vector_store %arg12[%c0_11, %c0_12, %c0_13], %13 {strides = array<i32>} : memref<18x18x64xf32, #tpu.memory_space<vmem>>, vector<18x18x64xf32>,
    %15 = vector.shape_cast %12 : vector<256x64xf32> to vector<16x16x64xf32>
    %c1 = arith.constant 1 : index
    %c1_14 = arith.constant 1 : index
    %c0_15 = arith.constant 0 : index
    %16 = vector.load %arg12[%c1, %c1_14, %c0_15] : memref<18x18x64xf32, #tpu.memory_space<vmem>>, vector<16x16x64xf32>
    tpu.vector_store %arg12[%c1, %c1_14, %c0_15], %15 {strides = array<i32>} : memref<18x18x64xf32, #tpu.memory_space<vmem>>, vector<16x16x64xf32>,
    %cst_16 = arith.constant 0.000000e+00 : f32
    %17 = vector.broadcast %cst_16 : f32 to vector<256x64xf32>
    %c0_17 = arith.constant 0 : index
    %c0_18 = arith.constant 0 : index
    %c0_19 = arith.constant 0 : index
    %18 = vector.load %arg12[%c0_17, %c0_18, %c0_19] : memref<18x18x64xf32, #tpu.memory_space<vmem>>, vector<16x16x64xf32>
    %19 = vector.shape_cast %18 : vector<16x16x64xf32> to vector<256x64xf32>
    %20 = arith.truncf %19 : vector<256x64xf32> to vector<256x64xbf16>
    %c0_20 = arith.constant 0 : index
    %c0_21 = arith.constant 0 : index
    %c0_22 = arith.constant 0 : index
    %21 = vector.load %arg3[%c0_20, %c0_21, %c0_22] : memref<9x64x64xbf16, #tpu.memory_space<vmem>>, vector<1x64x64xbf16>
    %22 = vector.shape_cast %21 : vector<1x64x64xbf16> to vector<64x64xbf16>
    %cst_23 = arith.constant dense<0.000000e+00> : vector<256x64xf32>
    %23 = tpu.matmul %20, %22, %cst_23 {dimension_numbers = #tpu.dot_dimension_numbers<[1], [0], [0], [1], [0, 0, 1, 1], [], []>} : vector<256x64xbf16>, vector<64x64xbf16>, vector<256x64xf32> -> vector<256x64xf32>
    %24 = arith.addf %17, %23 : vector<256x64xf32>
    %c0_24 = arith.constant 0 : index
    %c1_25 = arith.constant 1 : index
    %c0_26 = arith.constant 0 : index
    %25 = vector.load %arg12[%c0_24, %c1_25, %c0_26] : memref<18x18x64xf32, #tpu.memory_space<vmem>>, vector<16x16x64xf32>
    %26 = vector.shape_cast %25 : vector<16x16x64xf32> to vector<256x64xf32>
    %27 = arith.truncf %26 : vector<256x64xf32> to vector<256x64xbf16>
    %c1_27 = arith.constant 1 : index
    %c0_28 = arith.constant 0 : index
    %c0_29 = arith.constant 0 : index
    %28 = vector.load %arg3[%c1_27, %c0_28, %c0_29] : memref<9x64x64xbf16, #tpu.memory_space<vmem>>, vector<1x64x64xbf16>
    %29 = vector.shape_cast %28 : vector<1x64x64xbf16> to vector<64x64xbf16>
    %cst_30 = arith.constant dense<0.000000e+00> : vector<256x64xf32>
    %30 = tpu.matmul %27, %29, %cst_30 {dimension_numbers = #tpu.dot_dimension_numbers<[1], [0], [0], [1], [0, 0, 1, 1], [], []>} : vector<256x64xbf16>, vector<64x64xbf16>, vector<256x64xf32> -> vector<256x64xf32>
    %31 = arith.addf %24, %30 : vector<256x64xf32>
    %c0_31 = arith.constant 0 : index
    %c2 = arith.constant 2 : index
    %c0_32 = arith.constant 0 : index
    %32 = vector.load %arg12[%c0_31, %c2, %c0_32] : memref<18x18x64xf32, #tpu.memory_space<vmem>>, vector<16x16x64xf32>
    %33 = vector.shape_cast %32 : vector<16x16x64xf32> to vector<256x64xf32>
    %34 = arith.truncf %33 : vector<256x64xf32> to vector<256x64xbf16>
    %c2_33 = arith.constant 2 : index
    %c0_34 = arith.constant 0 : index
    %c0_35 = arith.constant 0 : index
    %35 = vector.load %arg3[%c2_33, %c0_34, %c0_35] : memref<9x64x64xbf16, #tpu.memory_space<vmem>>, vector<1x64x64xbf16>
    %36 = vector.shape_cast %35 : vector<1x64x64xbf16> to vector<64x64xbf16>
    %cst_36 = arith.constant dense<0.000000e+00> : vector<256x64xf32>
    %37 = tpu.matmul %34, %36, %cst_36 {dimension_numbers = #tpu.dot_dimension_numbers<[1], [0], [0], [1], [0, 0, 1, 1], [], []>} : vector<256x64xbf16>, vector<64x64xbf16>, vector<256x64xf32> -> vector<256x64xf32>
    %38 = arith.addf %31, %37 : vector<256x64xf32>
    %c1_37 = arith.constant 1 : index
    %c0_38 = arith.constant 0 : index
    %c0_39 = arith.constant 0 : index
    %39 = vector.load %arg12[%c1_37, %c0_38, %c0_39] : memref<18x18x64xf32, #tpu.memory_space<vmem>>, vector<16x16x64xf32>
    %40 = vector.shape_cast %39 : vector<16x16x64xf32> to vector<256x64xf32>
    %41 = arith.truncf %40 : vector<256x64xf32> to vector<256x64xbf16>
    %c3 = arith.constant 3 : index
    %c0_40 = arith.constant 0 : index
    %c0_41 = arith.constant 0 : index
    %42 = vector.load %arg3[%c3, %c0_40, %c0_41] : memref<9x64x64xbf16, #tpu.memory_space<vmem>>, vector<1x64x64xbf16>
    %43 = vector.shape_cast %42 : vector<1x64x64xbf16> to vector<64x64xbf16>
    %cst_42 = arith.constant dense<0.000000e+00> : vector<256x64xf32>
    %44 = tpu.matmul %41, %43, %cst_42 {dimension_numbers = #tpu.dot_dimension_numbers<[1], [0], [0], [1], [0, 0, 1, 1], [], []>} : vector<256x64xbf16>, vector<64x64xbf16>, vector<256x64xf32> -> vector<256x64xf32>
    %45 = arith.addf %38, %44 : vector<256x64xf32>
    %c1_43 = arith.constant 1 : index
    %c1_44 = arith.constant 1 : index
    %c0_45 = arith.constant 0 : index
    %46 = vector.load %arg12[%c1_43, %c1_44, %c0_45] : memref<18x18x64xf32, #tpu.memory_space<vmem>>, vector<16x16x64xf32>
    %47 = vector.shape_cast %46 : vector<16x16x64xf32> to vector<256x64xf32>
    %48 = arith.truncf %47 : vector<256x64xf32> to vector<256x64xbf16>
    %c4 = arith.constant 4 : index
    %c0_46 = arith.constant 0 : index
    %c0_47 = arith.constant 0 : index
    %49 = vector.load %arg3[%c4, %c0_46, %c0_47] : memref<9x64x64xbf16, #tpu.memory_space<vmem>>, vector<1x64x64xbf16>
    %50 = vector.shape_cast %49 : vector<1x64x64xbf16> to vector<64x64xbf16>
    %cst_48 = arith.constant dense<0.000000e+00> : vector<256x64xf32>
    %51 = tpu.matmul %48, %50, %cst_48 {dimension_numbers = #tpu.dot_dimension_numbers<[1], [0], [0], [1], [0, 0, 1, 1], [], []>} : vector<256x64xbf16>, vector<64x64xbf16>, vector<256x64xf32> -> vector<256x64xf32>
    %52 = arith.addf %45, %51 : vector<256x64xf32>
    %c1_49 = arith.constant 1 : index
    %c2_50 = arith.constant 2 : index
    %c0_51 = arith.constant 0 : index
    %53 = vector.load %arg12[%c1_49, %c2_50, %c0_51] : memref<18x18x64xf32, #tpu.memory_space<vmem>>, vector<16x16x64xf32>
    %54 = vector.shape_cast %53 : vector<16x16x64xf32> to vector<256x64xf32>
    %55 = arith.truncf %54 : vector<256x64xf32> to vector<256x64xbf16>
    %c5 = arith.constant 5 : index
    %c0_52 = arith.constant 0 : index
    %c0_53 = arith.constant 0 : index
    %56 = vector.load %arg3[%c5, %c0_52, %c0_53] : memref<9x64x64xbf16, #tpu.memory_space<vmem>>, vector<1x64x64xbf16>
    %57 = vector.shape_cast %56 : vector<1x64x64xbf16> to vector<64x64xbf16>
    %cst_54 = arith.constant dense<0.000000e+00> : vector<256x64xf32>
    %58 = tpu.matmul %55, %57, %cst_54 {dimension_numbers = #tpu.dot_dimension_numbers<[1], [0], [0], [1], [0, 0, 1, 1], [], []>} : vector<256x64xbf16>, vector<64x64xbf16>, vector<256x64xf32> -> vector<256x64xf32>
    %59 = arith.addf %52, %58 : vector<256x64xf32>
    %c2_55 = arith.constant 2 : index
    %c0_56 = arith.constant 0 : index
    %c0_57 = arith.constant 0 : index
    %60 = vector.load %arg12[%c2_55, %c0_56, %c0_57] : memref<18x18x64xf32, #tpu.memory_space<vmem>>, vector<16x16x64xf32>
    %61 = vector.shape_cast %60 : vector<16x16x64xf32> to vector<256x64xf32>
    %62 = arith.truncf %61 : vector<256x64xf32> to vector<256x64xbf16>
    %c6 = arith.constant 6 : index
    %c0_58 = arith.constant 0 : index
    %c0_59 = arith.constant 0 : index
    %63 = vector.load %arg3[%c6, %c0_58, %c0_59] : memref<9x64x64xbf16, #tpu.memory_space<vmem>>, vector<1x64x64xbf16>
    %64 = vector.shape_cast %63 : vector<1x64x64xbf16> to vector<64x64xbf16>
    %cst_60 = arith.constant dense<0.000000e+00> : vector<256x64xf32>
    %65 = tpu.matmul %62, %64, %cst_60 {dimension_numbers = #tpu.dot_dimension_numbers<[1], [0], [0], [1], [0, 0, 1, 1], [], []>} : vector<256x64xbf16>, vector<64x64xbf16>, vector<256x64xf32> -> vector<256x64xf32>
    %66 = arith.addf %59, %65 : vector<256x64xf32>
    %c2_61 = arith.constant 2 : index
    %c1_62 = arith.constant 1 : index
    %c0_63 = arith.constant 0 : index
    %67 = vector.load %arg12[%c2_61, %c1_62, %c0_63] : memref<18x18x64xf32, #tpu.memory_space<vmem>>, vector<16x16x64xf32>
    %68 = vector.shape_cast %67 : vector<16x16x64xf32> to vector<256x64xf32>
    %69 = arith.truncf %68 : vector<256x64xf32> to vector<256x64xbf16>
    %c7 = arith.constant 7 : index
    %c0_64 = arith.constant 0 : index
    %c0_65 = arith.constant 0 : index
    %70 = vector.load %arg3[%c7, %c0_64, %c0_65] : memref<9x64x64xbf16, #tpu.memory_space<vmem>>, vector<1x64x64xbf16>
    %71 = vector.shape_cast %70 : vector<1x64x64xbf16> to vector<64x64xbf16>
    %cst_66 = arith.constant dense<0.000000e+00> : vector<256x64xf32>
    %72 = tpu.matmul %69, %71, %cst_66 {dimension_numbers = #tpu.dot_dimension_numbers<[1], [0], [0], [1], [0, 0, 1, 1], [], []>} : vector<256x64xbf16>, vector<64x64xbf16>, vector<256x64xf32> -> vector<256x64xf32>
    %73 = arith.addf %66, %72 : vector<256x64xf32>
    %c2_67 = arith.constant 2 : index
    %c2_68 = arith.constant 2 : index
    %c0_69 = arith.constant 0 : index
    %74 = vector.load %arg12[%c2_67, %c2_68, %c0_69] : memref<18x18x64xf32, #tpu.memory_space<vmem>>, vector<16x16x64xf32>
    %75 = vector.shape_cast %74 : vector<16x16x64xf32> to vector<256x64xf32>
    %76 = arith.truncf %75 : vector<256x64xf32> to vector<256x64xbf16>
    %c8 = arith.constant 8 : index
    %c0_70 = arith.constant 0 : index
    %c0_71 = arith.constant 0 : index
    %77 = vector.load %arg3[%c8, %c0_70, %c0_71] : memref<9x64x64xbf16, #tpu.memory_space<vmem>>, vector<1x64x64xbf16>
    %78 = vector.shape_cast %77 : vector<1x64x64xbf16> to vector<64x64xbf16>
    %cst_72 = arith.constant dense<0.000000e+00> : vector<256x64xf32>
    %79 = tpu.matmul %76, %78, %cst_72 {dimension_numbers = #tpu.dot_dimension_numbers<[1], [0], [0], [1], [0, 0, 1, 1], [], []>} : vector<256x64xbf16>, vector<64x64xbf16>, vector<256x64xf32> -> vector<256x64xf32>
    %80 = arith.addf %73, %79 : vector<256x64xf32>
    %c0_73 = arith.constant 0 : index
    %c0_74 = arith.constant 0 : index
    %81 = vector.load %arg7[%c0_73, %c0_74] : memref<1x64xf32, #tpu.memory_space<vmem>>, vector<1x64xf32>
    %82 = vector.broadcast %81 : vector<1x64xf32> to vector<256x64xf32>
    %83 = arith.mulf %80, %82 : vector<256x64xf32>
    %c0_75 = arith.constant 0 : index
    %c0_76 = arith.constant 0 : index
    %84 = vector.load %arg8[%c0_75, %c0_76] : memref<1x64xf32, #tpu.memory_space<vmem>>, vector<1x64xf32>
    %85 = vector.broadcast %84 : vector<1x64xf32> to vector<256x64xf32>
    %86 = arith.addf %83, %85 : vector<256x64xf32>
    %cst_77 = arith.constant 0.000000e+00 : f32
    %87 = vector.broadcast %cst_77 : f32 to vector<256x64xf32>
    %88 = arith.maximumf %86, %87 : vector<256x64xf32>
    %89 = arith.truncf %88 : vector<256x64xf32> to vector<256x64xbf16>
    %c0_78 = arith.constant 0 : index
    %c0_79 = arith.constant 0 : index
    %90 = vector.load %arg4[%c0_78, %c0_79] : memref<64x256xbf16, #tpu.memory_space<vmem>>, vector<64x256xbf16>
    %cst_80 = arith.constant dense<0.000000e+00> : vector<256x256xf32>
    %91 = tpu.matmul %89, %90, %cst_80 {dimension_numbers = #tpu.dot_dimension_numbers<[1], [0], [0], [1], [0, 0, 1, 1], [], []>} : vector<256x64xbf16>, vector<64x256xbf16>, vector<256x256xf32> -> vector<256x256xf32>
    %c0_81 = arith.constant 0 : index
    %c0_82 = arith.constant 0 : index
    %92 = vector.load %arg9[%c0_81, %c0_82] : memref<1x256xf32, #tpu.memory_space<vmem>>, vector<1x256xf32>
    %93 = vector.broadcast %92 : vector<1x256xf32> to vector<256x256xf32>
    %94 = arith.mulf %91, %93 : vector<256x256xf32>
    %c0_83 = arith.constant 0 : index
    %c0_84 = arith.constant 0 : index
    %95 = vector.load %arg10[%c0_83, %c0_84] : memref<1x256xf32, #tpu.memory_space<vmem>>, vector<1x256xf32>
    %96 = vector.broadcast %95 : vector<1x256xf32> to vector<256x256xf32>
    %97 = arith.addf %94, %96 : vector<256x256xf32>
    %98 = arith.addf %97, %1 : vector<256x256xf32>
    %cst_85 = arith.constant 0.000000e+00 : f32
    %99 = vector.broadcast %cst_85 : f32 to vector<256x256xf32>
    %100 = arith.maximumf %98, %99 : vector<256x256xf32>
    %101 = vector.shape_cast %100 : vector<256x256xf32> to vector<1x16x16x256xf32>
    %c0_86 = arith.constant 0 : index
    %c0_87 = arith.constant 0 : index
    %c0_88 = arith.constant 0 : index
    %c0_89 = arith.constant 0 : index
    %102 = vector.load %arg11[%c0_86, %c0_87, %c0_88, %c0_89] : memref<1x16x16x256xf32, #tpu.memory_space<vmem>>, vector<1x16x16x256xf32>
    tpu.vector_store %arg11[%c0_86, %c0_87, %c0_88, %c0_89], %101 {strides = array<i32>} : memref<1x16x16x256xf32, #tpu.memory_space<vmem>>, vector<1x16x16x256xf32>,
    return
  }
  func.func @transform_0(%arg0: i32) -> (i32, i32, i32, i32) {
    %c0_i32 = arith.constant 0 : i32
    %c0_i32_0 = arith.constant 0 : i32
    %c0_i32_1 = arith.constant 0 : i32
    %c0_i32_2 = arith.constant 0 : i32
    return %arg0, %c0_i32, %c0_i32_0, %c0_i32_1 : i32, i32, i32, i32
  }
  func.func @transform_1(%arg0: i32) -> (i32, i32) {
    %c0_i32 = arith.constant 0 : i32
    %c0_i32_0 = arith.constant 0 : i32
    %c0_i32_1 = arith.constant 0 : i32
    return %c0_i32, %c0_i32_0 : i32, i32
  }
  func.func @transform_2(%arg0: i32) -> (i32, i32, i32) {
    %c0_i32 = arith.constant 0 : i32
    %c0_i32_0 = arith.constant 0 : i32
    %c0_i32_1 = arith.constant 0 : i32
    %c0_i32_2 = arith.constant 0 : i32
    return %c0_i32, %c0_i32_0, %c0_i32_1 : i32, i32, i32
  }
  func.func @transform_3(%arg0: i32) -> (i32, i32) {
    %c0_i32 = arith.constant 0 : i32
    %c0_i32_0 = arith.constant 0 : i32
    %c0_i32_1 = arith.constant 0 : i32
    return %c0_i32, %c0_i32_0 : i32, i32
  }
  func.func @transform_4(%arg0: i32) -> (i32, i32) {
    %c0_i32 = arith.constant 0 : i32
    %c0_i32_0 = arith.constant 0 : i32
    %c0_i32_1 = arith.constant 0 : i32
    return %c0_i32, %c0_i32_0 : i32, i32
  }
  func.func @transform_5(%arg0: i32) -> (i32, i32) {
    %c0_i32 = arith.constant 0 : i32
    %c0_i32_0 = arith.constant 0 : i32
    %c0_i32_1 = arith.constant 0 : i32
    return %c0_i32, %c0_i32_0 : i32, i32
  }
  func.func @transform_6(%arg0: i32) -> (i32, i32) {
    %c0_i32 = arith.constant 0 : i32
    %c0_i32_0 = arith.constant 0 : i32
    %c0_i32_1 = arith.constant 0 : i32
    return %c0_i32, %c0_i32_0 : i32, i32
  }
  func.func @transform_7(%arg0: i32) -> (i32, i32) {
    %c0_i32 = arith.constant 0 : i32
    %c0_i32_0 = arith.constant 0 : i32
    %c0_i32_1 = arith.constant 0 : i32
    return %c0_i32, %c0_i32_0 : i32, i32
  }
  func.func @transform_8(%arg0: i32) -> (i32, i32) {
    %c0_i32 = arith.constant 0 : i32
    %c0_i32_0 = arith.constant 0 : i32
    %c0_i32_1 = arith.constant 0 : i32
    return %c0_i32, %c0_i32_0 : i32, i32
  }
  func.func @transform_9(%arg0: i32) -> (i32, i32) {
    %c0_i32 = arith.constant 0 : i32
    %c0_i32_0 = arith.constant 0 : i32
    %c0_i32_1 = arith.constant 0 : i32
    return %c0_i32, %c0_i32_0 : i32, i32
  }
  func.func @transform_10(%arg0: i32) -> (i32, i32, i32, i32) {
    %c0_i32 = arith.constant 0 : i32
    %c0_i32_0 = arith.constant 0 : i32
    %c0_i32_1 = arith.constant 0 : i32
    %c0_i32_2 = arith.constant 0 : i32
    return %arg0, %c0_i32, %c0_i32_0, %c0_i32_1 : i32, i32, i32, i32
  }
}

</mosaic_0001>

<llo_original>
// kernel: bottleneck_forward.1
$region0: #{bottleneck_forward.1}
  #allocation0 [shape = 'u32[]', space=smem, size = 0x4, offset = 0x4, fixed_abs, tag = 'smem constant byte address 0x4 - core index']
  #allocation1 [shape = 'u32[144,128]{1,0:T(1,128)}', space=vmem, size = 0x12000, scoped, tag = 'internal scratch']
  #allocation2 [shape = 'f32[18,18,64]{2,1,0:T(8,128)}', space=vmem, size = 0x36000, scoped, tag = 'scratch operand']
  %s0 = inlined_call_operand.vmem [shape: f32[2,16,16,256], index: 0, kind: input, shape index: {}]
  %s1 = inlined_call_operand.vmem [shape: bf16[256,64], index: 1, kind: input, shape index: {}]
  %s2 = inlined_call_operand.vmem [shape: bf16[9,64,64], index: 2, kind: input, shape index: {}]
  %s3 = inlined_call_operand.vmem [shape: bf16[64,256], index: 3, kind: input, shape index: {}]
  %s4 = inlined_call_operand.vmem [shape: f32[1,64], index: 4, kind: input, shape index: {}]
  %s5 = inlined_call_operand.vmem [shape: f32[1,64], index: 5, kind: input, shape index: {}]
  %s6 = inlined_call_operand.vmem [shape: f32[1,64], index: 6, kind: input, shape index: {}]
  %s7 = inlined_call_operand.vmem [shape: f32[1,64], index: 7, kind: input, shape index: {}]
  %s8 = inlined_call_operand.vmem [shape: f32[1,256], index: 8, kind: input, shape index: {}]
  %s9 = inlined_call_operand.vmem [shape: f32[1,256], index: 9, kind: input, shape index: {}]
  %s10 = inlined_call_operand.hbm [shape: f32[2,16,16,256], index: 10, kind: output, shape index: {}]
  %s11 = sld [smem:[#allocation0]]
  $region73: #{bottleneck_forward.1} parent=0
    _
  %s13 = ssub.s32 1, %s11
  %s14 = scalar_select 0, %s13, %s11
  $region1: #{bottleneck_forward.1} parent=0
    #allocation3 [shape = 'u8[524288]{0}', space=vmem, size = 0x80000, scoped, tag = 'output window, operand 0']
    #allocation4 [shape = 's32[2]{0}', space=sflag, size = 0x8, scoped, tag = 'scoped memory for bottleneck_forward.1']
    %15 = vsyncpa [#allocation4], 0
    %s16 = scalar_lea.sflag [#allocation4], 1
    %17 = vsyncpa %s16, 0
    loop: start=0, step=1, limit=4
    $region2: #{bottleneck_forward.1} parent=1 // loop_pre_header
      _
    $region3: #{bottleneck_forward.1} parent=1 // loop_header
      %s19 = sphi 0, %s23
      %p20 = scmp.ge.s32.totalorder %s19, 4
      %s29 = sphi 0, %s31
      %s32 = sphi 0, %s29
      %s33 = sphi 0, %s32
      %s49 = sphi 0, %s33
      %s53 = sphi 0, %s53
      %s55 = sphi 0, %s53
      %s56 = sphi 0, %s55
      %s70 = sphi 0, %s56
      %s74 = sphi 0, %s74
      %s76 = sphi 0, %s74
      %s77 = sphi 0, %s76
      %s91 = sphi 0, %s77
      %s95 = sphi 0, %s95
      %s97 = sphi 0, %s95
      %s98 = sphi 0, %s97
      %s112 = sphi 0, %s98
      %s116 = sphi 0, %s116
      %s118 = sphi 0, %s116
      %s119 = sphi 0, %s118
      %s133 = sphi 0, %s119
      %s137 = sphi 0, %s137
      %s139 = sphi 0, %s137
      %s140 = sphi 0, %s139
      %s154 = sphi 0, %s140
      %s158 = sphi 0, %s158
      %s160 = sphi 0, %s158
      %s161 = sphi 0, %s160
      %s175 = sphi 0, %s161
      %s179 = sphi 0, %s179
      %s181 = sphi 0, %s179
      %s182 = sphi 0, %s181
      %s196 = sphi 0, %s182
      %s200 = sphi 0, %s200
      %s202 = sphi 0, %s200
      %s203 = sphi 0, %s202
      %s217 = sphi 0, %s203
      %s221 = sphi 0, %s221
      %s223 = sphi 0, %s221
      %s224 = sphi 0, %s223
      %s238 = sphi 0, %s224
      %s244 = sphi 0, %s246
      %s247 = sphi 0, %s244
      %s248 = sphi 0, %s247
      %s264 = sphi 0, %s248
    $region4: #{bottleneck_forward.1} parent=1 // loop_header_branch
      %22 = sbr.rel (%p20) target = $region8
    $region5: #{bottleneck_forward.1} parent=1 // loop_body
      %s24 = ssub.s32 %s19, 1
      %s25 = ssub.s32 %s19, 2
      %s26 = sadd.s32 %s19, 1
      %s27 = ssub.s32 %s19, %s26
      %p28 = scmp.eq.s32.totalorder %s27, 0
      %s30 = sadd.s32 %s29, 1
      %s31 = scalar_select %p28, %s29, %s30
      %p34 = pneg %p28
      %p35 = scmp.eq.s32.totalorder %s19, 1
      %p36 = por %p34, %p35
      %p37 = scmp.ne.s32.totalorder %s29, %s32
      %p38 = scmp.eq.s32.totalorder %s19, 0
      %p39 = por %p37, %p38
      %p40 = scmp.ne.s32.totalorder %s29, %s32
      %p41 = scmp.eq.s32.totalorder %s24, 1
      %p42 = por %p40, %p41
      %p43 = scmp.ne.s32.totalorder %s32, %s33
      %p44 = scmp.eq.s32.totalorder %s24, 0
      %p45 = por %p43, %p44
      %p46 = scmp.ne.s32.totalorder %s32, %s33
      %p47 = scmp.eq.s32.totalorder %s25, 1
      %p48 = por %p46, %p47
      %p50 = scmp.ne.s32.totalorder %s33, %s49
      %p51 = scmp.eq.s32.totalorder %s25, 0
      %p52 = por %p50, %p51
      %s54 = sadd.s32 %s53, 1
      %p57 = scmp.eq.s32.totalorder %s19, 1
      %p58 = scmp.ne.s32.totalorder %s53, %s55
      %p59 = scmp.eq.s32.totalorder %s19, 0
      %p60 = por %p58, %p59
      %p61 = scmp.ne.s32.totalorder %s53, %s55
      %p62 = scmp.eq.s32.totalorder %s24, 1
      %p63 = por %p61, %p62
      %p64 = scmp.ne.s32.totalorder %s55, %s56
      %p65 = scmp.eq.s32.totalorder %s24, 0
      %p66 = por %p64, %p65
      %p67 = scmp.ne.s32.totalorder %s55, %s56
      %p68 = scmp.eq.s32.totalorder %s25, 1
      %p69 = por %p67, %p68
      %p71 = scmp.ne.s32.totalorder %s56, %s70
      %p72 = scmp.eq.s32.totalorder %s25, 0
      %p73 = por %p71, %p72
      %s75 = sadd.s32 %s74, 1
      %p78 = scmp.eq.s32.totalorder %s19, 1
      %p79 = scmp.ne.s32.totalorder %s74, %s76
      %p80 = scmp.eq.s32.totalorder %s19, 0
      %p81 = por %p79, %p80
      %p82 = scmp.ne.s32.totalorder %s74, %s76
      %p83 = scmp.eq.s32.totalorder %s24, 1
      %p84 = por %p82, %p83
      %p85 = scmp.ne.s32.totalorder %s76, %s77
      %p86 = scmp.eq.s32.totalorder %s24, 0
      %p87 = por %p85, %p86
      %p88 = scmp.ne.s32.totalorder %s76, %s77
      %p89 = scmp.eq.s32.totalorder %s25, 1
      %p90 = por %p88, %p89
      %p92 = scmp.ne.s32.totalorder %s77, %s91
      %p93 = scmp.eq.s32.totalorder %s25, 0
      %p94 = por %p92, %p93
      %s96 = sadd.s32 %s95, 1
      %p99 = scmp.eq.s32.totalorder %s19, 1
      %p100 = scmp.ne.s32.totalorder %s95, %s97
      %p101 = scmp.eq.s32.totalorder %s19, 0
      %p102 = por %p100, %p101
      %p103 = scmp.ne.s32.totalorder %s95, %s97
      %p104 = scmp.eq.s32.totalorder %s24, 1
      %p105 = por %p103, %p104
      %p106 = scmp.ne.s32.totalorder %s97, %s98
      %p107 = scmp.eq.s32.totalorder %s24, 0
      %p108 = por %p106, %p107
      %p109 = scmp.ne.s32.totalorder %s97, %s98
      %p110 = scmp.eq.s32.totalorder %s25, 1
      %p111 = por %p109, %p110
      %p113 = scmp.ne.s32.totalorder %s98, %s112
      %p114 = scmp.eq.s32.totalorder %s25, 0
      %p115 = por %p113, %p114
      %s117 = sadd.s32 %s116, 1
      %p120 = scmp.eq.s32.totalorder %s19, 1
      %p121 = scmp.ne.s32.totalorder %s116, %s118
      %p122 = scmp.eq.s32.totalorder %s19, 0
      %p123 = por %p121, %p122
      %p124 = scmp.ne.s32.totalorder %s116, %s118
      %p125 = scmp.eq.s32.totalorder %s24, 1
      %p126 = por %p124, %p125
      %p127 = scmp.ne.s32.totalorder %s118, %s119
      %p128 = scmp.eq.s32.totalorder %s24, 0
      %p129 = por %p127, %p128
      %p130 = scmp.ne.s32.totalorder %s118, %s119
      %p131 = scmp.eq.s32.totalorder %s25, 1
      %p132 = por %p130, %p131
      %p134 = scmp.ne.s32.totalorder %s119, %s133
      %p135 = scmp.eq.s32.totalorder %s25, 0
      %p136 = por %p134, %p135
      %s138 = sadd.s32 %s137, 1
      %p141 = scmp.eq.s32.totalorder %s19, 1
      %p142 = scmp.ne.s32.totalorder %s137, %s139
      %p143 = scmp.eq.s32.totalorder %s19, 0
      %p144 = por %p142, %p143
      %p145 = scmp.ne.s32.totalorder %s137, %s139
      %p146 = scmp.eq.s32.totalorder %s24, 1
      %p147 = por %p145, %p146
      %p148 = scmp.ne.s32.totalorder %s139, %s140
      %p149 = scmp.eq.s32.totalorder %s24, 0
      %p150 = por %p148, %p149
      %p151 = scmp.ne.s32.totalorder %s139, %s140
      %p152 = scmp.eq.s32.totalorder %s25, 1
      %p153 = por %p151, %p152
      %p155 = scmp.ne.s32.totalorder %s140, %s154
      %p156 = scmp.eq.s32.totalorder %s25, 0
      %p157 = por %p155, %p156
      %s159 = sadd.s32 %s158, 1
      %p162 = scmp.eq.s32.totalorder %s19, 1
      %p163 = scmp.ne.s32.totalorder %s158, %s160
      %p164 = scmp.eq.s32.totalorder %s19, 0
      %p165 = por %p163, %p164
      %p166 = scmp.ne.s32.totalorder %s158, %s160
      %p167 = scmp.eq.s32.totalorder %s24, 1
      %p168 = por %p166, %p167
      %p169 = scmp.ne.s32.totalorder %s160, %s161
      %p170 = scmp.eq.s32.totalorder %s24, 0
      %p171 = por %p169, %p170
      %p172 = scmp.ne.s32.totalorder %s160, %s161
      %p173 = scmp.eq.s32.totalorder %s25, 1
      %p174 = por %p172, %p173
      %p176 = scmp.ne.s32.totalorder %s161, %s175
      %p177 = scmp.eq.s32.totalorder %s25, 0
      %p178 = por %p176, %p177
      %s180 = sadd.s32 %s179, 1
      %p183 = scmp.eq.s32.totalorder %s19, 1
      %p184 = scmp.ne.s32.totalorder %s179, %s181
      %p185 = scmp.eq.s32.totalorder %s19, 0
      %p186 = por %p184, %p185
      %p187 = scmp.ne.s32.totalorder %s179, %s181
      %p188 = scmp.eq.s32.totalorder %s24, 1
      %p189 = por %p187, %p188
      %p190 = scmp.ne.s32.totalorder %s181, %s182
      %p191 = scmp.eq.s32.totalorder %s24, 0
      %p192 = por %p190, %p191
      %p193 = scmp.ne.s32.totalorder %s181, %s182
      %p194 = scmp.eq.s32.totalorder %s25, 1
      %p195 = por %p193, %p194
      %p197 = scmp.ne.s32.totalorder %s182, %s196
      %p198 = scmp.eq.s32.totalorder %s25, 0
      %p199 = por %p197, %p198
      %s201 = sadd.s32 %s200, 1
      %p204 = scmp.eq.s32.totalorder %s19, 1
      %p205 = scmp.ne.s32.totalorder %s200, %s202
      %p206 = scmp.eq.s32.totalorder %s19, 0
      %p207 = por %p205, %p206
      %p208 = scmp.ne.s32.totalorder %s200, %s202
      %p209 = scmp.eq.s32.totalorder %s24, 1
      %p210 = por %p208, %p209
      %p211 = scmp.ne.s32.totalorder %s202, %s203
      %p212 = scmp.eq.s32.totalorder %s24, 0
      %p213 = por %p211, %p212
      %p214 = scmp.ne.s32.totalorder %s202, %s203
      %p215 = scmp.eq.s32.totalorder %s25, 1
      %p216 = por %p214, %p215
      %p218 = scmp.ne.s32.totalorder %s203, %s217
      %p219 = scmp.eq.s32.totalorder %s25, 0
      %p220 = por %p218, %p219
      %s222 = sadd.s32 %s221, 1
      %p225 = scmp.eq.s32.totalorder %s19, 1
      %p226 = scmp.ne.s32.totalorder %s221, %s223
      %p227 = scmp.eq.s32.totalorder %s19, 0
      %p228 = por %p226, %p227
      %p229 = scmp.ne.s32.totalorder %s221, %s223
      %p230 = scmp.eq.s32.totalorder %s24, 1
      %p231 = por %p229, %p230
      %p232 = scmp.ne.s32.totalorder %s223, %s224
      %p233 = scmp.eq.s32.totalorder %s24, 0
      %p234 = por %p232, %p233
      %p235 = scmp.ne.s32.totalorder %s223, %s224
      %p236 = scmp.eq.s32.totalorder %s25, 1
      %p237 = por %p235, %p236
      %p239 = scmp.ne.s32.totalorder %s224, %s238
      %p240 = scmp.eq.s32.totalorder %s25, 0
      %p241 = por %p239, %p240
      %s242 = ssub.s32 %s19, %s26
      %p243 = scmp.eq.s32.totalorder %s242, 0
      %s245 = sadd.s32 %s244, 1
      %s246 = scalar_select %p243, %s244, %s245
      %p249 = pneg %p243
      %p250 = scmp.eq.s32.totalorder %s19, 1
      %p251 = por %p249, %p250
      %p252 = scmp.ne.s32.totalorder %s244, %s247
      %p253 = scmp.eq.s32.totalorder %s19, 0
      %p254 = por %p252, %p253
      %p255 = scmp.ne.s32.totalorder %s244, %s247
      %p256 = scmp.eq.s32.totalorder %s24, 1
      %p257 = por %p255, %p256
      %p258 = scmp.ne.s32.totalorder %s247, %s248
      %p259 = scmp.eq.s32.totalorder %s24, 0
      %p260 = por %p258, %p259
      %p261 = scmp.ne.s32.totalorder %s247, %s248
      %p262 = scmp.eq.s32.totalorder %s25, 1
      %p263 = por %p261, %p262
      %p265 = scmp.ne.s32.totalorder %s248, %s264
      %p266 = scmp.eq.s32.totalorder %s25, 0
      %p267 = por %p265, %p266
      %p268 = scmp.le.s32.totalorder 1, %s19
      %p269 = scmp.lt.s32.totalorder %s19, 3
      %p270 = pnand %p268, %p269
      %p271 = pneg %p270
      // Predicated region
      $region9: #{bottleneck_forward.1} parent=5 // pred_check
        _
      $region10: #{bottleneck_forward.1} parent=5 // pred_check_branch
        %273 = sbr.rel (%p270) target = $region12
      $region11: #{bottleneck_forward.1} parent=5 // pred_region
        %s274 = ssub.s32 %s19, 1
        // Predicated region
        $region13: #{bottleneck_forward.1} parent=11 // pred_check
          %p275 = pneg %p66
        $region14: #{bottleneck_forward.1} parent=11 // pred_check_branch
          %277 = sbr.rel (%p275) target = $region16
        $region15: #{bottleneck_forward.1} parent=11 // pred_region
          _
        $region16: #{bottleneck_forward.1} parent=11 // pred_fallthru
          _
        // Predicated region
        $region17: #{bottleneck_forward.1} parent=11 // pred_check
          %p278 = pneg %p87
        $region18: #{bottleneck_forward.1} parent=11 // pred_check_branch
          %280 = sbr.rel (%p278) target = $region20
        $region19: #{bottleneck_forward.1} parent=11 // pred_region
          _
        $region20: #{bottleneck_forward.1} parent=11 // pred_fallthru
          _
        // Predicated region
        $region21: #{bottleneck_forward.1} parent=11 // pred_check
          %p281 = pneg %p108
        $region22: #{bottleneck_forward.1} parent=11 // pred_check_branch
          %283 = sbr.rel (%p281) target = $region24
        $region23: #{bottleneck_forward.1} parent=11 // pred_region
          _
        $region24: #{bottleneck_forward.1} parent=11 // pred_fallthru
          _
        // Predicated region
        $region25: #{bottleneck_forward.1} parent=11 // pred_check
          %p284 = pneg %p129
        $region26: #{bottleneck_forward.1} parent=11 // pred_check_branch
          %286 = sbr.rel (%p284) target = $region28
        $region27: #{bottleneck_forward.1} parent=11 // pred_region
          _
        $region28: #{bottleneck_forward.1} parent=11 // pred_fallthru
          _
        // Predicated region
        $region29: #{bottleneck_forward.1} parent=11 // pred_check
          %p287 = pneg %p150
        $region30: #{bottleneck_forward.1} parent=11 // pred_check_branch
          %289 = sbr.rel (%p287) target = $region32
        $region31: #{bottleneck_forward.1} parent=11 // pred_region
          _
        $region32: #{bottleneck_forward.1} parent=11 // pred_fallthru
          _
        // Predicated region
        $region33: #{bottleneck_forward.1} parent=11 // pred_check
          %p290 = pneg %p171
        $region34: #{bottleneck_forward.1} parent=11 // pred_check_branch
          %292 = sbr.rel (%p290) target = $region36
        $region35: #{bottleneck_forward.1} parent=11 // pred_region
          _
        $region36: #{bottleneck_forward.1} parent=11 // pred_fallthru
          _
        // Predicated region
        $region37: #{bottleneck_forward.1} parent=11 // pred_check
          %p293 = pneg %p192
        $region38: #{bottleneck_forward.1} parent=11 // pred_check_branch
          %295 = sbr.rel (%p293) target = $region40
        $region39: #{bottleneck_forward.1} parent=11 // pred_region
          _
        $region40: #{bottleneck_forward.1} parent=11 // pred_fallthru
          _
        // Predicated region
        $region41: #{bottleneck_forward.1} parent=11 // pred_check
          %p296 = pneg %p213
        $region42: #{bottleneck_forward.1} parent=11 // pred_check_branch
          %298 = sbr.rel (%p296) target = $region44
        $region43: #{bottleneck_forward.1} parent=11 // pred_region
          _
        $region44: #{bottleneck_forward.1} parent=11 // pred_fallthru
          _
        // Predicated region
        $region45: #{bottleneck_forward.1} parent=11 // pred_check
          %p299 = pneg %p234
        $region46: #{bottleneck_forward.1} parent=11 // pred_check_branch
          %301 = sbr.rel (%p299) target = $region48
        $region47: #{bottleneck_forward.1} parent=11 // pred_region
          _
        $region48: #{bottleneck_forward.1} parent=11 // pred_fallthru
          _
      $region12: #{bottleneck_forward.1} parent=5 // pred_fallthru
        _
      %p302 = scmp.lt.s32.totalorder %s19, 2
      // Predicated region
      $region49: #{bottleneck_forward.1} parent=5 // pred_check
        %p303 = pneg %p302
      $region50: #{bottleneck_forward.1} parent=5 // pred_check_branch
        %305 = sbr.rel (%p303) target = $region52
      $region51: #{bottleneck_forward.1} parent=5 // pred_region
        // Predicated region
        $region53: #{bottleneck_forward.1} parent=51 // pred_check
          %p306 = pneg %p39
        $region54: #{bottleneck_forward.1} parent=51 // pred_check_branch
          %308 = sbr.rel (%p306) target = $region56
        $region55: #{bottleneck_forward.1} parent=51 // pred_region
          %p309 = scmp.lt.s32.totalorder %s19, 1
          %s310 = scalar_select %p309, %s19, 1
          %s311 = smul.addr %s310, 64
          %s312 = smul.addr %s311, 8
          %s313 = scalar_lea.vmem %s0, %s312
        $region56: #{bottleneck_forward.1} parent=51 // pred_fallthru
          _
      $region52: #{bottleneck_forward.1} parent=5 // pred_fallthru
        _
      %p314 = scmp.le.s32.totalorder 1, %s19
      %p315 = scmp.lt.s32.totalorder %s19, 3
      %p316 = pnand %p314, %p315
      %p317 = pneg %p316
      // Predicated region
      $region57: #{bottleneck_forward.1} parent=5 // pred_check
        _
      $region58: #{bottleneck_forward.1} parent=5 // pred_check_branch
        %319 = sbr.rel (%p316) target = $region60
      $region59: #{bottleneck_forward.1} parent=5 // pred_region
        %s320 = ssub.s32 %s19, 1
        %p321 = scmp.lt.s32.totalorder %s24, 1
        %s322 = scalar_select %p321, %s24, 1
        %s323 = smul.addr %s322, 64
        %s324 = smul.addr %s323, 8
        %s325 = scalar_lea.vmem %s0, %s324
        %p326 = pneg %p45
        %p327 = pneg %p42
        %p328 = pneg %p66
        %p329 = pneg %p63
        %p330 = pneg %p87
        %p331 = pneg %p84
        %p332 = pneg %p108
        %p333 = pneg %p105
        %p334 = pneg %p129
        %p335 = pneg %p126
        %p336 = pneg %p150
        %p337 = pneg %p147
        %p338 = pneg %p171
        %p339 = pneg %p168
        %p340 = pneg %p192
        %p341 = pneg %p189
        %p342 = pneg %p213
        %p343 = pneg %p210
        %p344 = pneg %p234
        %p345 = pneg %p231
        %p346 = pneg %p260
        %p347 = pneg %p257
        %s348 = sand.u32 %s247, 1
        %s349 = scalar_lea.sflag [#allocation4], %s348
        %s350 = sand.u32 %s247, 1
        %s351 = smul.addr %s350, 512
        %s352 = scalar_lea.vmem [#allocation3], %s351
        %p353 = scmp.lt.s32.totalorder %s24, 1
        %s354 = scalar_select %p353, %s24, 1
        %s355 = smul.addr %s354, 64
        %s356 = smul.addr %s355, 8
        %s357 = scalar_lea.vmem %s0, %s356
        %v359 = vld [vmem:[%s357] sm:$0xff]
        %v360 = vld [vmem:[%s357 + $0x8] sm:$0xff]
        %v361 = vld [vmem:[%s357 + $0x10] sm:$0xff]
        %v362 = vld [vmem:[%s357 + $0x18] sm:$0xff]
        %v363 = vld [vmem:[%s357 + $0x20] sm:$0xff]
        %v364 = vld [vmem:[%s357 + $0x28] sm:$0xff]
        %v365 = vld [vmem:[%s357 + $0x30] sm:$0xff]
        %v366 = vld [vmem:[%s357 + $0x38] sm:$0xff]
        %v367 = vld [vmem:[%s357 + $0x40] sm:$0xff]
        %v368 = vld [vmem:[%s357 + $0x48] sm:$0xff]
        %v369 = vld [vmem:[%s357 + $0x50] sm:$0xff]
        %v370 = vld [vmem:[%s357 + $0x58] sm:$0xff]
        %v371 = vld [vmem:[%s357 + $0x60] sm:$0xff]
        %v372 = vld [vmem:[%s357 + $0x68] sm:$0xff]
        %v373 = vld [vmem:[%s357 + $0x70] sm:$0xff]
        %v374 = vld [vmem:[%s357 + $0x78] sm:$0xff]
        %v375 = vld [vmem:[%s357 + $0x80] sm:$0xff]
        %v376 = vld [vmem:[%s357 + $0x88] sm:$0xff]
        %v377 = vld [vmem:[%s357 + $0x90] sm:$0xff]
        %v378 = vld [vmem:[%s357 + $0x98] sm:$0xff]
        %v379 = vld [vmem:[%s357 + $0xa0] sm:$0xff]
        %v380 = vld [vmem:[%s357 + $0xa8] sm:$0xff]
        %v381 = vld [vmem:[%s357 + $0xb0] sm:$0xff]
        %v382 = vld [vmem:[%s357 + $0xb8] sm:$0xff]
        %v383 = vld [vmem:[%s357 + $0xc0] sm:$0xff]
        %v384 = vld [vmem:[%s357 + $0xc8] sm:$0xff]
        %v385 = vld [vmem:[%s357 + $0xd0] sm:$0xff]
        %v386 = vld [vmem:[%s357 + $0xd8] sm:$0xff]
        %v387 = vld [vmem:[%s357 + $0xe0] sm:$0xff]
        %v388 = vld [vmem:[%s357 + $0xe8] sm:$0xff]
        %v389 = vld [vmem:[%s357 + $0xf0] sm:$0xff]
        %v390 = vld [vmem:[%s357 + $0xf8] sm:$0xff]
        %v391 = vld [vmem:[%s357 + $0x100] sm:$0xff]
        %v392 = vld [vmem:[%s357 + $0x108] sm:$0xff]
        %v393 = vld [vmem:[%s357 + $0x110] sm:$0xff]
        %v394 = vld [vmem:[%s357 + $0x118] sm:$0xff]
        %v395 = vld [vmem:[%s357 + $0x120] sm:$0xff]
        %v396 = vld [vmem:[%s357 + $0x128] sm:$0xff]
        %v397 = vld [vmem:[%s357 + $0x130] sm:$0xff]
        %v398 = vld [vmem:[%s357 + $0x138] sm:$0xff]
        %v399 = vld [vmem:[%s357 + $0x140] sm:$0xff]
        %v400 = vld [vmem:[%s357 + $0x148] sm:$0xff]
        %v401 = vld [vmem:[%s357 + $0x150] sm:$0xff]
        %v402 = vld [vmem:[%s357 + $0x158] sm:$0xff]
        %v403 = vld [vmem:[%s357 + $0x160] sm:$0xff]
        %v404 = vld [vmem:[%s357 + $0x168] sm:$0xff]
        %v405 = vld [vmem:[%s357 + $0x170] sm:$0xff]
        %v406 = vld [vmem:[%s357 + $0x178] sm:$0xff]
        %v407 = vld [vmem:[%s357 + $0x180] sm:$0xff]
        %v408 = vld [vmem:[%s357 + $0x188] sm:$0xff]
        %v409 = vld [vmem:[%s357 + $0x190] sm:$0xff]
        %v410 = vld [vmem:[%s357 + $0x198] sm:$0xff]
        %v411 = vld [vmem:[%s357 + $0x1a0] sm:$0xff]
        %v412 = vld [vmem:[%s357 + $0x1a8] sm:$0xff]
        %v413 = vld [vmem:[%s357 + $0x1b0] sm:$0xff]
        %v414 = vld [vmem:[%s357 + $0x1b8] sm:$0xff]
        %v415 = vld [vmem:[%s357 + $0x1c0] sm:$0xff]
        %v416 = vld [vmem:[%s357 + $0x1c8] sm:$0xff]
        %v417 = vld [vmem:[%s357 + $0x1d0] sm:$0xff]
        %v418 = vld [vmem:[%s357 + $0x1d8] sm:$0xff]
        %v419 = vld [vmem:[%s357 + $0x1e0] sm:$0xff]
        %v420 = vld [vmem:[%s357 + $0x1e8] sm:$0xff]
        %v421 = vld [vmem:[%s357 + $0x1f0] sm:$0xff]
        %v422 = vld [vmem:[%s357 + $0x1f8] sm:$0xff]
        %v423 = vpack.c.bf16 %v361, %v359
        %v424 = vpack.c.bf16 %v362, %v360
        %v425 = vpack.c.bf16 %v365, %v363
        %v426 = vpack.c.bf16 %v366, %v364
        %v427 = vpack.c.bf16 %v369, %v367
        %v428 = vpack.c.bf16 %v370, %v368
        %v429 = vpack.c.bf16 %v373, %v371
        %v430 = vpack.c.bf16 %v374, %v372
        %v431 = vpack.c.bf16 %v377, %v375
        %v432 = vpack.c.bf16 %v378, %v376
        %v433 = vpack.c.bf16 %v381, %v379
        %v434 = vpack.c.bf16 %v382, %v380
        %v435 = vpack.c.bf16 %v385, %v383
        %v436 = vpack.c.bf16 %v386, %v384
        %v437 = vpack.c.bf16 %v389, %v387
        %v438 = vpack.c.bf16 %v390, %v388
        %v439 = vpack.c.bf16 %v393, %v391
        %v440 = vpack.c.bf16 %v394, %v392
        %v441 = vpack.c.bf16 %v397, %v395
        %v442 = vpack.c.bf16 %v398, %v396
        %v443 = vpack.c.bf16 %v401, %v399
        %v444 = vpack.c.bf16 %v402, %v400
        %v445 = vpack.c.bf16 %v405, %v403
        %v446 = vpack.c.bf16 %v406, %v404
        %v447 = vpack.c.bf16 %v409, %v407
        %v448 = vpack.c.bf16 %v410, %v408
        %v449 = vpack.c.bf16 %v413, %v411
        %v450 = vpack.c.bf16 %v414, %v412
        %v451 = vpack.c.bf16 %v417, %v415
        %v452 = vpack.c.bf16 %v418, %v416
        %v453 = vpack.c.bf16 %v421, %v419
        %v454 = vpack.c.bf16 %v422, %v420
        %v455 = vld [vmem:[%s1] sm:$0xf]
        %v456 = vld [vmem:[%s1 + $0x4] sm:$0xf]
        %v457 = vld [vmem:[%s1 + $0x8] sm:$0xf]
        %v458 = vld [vmem:[%s1 + $0xc] sm:$0xf]
        %v459 = vld [vmem:[%s1 + $0x10] sm:$0xf]
        %v460 = vld [vmem:[%s1 + $0x14] sm:$0xf]
        %v461 = vld [vmem:[%s1 + $0x18] sm:$0xf]
        %v462 = vld [vmem:[%s1 + $0x1c] sm:$0xf]
        %v463 = vld [vmem:[%s1 + $0x20] sm:$0xf]
        %v464 = vld [vmem:[%s1 + $0x24] sm:$0xf]
        %v465 = vld [vmem:[%s1 + $0x28] sm:$0xf]
        %v466 = vld [vmem:[%s1 + $0x2c] sm:$0xf]
        %v467 = vld [vmem:[%s1 + $0x30] sm:$0xf]
        %v468 = vld [vmem:[%s1 + $0x34] sm:$0xf]
        %v469 = vld [vmem:[%s1 + $0x38] sm:$0xf]
        %v470 = vld [vmem:[%s1 + $0x3c] sm:$0xf]
        %v471 = vld [vmem:[%s1 + $0x40] sm:$0xf]
        %v472 = vld [vmem:[%s1 + $0x44] sm:$0xf]
        %v473 = vld [vmem:[%s1 + $0x48] sm:$0xf]
        %v474 = vld [vmem:[%s1 + $0x4c] sm:$0xf]
        %v475 = vld [vmem:[%s1 + $0x50] sm:$0xf]
        %v476 = vld [vmem:[%s1 + $0x54] sm:$0xf]
        %v477 = vld [vmem:[%s1 + $0x58] sm:$0xf]
        %v478 = vld [vmem:[%s1 + $0x5c] sm:$0xf]
        %v479 = vld [vmem:[%s1 + $0x60] sm:$0xf]
        %v480 = vld [vmem:[%s1 + $0x64] sm:$0xf]
        %v481 = vld [vmem:[%s1 + $0x68] sm:$0xf]
        %v482 = vld [vmem:[%s1 + $0x6c] sm:$0xf]
        %v483 = vld [vmem:[%s1 + $0x70] sm:$0xf]
        %v484 = vld [vmem:[%s1 + $0x74] sm:$0xf]
        %v485 = vld [vmem:[%s1 + $0x78] sm:$0xf]
        %v486 = vld [vmem:[%s1 + $0x7c] sm:$0xf]
        %v519 = vunpack.c.l.b16 %v455
        %v520 = vunpack.c.l.b16 %v456
        %v521 = vunpack.c.l.b16 %v457
        %v522 = vunpack.c.l.b16 %v458
        %v523 = vunpack.c.l.b16 %v459
        %v524 = vunpack.c.l.b16 %v460
        %v525 = vunpack.c.l.b16 %v461
        %v526 = vunpack.c.l.b16 %v462
        %v527 = vunpack.c.l.b16 %v463
        %v528 = vunpack.c.l.b16 %v464
        %v529 = vunpack.c.l.b16 %v465
        %v530 = vunpack.c.l.b16 %v466
        %v531 = vunpack.c.l.b16 %v467
        %v532 = vunpack.c.l.b16 %v468
        %v533 = vunpack.c.l.b16 %v469
        %v534 = vunpack.c.l.b16 %v470
        %v535 = vunpack.c.l.b16 %v471
        %v536 = vunpack.c.l.b16 %v472
        %v537 = vunpack.c.l.b16 %v473
        %v538 = vunpack.c.l.b16 %v474
        %v539 = vunpack.c.l.b16 %v475
        %v540 = vunpack.c.l.b16 %v476
        %v541 = vunpack.c.l.b16 %v477
        %v542 = vunpack.c.l.b16 %v478
        %v543 = vunpack.c.l.b16 %v479
        %v544 = vunpack.c.l.b16 %v480
        %v545 = vunpack.c.l.b16 %v481
        %v546 = vunpack.c.l.b16 %v482
        %v547 = vunpack.c.l.b16 %v483
        %v548 = vunpack.c.l.b16 %v484
        %v549 = vunpack.c.l.b16 %v485
        %v550 = vunpack.c.l.b16 %v486
        %v551 = vpack.c.b16 %v520, %v519
        %v552 = vpack.c.b16 %v522, %v521
        %v553 = vpack.c.b16 %v524, %v523
        %v554 = vpack.c.b16 %v526, %v525
        %v555 = vpack.c.b16 %v528, %v527
        %v556 = vpack.c.b16 %v530, %v529
        %v557 = vpack.c.b16 %v532, %v531
        %v558 = vpack.c.b16 %v534, %v533
        %v559 = vpack.c.b16 %v536, %v535
        %v560 = vpack.c.b16 %v538, %v537
        %v561 = vpack.c.b16 %v540, %v539
        %v562 = vpack.c.b16 %v542, %v541
        %v563 = vpack.c.b16 %v544, %v543
        %v564 = vpack.c.b16 %v546, %v545
        %v565 = vpack.c.b16 %v548, %v547
        %v566 = vpack.c.b16 %v550, %v549
        %583 = vmatprep.subr.bf16.mxu0 0
        %584 = vmatpush1.bf16.msra.mxu0 %v551
        %585 = vmatprep.subr.bf16.mxu0 0
        %586 = vmatpush1.bf16.msra.mxu0 %v552
        %587 = vmatprep.subr.bf16.mxu0 0
        %588 = vmatpush1.bf16.msra.mxu0 %v553
        %589 = vmatprep.subr.bf16.mxu0 0
        %590 = vmatpush1.bf16.msra.mxu0 %v554
        %591 = vmatprep.subr.bf16.mxu0 0
        %592 = vmatpush1.bf16.msra.mxu0 %v555
        %593 = vmatprep.subr.bf16.mxu0 0
        %594 = vmatpush1.bf16.msra.mxu0 %v556
        %595 = vmatprep.subr.bf16.mxu0 0
        %596 = vmatpush1.bf16.msra.mxu0 %v557
        %597 = vmatprep.subr.bf16.mxu0 0
        %598 = vmatpush1.bf16.msra.mxu0 %v558
        %599 = vmatprep.subr.bf16.mxu0 0
        %600 = vmatpush1.bf16.msra.mxu0 %v559
        %601 = vmatprep.subr.bf16.mxu0 0
        %602 = vmatpush1.bf16.msra.mxu0 %v560
        %603 = vmatprep.subr.bf16.mxu0 0
        %604 = vmatpush1.bf16.msra.mxu0 %v561
        %605 = vmatprep.subr.bf16.mxu0 0
        %606 = vmatpush1.bf16.msra.mxu0 %v562
        %607 = vmatprep.subr.bf16.mxu0 0
        %608 = vmatpush1.bf16.msra.mxu0 %v563
        %609 = vmatprep.subr.bf16.mxu0 0
        %610 = vmatpush1.bf16.msra.mxu0 %v564
        %611 = vmatprep.subr.bf16.mxu0 0
        %612 = vmatpush1.bf16.msra.mxu0 %v565
        %613 = vmatprep.subr.bf16.mxu0 0
        %614 = vmatpush1.bf16.msra.mxu0 %v566
        %615 = vmatprep.mubr.bf16.mxu0 %v424
        %616 = vmatmul.mubr.bf16.gmra.mrb[0].mxu0 %v423
        %v617 = vpop.f32.mrb[0].mxu0
        %v618 = vadd.f32 0.0, %v617
        %v619 = vpop.f32.mrb[0].mxu0
        %v620 = vpop.f32.mrb[0].mxu0
        %v621 = vadd.f32 0.0, %v620
        %v622 = vpop.f32.mrb[0].mxu0
        %623 = vmatprep.mubr.bf16.mxu0 %v426
        %624 = vmatmul.mubr.bf16.gmra.mrb[0].mxu0 %v425
        %v625 = vpop.f32.mrb[0].mxu0
        %v626 = vadd.f32 0.0, %v625
        %v627 = vpop.f32.mrb[0].mxu0
        %v628 = vpop.f32.mrb[0].mxu0
        %v629 = vadd.f32 0.0, %v628
        %v630 = vpop.f32.mrb[0].mxu0
        %631 = vmatprep.mubr.bf16.mxu0 %v428
        %632 = vmatmul.mubr.bf16.gmra.mrb[0].mxu0 %v427
        %v633 = vpop.f32.mrb[0].mxu0
        %v634 = vadd.f32 0.0, %v633
        %v635 = vpop.f32.mrb[0].mxu0
        %v636 = vpop.f32.mrb[0].mxu0
        %v637 = vadd.f32 0.0, %v636
        %v638 = vpop.f32.mrb[0].mxu0
        %639 = vmatprep.mubr.bf16.mxu0 %v430
        %640 = vmatmul.mubr.bf16.gmra.mrb[0].mxu0 %v429
        %v641 = vpop.f32.mrb[0].mxu0
        %v642 = vadd.f32 0.0, %v641
        %v643 = vpop.f32.mrb[0].mxu0
        %v644 = vpop.f32.mrb[0].mxu0
        %v645 = vadd.f32 0.0, %v644
        %v646 = vpop.f32.mrb[0].mxu0
        %647 = vmatprep.mubr.bf16.mxu0 %v432
        %648 = vmatmul.mubr.bf16.gmra.mrb[0].mxu0 %v431
        %v649 = vpop.f32.mrb[0].mxu0
        %v650 = vadd.f32 0.0, %v649
        %v651 = vpop.f32.mrb[0].mxu0
        %v652 = vpop.f32.mrb[0].mxu0
        %v653 = vadd.f32 0.0, %v652
        %v654 = vpop.f32.mrb[0].mxu0
        %655 = vmatprep.mubr.bf16.mxu0 %v434
        %656 = vmatmul.mubr.bf16.gmra.mrb[0].mxu0 %v433
        %v657 = vpop.f32.mrb[0].mxu0
        %v658 = vadd.f32 0.0, %v657
        %v659 = vpop.f32.mrb[0].mxu0
        %v660 = vpop.f32.mrb[0].mxu0
        %v661 = vadd.f32 0.0, %v660
        %v662 = vpop.f32.mrb[0].mxu0
        %663 = vmatprep.mubr.bf16.mxu0 %v436
        %664 = vmatmul.mubr.bf16.gmra.mrb[0].mxu0 %v435
        %v665 = vpop.f32.mrb[0].mxu0
        %v666 = vadd.f32 0.0, %v665
        %v667 = vpop.f32.mrb[0].mxu0
        %v668 = vpop.f32.mrb[0].mxu0
        %v669 = vadd.f32 0.0, %v668
        %v670 = vpop.f32.mrb[0].mxu0
        %671 = vmatprep.mubr.bf16.mxu0 %v438
        %672 = vmatmul.mubr.bf16.gmra.mrb[0].mxu0 %v437
        %v673 = vpop.f32.mrb[0].mxu0
        %v674 = vadd.f32 0.0, %v673
        %v675 = vpop.f32.mrb[0].mxu0
        %v676 = vpop.f32.mrb[0].mxu0
        %v677 = vadd.f32 0.0, %v676
        %v678 = vpop.f32.mrb[0].mxu0
        %679 = vmatprep.mubr.bf16.mxu0 %v440
        %680 = vmatmul.mubr.bf16.gmra.mrb[0].mxu0 %v439
        %v681 = vpop.f32.mrb[0].mxu0
        %v682 = vadd.f32 0.0, %v681
        %v683 = vpop.f32.mrb[0].mxu0
        %v684 = vpop.f32.mrb[0].mxu0
        %v685 = vadd.f32 0.0, %v684
        %v686 = vpop.f32.mrb[0].mxu0
        %687 = vmatprep.mubr.bf16.mxu0 %v442
        %688 = vmatmul.mubr.bf16.gmra.mrb[0].mxu0 %v441
        %v689 = vpop.f32.mrb[0].mxu0
        %v690 = vadd.f32 0.0, %v689
        %v691 = vpop.f32.mrb[0].mxu0
        %v692 = vpop.f32.mrb[0].mxu0
        %v693 = vadd.f32 0.0, %v692
        %v694 = vpop.f32.mrb[0].mxu0
        %695 = vmatprep.mubr.bf16.mxu0 %v444
        %696 = vmatmul.mubr.bf16.gmra.mrb[0].mxu0 %v443
        %v697 = vpop.f32.mrb[0].mxu0
        %v698 = vadd.f32 0.0, %v697
        %v699 = vpop.f32.mrb[0].mxu0
        %v700 = vpop.f32.mrb[0].mxu0
        %v701 = vadd.f32 0.0, %v700
        %v702 = vpop.f32.mrb[0].mxu0
        %703 = vmatprep.mubr.bf16.mxu0 %v446
        %704 = vmatmul.mubr.bf16.gmra.mrb[0].mxu0 %v445
        %v705 = vpop.f32.mrb[0].mxu0
        %v706 = vadd.f32 0.0, %v705
        %v707 = vpop.f32.mrb[0].mxu0
        %v708 = vpop.f32.mrb[0].mxu0
        %v709 = vadd.f32 0.0, %v708
        %v710 = vpop.f32.mrb[0].mxu0
        %711 = vmatprep.mubr.bf16.mxu0 %v448
        %712 = vmatmul.mubr.bf16.gmra.mrb[0].mxu0 %v447
        %v713 = vpop.f32.mrb[0].mxu0
        %v714 = vadd.f32 0.0, %v713
        %v715 = vpop.f32.mrb[0].mxu0
        %v716 = vpop.f32.mrb[0].mxu0
        %v717 = vadd.f32 0.0, %v716
        %v718 = vpop.f32.mrb[0].mxu0
        %719 = vmatprep.mubr.bf16.mxu0 %v450
        %720 = vmatmul.mubr.bf16.gmra.mrb[0].mxu0 %v449
        %v721 = vpop.f32.mrb[0].mxu0
        %v722 = vadd.f32 0.0, %v721
        %v723 = vpop.f32.mrb[0].mxu0
        %v724 = vpop.f32.mrb[0].mxu0
        %v725 = vadd.f32 0.0, %v724
        %v726 = vpop.f32.mrb[0].mxu0
        %727 = vmatprep.mubr.bf16.mxu0 %v452
        %728 = vmatmul.mubr.bf16.gmra.mrb[0].mxu0 %v451
        %v729 = vpop.f32.mrb[0].mxu0
        %v730 = vadd.f32 0.0, %v729
        %v731 = vpop.f32.mrb[0].mxu0
        %v732 = vpop.f32.mrb[0].mxu0
        %v733 = vadd.f32 0.0, %v732
        %v734 = vpop.f32.mrb[0].mxu0
        %735 = vmatprep.mubr.bf16.mxu0 %v454
        %736 = vmatmul.mubr.bf16.gmra.mrb[0].mxu0 %v453
        %v737 = vpop.f32.mrb[0].mxu0
        %v738 = vadd.f32 0.0, %v737
        %v739 = vpop.f32.mrb[0].mxu0
        %v740 = vpop.f32.mrb[0].mxu0
        %v741 = vadd.f32 0.0, %v740
        %v742 = vpop.f32.mrb[0].mxu0
        %743 = vdwg.mxu0
        %v744 = vld [vmem:[%s4] sm:$0x1]
        %v746 = vlaneseq
        %v747 = vshrl.u32 %v746, 7
        %v748 = vsub.s32 0, %v747
        %v749 = vrot.slane %v744, %v748
        %v751 = vmul.f32 %v618, %v749
        %v752 = vmul.f32 %v621, %v749
        %v753 = vmul.f32 %v626, %v749
        %v754 = vmul.f32 %v629, %v749
        %v755 = vmul.f32 %v634, %v749
        %v756 = vmul.f32 %v637, %v749
        %v757 = vmul.f32 %v642, %v749
        %v758 = vmul.f32 %v645, %v749
        %v759 = vmul.f32 %v650, %v749
        %v760 = vmul.f32 %v653, %v749
        %v761 = vmul.f32 %v658, %v749
        %v762 = vmul.f32 %v661, %v749
        %v763 = vmul.f32 %v666, %v749
        %v764 = vmul.f32 %v669, %v749
        %v765 = vmul.f32 %v674, %v749
        %v766 = vmul.f32 %v677, %v749
        %v767 = vmul.f32 %v682, %v749
        %v768 = vmul.f32 %v685, %v749
        %v769 = vmul.f32 %v690, %v749
        %v770 = vmul.f32 %v693, %v749
        %v771 = vmul.f32 %v698, %v749
        %v772 = vmul.f32 %v701, %v749
        %v773 = vmul.f32 %v706, %v749
        %v774 = vmul.f32 %v709, %v749
        %v775 = vmul.f32 %v714, %v749
        %v776 = vmul.f32 %v717, %v749
        %v777 = vmul.f32 %v722, %v749
        %v778 = vmul.f32 %v725, %v749
        %v779 = vmul.f32 %v730, %v749
        %v780 = vmul.f32 %v733, %v749
        %v781 = vmul.f32 %v738, %v749
        %v782 = vmul.f32 %v741, %v749
        %v783 = vld [vmem:[%s5] sm:$0x1]
        %v785 = vlaneseq
        %v786 = vshrl.u32 %v785, 7
        %v787 = vsub.s32 0, %v786
        %v788 = vrot.slane %v783, %v787
        %v790 = vadd.f32 %v751, %v788
        %v791 = vadd.f32 %v752, %v788
        %v792 = vadd.f32 %v753, %v788
        %v793 = vadd.f32 %v754, %v788
        %v794 = vadd.f32 %v755, %v788
        %v795 = vadd.f32 %v756, %v788
        %v796 = vadd.f32 %v757, %v788
        %v797 = vadd.f32 %v758, %v788
        %v798 = vadd.f32 %v759, %v788
        %v799 = vadd.f32 %v760, %v788
        %v800 = vadd.f32 %v761, %v788
        %v801 = vadd.f32 %v762, %v788
        %v802 = vadd.f32 %v763, %v788
        %v803 = vadd.f32 %v764, %v788
        %v804 = vadd.f32 %v765, %v788
        %v805 = vadd.f32 %v766, %v788
        %v806 = vadd.f32 %v767, %v788
        %v807 = vadd.f32 %v768, %v788
        %v808 = vadd.f32 %v769, %v788
        %v809 = vadd.f32 %v770, %v788
        %v810 = vadd.f32 %v771, %v788
        %v811 = vadd.f32 %v772, %v788
        %v812 = vadd.f32 %v773, %v788
        %v813 = vadd.f32 %v774, %v788
        %v814 = vadd.f32 %v775, %v788
        %v815 = vadd.f32 %v776, %v788
        %v816 = vadd.f32 %v777, %v788
        %v817 = vadd.f32 %v778, %v788
        %v818 = vadd.f32 %v779, %v788
        %v819 = vadd.f32 %v780, %v788
        %v820 = vadd.f32 %v781, %v788
        %v821 = vadd.f32 %v782, %v788
        %v822 = vmax.f32 %v790, 0.0
        %v823 = vmax.f32 %v791, 0.0
        %v824 = vmax.f32 %v792, 0.0
        %v825 = vmax.f32 %v793, 0.0
        %v826 = vmax.f32 %v794, 0.0
        %v827 = vmax.f32 %v795, 0.0
        %v828 = vmax.f32 %v796, 0.0
        %v829 = vmax.f32 %v797, 0.0
        %v830 = vmax.f32 %v798, 0.0
        %v831 = vmax.f32 %v799, 0.0
        %v832 = vmax.f32 %v800, 0.0
        %v833 = vmax.f32 %v801, 0.0
        %v834 = vmax.f32 %v802, 0.0
        %v835 = vmax.f32 %v803, 0.0
        %v836 = vmax.f32 %v804, 0.0
        %v837 = vmax.f32 %v805, 0.0
        %v838 = vmax.f32 %v806, 0.0
        %v839 = vmax.f32 %v807, 0.0
        %v840 = vmax.f32 %v808, 0.0
        %v841 = vmax.f32 %v809, 0.0
        %v842 = vmax.f32 %v810, 0.0
        %v843 = vmax.f32 %v811, 0.0
        %v844 = vmax.f32 %v812, 0.0
        %v845 = vmax.f32 %v813, 0.0
        %v846 = vmax.f32 %v814, 0.0
        %v847 = vmax.f32 %v815, 0.0
        %v848 = vmax.f32 %v816, 0.0
        %v849 = vmax.f32 %v817, 0.0
        %v850 = vmax.f32 %v818, 0.0
        %v851 = vmax.f32 %v819, 0.0
        %v852 = vmax.f32 %v820, 0.0
        %v853 = vmax.f32 %v821, 0.0
        %vm854 = vcmask 523264
        %855 = vst.msk [vmem:[#allocation2] sm:$0xff] %vm854, 0.0
        %856 = vst.msk [vmem:[#allocation2 + $0x8] sm:$0xff] %vm854, 0.0
        %vm857 = vcmask 517120
        %858 = vst.msk [vmem:[#allocation2 + $0x10] sm:$0x3] %vm857, 0.0
        %859 = vst.msk [vmem:[#allocation2 + $0x18] sm:$0xff] %vm854, 0.0
        %860 = vst.msk [vmem:[#allocation2 + $0x20] sm:$0xff] %vm854, 0.0
        %861 = vst.msk [vmem:[#allocation2 + $0x28] sm:$0x3] %vm857, 0.0
        %862 = vst.msk [vmem:[#allocation2 + $0x30] sm:$0xff] %vm854, 0.0
        %863 = vst.msk [vmem:[#allocation2 + $0x38] sm:$0xff] %vm854, 0.0
        %864 = vst.msk [vmem:[#allocation2 + $0x40] sm:$0x3] %vm857, 0.0
        %865 = vst.msk [vmem:[#allocation2 + $0x48] sm:$0xff] %vm854, 0.0
        %866 = vst.msk [vmem:[#allocation2 + $0x50] sm:$0xff] %vm854, 0.0
        %867 = vst.msk [vmem:[#allocation2 + $0x58] sm:$0x3] %vm857, 0.0
        %868 = vst.msk [vmem:[#allocation2 + $0x60] sm:$0xff] %vm854, 0.0
        %869 = vst.msk [vmem:[#allocation2 + $0x68] sm:$0xff] %vm854, 0.0
        %870 = vst.msk [vmem:[#allocation2 + $0x70] sm:$0x3] %vm857, 0.0
        %871 = vst.msk [vmem:[#allocation2 + $0x78] sm:$0xff] %vm854, 0.0
        %872 = vst.msk [vmem:[#allocation2 + $0x80] sm:$0xff] %vm854, 0.0
        %873 = vst.msk [vmem:[#allocation2 + $0x88] sm:$0x3] %vm857, 0.0
        %874 = vst.msk [vmem:[#allocation2 + $0x90] sm:$0xff] %vm854, 0.0
        %875 = vst.msk [vmem:[#allocation2 + $0x98] sm:$0xff] %vm854, 0.0
        %876 = vst.msk [vmem:[#allocation2 + $0xa0] sm:$0x3] %vm857, 0.0
        %877 = vst.msk [vmem:[#allocation2 + $0xa8] sm:$0xff] %vm854, 0.0
        %878 = vst.msk [vmem:[#allocation2 + $0xb0] sm:$0xff] %vm854, 0.0
        %879 = vst.msk [vmem:[#allocation2 + $0xb8] sm:$0x3] %vm857, 0.0
        %880 = vst.msk [vmem:[#allocation2 + $0xc0] sm:$0xff] %vm854, 0.0
        %881 = vst.msk [vmem:[#allocation2 + $0xc8] sm:$0xff] %vm854, 0.0
        %882 = vst.msk [vmem:[#allocation2 + $0xd0] sm:$0x3] %vm857, 0.0
        %883 = vst.msk [vmem:[#allocation2 + $0xd8] sm:$0xff] %vm854, 0.0
        %884 = vst.msk [vmem:[#allocation2 + $0xe0] sm:$0xff] %vm854, 0.0
        %885 = vst.msk [vmem:[#allocation2 + $0xe8] sm:$0x3] %vm857, 0.0
        %886 = vst.msk [vmem:[#allocation2 + $0xf0] sm:$0xff] %vm854, 0.0
        %887 = vst.msk [vmem:[#allocation2 + $0xf8] sm:$0xff] %vm854, 0.0
        %888 = vst.msk [vmem:[#allocation2 + $0x100] sm:$0x3] %vm857, 0.0
        %889 = vst.msk [vmem:[#allocation2 + $0x108] sm:$0xff] %vm854, 0.0
        %890 = vst.msk [vmem:[#allocation2 + $0x110] sm:$0xff] %vm854, 0.0
        %891 = vst.msk [vmem:[#allocation2 + $0x118] sm:$0x3] %vm857, 0.0
        %892 = vst.msk [vmem:[#allocation2 + $0x120] sm:$0xff] %vm854, 0.0
        %893 = vst.msk [vmem:[#allocation2 + $0x128] sm:$0xff] %vm854, 0.0
        %894 = vst.msk [vmem:[#allocation2 + $0x130] sm:$0x3] %vm857, 0.0
        %895 = vst.msk [vmem:[#allocation2 + $0x138] sm:$0xff] %vm854, 0.0
        %896 = vst.msk [vmem:[#allocation2 + $0x140] sm:$0xff] %vm854, 0.0
        %897 = vst.msk [vmem:[#allocation2 + $0x148] sm:$0x3] %vm857, 0.0
        %898 = vst.msk [vmem:[#allocation2 + $0x150] sm:$0xff] %vm854, 0.0
        %899 = vst.msk [vmem:[#allocation2 + $0x158] sm:$0xff] %vm854, 0.0
        %900 = vst.msk [vmem:[#allocation2 + $0x160] sm:$0x3] %vm857, 0.0
        %901 = vst.msk [vmem:[#allocation2 + $0x168] sm:$0xff] %vm854, 0.0
        %902 = vst.msk [vmem:[#allocation2 + $0x170] sm:$0xff] %vm854, 0.0
        %903 = vst.msk [vmem:[#allocation2 + $0x178] sm:$0x3] %vm857, 0.0
        %904 = vst.msk [vmem:[#allocation2 + $0x180] sm:$0xff] %vm854, 0.0
        %905 = vst.msk [vmem:[#allocation2 + $0x188] sm:$0xff] %vm854, 0.0
        %906 = vst.msk [vmem:[#allocation2 + $0x190] sm:$0x3] %vm857, 0.0
        %907 = vst.msk [vmem:[#allocation2 + $0x198] sm:$0xff] %vm854, 0.0
        %908 = vst.msk [vmem:[#allocation2 + $0x1a0] sm:$0xff] %vm854, 0.0
        %909 = vst.msk [vmem:[#allocation2 + $0x1a8] sm:$0x3] %vm857, 0.0
        %s910 = scalar_lea.vmem [#allocation2], 24
        %911 = vst.msk [vmem:[%s910 + $0x1] sm:$0xff] %vm854, %v822
        %912 = vst.msk [vmem:[%s910 + $0x9] sm:$0xff] %vm854, %v823
        %913 = vst.msk [vmem:[%s910 + $0x19] sm:$0xff] %vm854, %v824
        %914 = vst.msk [vmem:[%s910 + $0x21] sm:$0xff] %vm854, %v825
        %915 = vst.msk [vmem:[%s910 + $0x31] sm:$0xff] %vm854, %v826
        %916 = vst.msk [vmem:[%s910 + $0x39] sm:$0xff] %vm854, %v827
        %917 = vst.msk [vmem:[%s910 + $0x49] sm:$0xff] %vm854, %v828
        %918 = vst.msk [vmem:[%s910 + $0x51] sm:$0xff] %vm854, %v829
        %919 = vst.msk [vmem:[%s910 + $0x61] sm:$0xff] %vm854, %v830
        %920 = vst.msk [vmem:[%s910 + $0x69] sm:$0xff] %vm854, %v831
        %921 = vst.msk [vmem:[%s910 + $0x79] sm:$0xff] %vm854, %v832
        %922 = vst.msk [vmem:[%s910 + $0x81] sm:$0xff] %vm854, %v833
        %923 = vst.msk [vmem:[%s910 + $0x91] sm:$0xff] %vm854, %v834
        %924 = vst.msk [vmem:[%s910 + $0x99] sm:$0xff] %vm854, %v835
        %925 = vst.msk [vmem:[%s910 + $0xa9] sm:$0xff] %vm854, %v836
        %926 = vst.msk [vmem:[%s910 + $0xb1] sm:$0xff] %vm854, %v837
        %927 = vst.msk [vmem:[%s910 + $0xc1] sm:$0xff] %vm854, %v838
        %928 = vst.msk [vmem:[%s910 + $0xc9] sm:$0xff] %vm854, %v839
        %929 = vst.msk [vmem:[%s910 + $0xd9] sm:$0xff] %vm854, %v840
        %930 = vst.msk [vmem:[%s910 + $0xe1] sm:$0xff] %vm854, %v841
        %931 = vst.msk [vmem:[%s910 + $0xf1] sm:$0xff] %vm854, %v842
        %932 = vst.msk [vmem:[%s910 + $0xf9] sm:$0xff] %vm854, %v843
        %933 = vst.msk [vmem:[%s910 + $0x109] sm:$0xff] %vm854, %v844
        %934 = vst.msk [vmem:[%s910 + $0x111] sm:$0xff] %vm854, %v845
        %935 = vst.msk [vmem:[%s910 + $0x121] sm:$0xff] %vm854, %v846
        %936 = vst.msk [vmem:[%s910 + $0x129] sm:$0xff] %vm854, %v847
        %937 = vst.msk [vmem:[%s910 + $0x139] sm:$0xff] %vm854, %v848
        %938 = vst.msk [vmem:[%s910 + $0x141] sm:$0xff] %vm854, %v849
        %939 = vst.msk [vmem:[%s910 + $0x151] sm:$0xff] %vm854, %v850
        %940 = vst.msk [vmem:[%s910 + $0x159] sm:$0xff] %vm854, %v851
        %941 = vst.msk [vmem:[%s910 + $0x169] sm:$0xff] %vm854, %v852
        %942 = vst.msk [vmem:[%s910 + $0x171] sm:$0xff] %vm854, %v853
        %v943 = vld [vmem:[#allocation2] sm:$0xff]
        %v944 = vld [vmem:[#allocation2 + $0x8] sm:$0xff]
        %v945 = vld [vmem:[#allocation2 + $0x18] sm:$0xff]
        %v946 = vld [vmem:[#allocation2 + $0x20] sm:$0xff]
        %v947 = vld [vmem:[#allocation2 + $0x30] sm:$0xff]
        %v948 = vld [vmem:[#allocation2 + $0x38] sm:$0xff]
        %v949 = vld [vmem:[#allocation2 + $0x48] sm:$0xff]
        %v950 = vld [vmem:[#allocation2 + $0x50] sm:$0xff]
        %v951 = vld [vmem:[#allocation2 + $0x60] sm:$0xff]
        %v952 = vld [vmem:[#allocation2 + $0x68] sm:$0xff]
        %v953 = vld [vmem:[#allocation2 + $0x78] sm:$0xff]
        %v954 = vld [vmem:[#allocation2 + $0x80] sm:$0xff]
        %v955 = vld [vmem:[#allocation2 + $0x90] sm:$0xff]
        %v956 = vld [vmem:[#allocation2 + $0x98] sm:$0xff]
        %v957 = vld [vmem:[#allocation2 + $0xa8] sm:$0xff]
        %v958 = vld [vmem:[#allocation2 + $0xb0] sm:$0xff]
        %v959 = vld [vmem:[#allocation2 + $0xc0] sm:$0xff]
        %v960 = vld [vmem:[#allocation2 + $0xc8] sm:$0xff]
        %v961 = vld [vmem:[#allocation2 + $0xd8] sm:$0xff]
        %v962 = vld [vmem:[#allocation2 + $0xe0] sm:$0xff]
        %v963 = vld [vmem:[#allocation2 + $0xf0] sm:$0xff]
        %v964 = vld [vmem:[#allocation2 + $0xf8] sm:$0xff]
        %v965 = vld [vmem:[#allocation2 + $0x108] sm:$0xff]
        %v966 = vld [vmem:[#allocation2 + $0x110] sm:$0xff]
        %v967 = vld [vmem:[#allocation2 + $0x120] sm:$0xff]
        %v968 = vld [vmem:[#allocation2 + $0x128] sm:$0xff]
        %v969 = vld [vmem:[#allocation2 + $0x138] sm:$0xff]
        %v970 = vld [vmem:[#allocation2 + $0x140] sm:$0xff]
        %v971 = vld [vmem:[#allocation2 + $0x150] sm:$0xff]
        %v972 = vld [vmem:[#allocation2 + $0x158] sm:$0xff]
        %v973 = vld [vmem:[#allocation2 + $0x168] sm:$0xff]
        %v974 = vld [vmem:[#allocation2 + $0x170] sm:$0xff]
        %v975 = vpack.c.bf16 %v944, %v943
        %v976 = vpack.c.bf16 %v946, %v945
        %v977 = vpack.c.bf16 %v948, %v947
        %v978 = vpack.c.bf16 %v950, %v949
        %v979 = vpack.c.bf16 %v952, %v951
        %v980 = vpack.c.bf16 %v954, %v953
        %v981 = vpack.c.bf16 %v956, %v955
        %v982 = vpack.c.bf16 %v958, %v957
        %v983 = vpack.c.bf16 %v960, %v959
        %v984 = vpack.c.bf16 %v962, %v961
        %v985 = vpack.c.bf16 %v964, %v963
        %v986 = vpack.c.bf16 %v966, %v965
        %v987 = vpack.c.bf16 %v968, %v967
        %v988 = vpack.c.bf16 %v970, %v969
        %v989 = vpack.c.bf16 %v972, %v971
        %v990 = vpack.c.bf16 %v974, %v973
        %v991 = vld [vmem:[%s2] sm:$0xf]
        %v992 = vld [vmem:[%s2 + $0x4] sm:$0xf]
        %v993 = vld [vmem:[%s2 + $0x8] sm:$0xf]
        %v994 = vld [vmem:[%s2 + $0xc] sm:$0xf]
        %v995 = vld [vmem:[%s2 + $0x10] sm:$0xf]
        %v996 = vld [vmem:[%s2 + $0x14] sm:$0xf]
        %v997 = vld [vmem:[%s2 + $0x18] sm:$0xf]
        %v998 = vld [vmem:[%s2 + $0x1c] sm:$0xf]
        %v999 = vld [vmem:[#allocation2 + $0x1] sm:$0xff]
        %v1000 = vld [vmem:[#allocation2 + $0x9] sm:$0xff]
        %v1001 = vld [vmem:[#allocation2 + $0x19] sm:$0xff]
        %v1002 = vld [vmem:[#allocation2 + $0x21] sm:$0xff]
        %v1003 = vld [vmem:[#allocation2 + $0x31] sm:$0xff]
        %v1004 = vld [vmem:[#allocation2 + $0x39] sm:$0xff]
        %v1005 = vld [vmem:[#allocation2 + $0x49] sm:$0xff]
        %v1006 = vld [vmem:[#allocation2 + $0x51] sm:$0xff]
        %v1007 = vld [vmem:[#allocation2 + $0x61] sm:$0xff]
        %v1008 = vld [vmem:[#allocation2 + $0x69] sm:$0xff]
        %v1009 = vld [vmem:[#allocation2 + $0x79] sm:$0xff]
        %v1010 = vld [vmem:[#allocation2 + $0x81] sm:$0xff]
        %v1011 = vld [vmem:[#allocation2 + $0x91] sm:$0xff]
        %v1012 = vld [vmem:[#allocation2 + $0x99] sm:$0xff]
        %v1013 = vld [vmem:[#allocation2 + $0xa9] sm:$0xff]
        %v1014 = vld [vmem:[#allocation2 + $0xb1] sm:$0xff]
        %v1015 = vld [vmem:[#allocation2 + $0xc1] sm:$0xff]
        %v1016 = vld [vmem:[#allocation2 + $0xc9] sm:$0xff]
        %v1017 = vld [vmem:[#allocation2 + $0xd9] sm:$0xff]
        %v1018 = vld [vmem:[#allocation2 + $0xe1] sm:$0xff]
        %v1019 = vld [vmem:[#allocation2 + $0xf1] sm:$0xff]
        %v1020 = vld [vmem:[#allocation2 + $0xf9] sm:$0xff]
        %v1021 = vld [vmem:[#allocation2 + $0x109] sm:$0xff]
        %v1022 = vld [vmem:[#allocation2 + $0x111] sm:$0xff]
        %v1023 = vld [vmem:[#allocation2 + $0x121] sm:$0xff]
        %v1024 = vld [vmem:[#allocation2 + $0x129] sm:$0xff]
        %v1025 = vld [vmem:[#allocation2 + $0x139] sm:$0xff]
        %v1026 = vld [vmem:[#allocation2 + $0x141] sm:$0xff]
        %v1027 = vld [vmem:[#allocation2 + $0x151] sm:$0xff]
        %v1028 = vld [vmem:[#allocation2 + $0x159] sm:$0xff]
        %v1029 = vld [vmem:[#allocation2 + $0x169] sm:$0xff]
        %v1030 = vld [vmem:[#allocation2 + $0x171] sm:$0xff]
        %v1031 = vpack.c.bf16 %v1000, %v999
        %v1032 = vpack.c.bf16 %v1002, %v1001
        %v1033 = vpack.c.bf16 %v1004, %v1003
        %v1034 = vpack.c.bf16 %v1006, %v1005
        %v1035 = vpack.c.bf16 %v1008, %v1007
        %v1036 = vpack.c.bf16 %v1010, %v1009
        %v1037 = vpack.c.bf16 %v1012, %v1011
        %v1038 = vpack.c.bf16 %v1014, %v1013
        %v1039 = vpack.c.bf16 %v1016, %v1015
        %v1040 = vpack.c.bf16 %v1018, %v1017
        %v1041 = vpack.c.bf16 %v1020, %v1019
        %v1042 = vpack.c.bf16 %v1022, %v1021
        %v1043 = vpack.c.bf16 %v1024, %v1023
        %v1044 = vpack.c.bf16 %v1026, %v1025
        %v1045 = vpack.c.bf16 %v1028, %v1027
        %v1046 = vpack.c.bf16 %v1030, %v1029
        %s1047 = scalar_lea.vmem %s2, 32
        %v1048 = vld [vmem:[%s1047] sm:$0xf]
        %v1049 = vld [vmem:[%s1047 + $0x4] sm:$0xf]
        %v1050 = vld [vmem:[%s1047 + $0x8] sm:$0xf]
        %v1051 = vld [vmem:[%s1047 + $0xc] sm:$0xf]
        %v1052 = vld [vmem:[%s1047 + $0x10] sm:$0xf]
        %v1053 = vld [vmem:[%s1047 + $0x14] sm:$0xf]
        %v1054 = vld [vmem:[%s1047 + $0x18] sm:$0xf]
        %v1055 = vld [vmem:[%s1047 + $0x1c] sm:$0xf]
        %v1064 = vunpack.c.l.b16 %v1048
        %v1065 = vunpack.c.l.b16 %v1049
        %v1066 = vunpack.c.l.b16 %v1050
        %v1067 = vunpack.c.l.b16 %v1051
        %v1068 = vunpack.c.l.b16 %v1052
        %v1069 = vunpack.c.l.b16 %v1053
        %v1070 = vunpack.c.l.b16 %v1054
        %v1071 = vunpack.c.l.b16 %v1055
        %v1072 = vpack.c.b16 %v1065, %v1064
        %v1073 = vpack.c.b16 %v1067, %v1066
        %v1074 = vpack.c.b16 %v1069, %v1068
        %v1075 = vpack.c.b16 %v1071, %v1070
        %v1081 = vsel %vm854, %v1031, 0
        %v1084 = vsel %vm854, %v1032, 0
        %v1087 = vsel %vm854, %v1033, 0
        %v1090 = vsel %vm854, %v1034, 0
        %v1093 = vsel %vm854, %v1035, 0
        %v1096 = vsel %vm854, %v1036, 0
        %v1099 = vsel %vm854, %v1037, 0
        %v1102 = vsel %vm854, %v1038, 0
        %v1105 = vsel %vm854, %v1039, 0
        %v1108 = vsel %vm854, %v1040, 0
        %v1111 = vsel %vm854, %v1041, 0
        %v1114 = vsel %vm854, %v1042, 0
        %v1117 = vsel %vm854, %v1043, 0
        %v1120 = vsel %vm854, %v1044, 0
        %v1123 = vsel %vm854, %v1045, 0
        %v1126 = vsel %vm854, %v1046, 0
        %1128 = vmatprep.subr.bf16.mxu0 0
        %1129 = vmatpush1.bf16.msra.mxu0 %v1072
        %1130 = vmatprep.subr.bf16.mxu0 0
        %1131 = vmatpush1.bf16.msra.mxu0 %v1073
        %1132 = vmatprep.subr.bf16.mxu0 0
        %1133 = vmatpush1.bf16.msra.mxu0 %v1074
        %1134 = vmatprep.subr.bf16.mxu0 0
        %1135 = vmatpush1.bf16.msra.mxu0 %v1075
        %1136 = vmatprep.subr.bf16.mxu0 0
        %1137 = vmatpush1.bf16.msra.mxu0 0
        %1138 = vmatprep.subr.bf16.mxu0 0
        %1139 = vmatpush1.bf16.msra.mxu0 0
        %1140 = vmatprep.subr.bf16.mxu0 0
        %1141 = vmatpush1.bf16.msra.mxu0 0
        %1142 = vmatprep.subr.bf16.mxu0 0
        %1143 = vmatpush1.bf16.msra.mxu0 0
        %1144 = vmatprep.subr.bf16.mxu0 0
        %1145 = vmatpush1.bf16.msra.mxu0 0
        %1146 = vmatprep.subr.bf16.mxu0 0
        %1147 = vmatpush1.bf16.msra.mxu0 0
        %1148 = vmatprep.subr.bf16.mxu0 0
        %1149 = vmatpush1.bf16.msra.mxu0 0
        %1150 = vmatprep.subr.bf16.mxu0 0
        %1151 = vmatpush1.bf16.msra.mxu0 0
        %1152 = vmatprep.subr.bf16.mxu0 0
        %1153 = vmatpush1.bf16.msra.mxu0 0
        %1154 = vmatprep.subr.bf16.mxu0 0
        %1155 = vmatpush1.bf16.msra.mxu0 0
        %1156 = vmatprep.subr.bf16.mxu0 0
        %1157 = vmatpush1.bf16.msra.mxu0 0
        %1158 = vmatprep.subr.bf16.mxu0 0
        %1159 = vmatpush1.bf16.msra.mxu0 0
        %1160 = vmatprep.mubr.bf16.mxu0 0
        %1161 = vmatmul.mubr.bf16.gmra.mrb[0].mxu0 %v1081
        %v1162 = vpop.f32.mrb[0].mxu0
        %v1163 = vadd.f32 0.0, %v1162
        %v1164 = vpop.f32.mrb[0].mxu0
        %v1165 = vpop.f32.mrb[0].mxu0
        %v1166 = vadd.f32 0.0, %v1165
        %v1167 = vpop.f32.mrb[0].mxu0
        %1168 = vmatprep.mubr.bf16.mxu0 0
        %1169 = vmatmul.mubr.bf16.gmra.mrb[0].mxu0 %v1084
        %v1170 = vpop.f32.mrb[0].mxu0
        %v1171 = vadd.f32 0.0, %v1170
        %v1172 = vpop.f32.mrb[0].mxu0
        %v1173 = vpop.f32.mrb[0].mxu0
        %v1174 = vadd.f32 0.0, %v1173
        %v1175 = vpop.f32.mrb[0].mxu0
        %1176 = vmatprep.mubr.bf16.mxu0 0
        %1177 = vmatmul.mubr.bf16.gmra.mrb[0].mxu0 %v1087
        %v1178 = vpop.f32.mrb[0].mxu0
        %v1179 = vadd.f32 0.0, %v1178
        %v1180 = vpop.f32.mrb[0].mxu0
        %v1181 = vpop.f32.mrb[0].mxu0
        %v1182 = vadd.f32 0.0, %v1181
        %v1183 = vpop.f32.mrb[0].mxu0
        %1184 = vmatprep.mubr.bf16.mxu0 0
        %1185 = vmatmul.mubr.bf16.gmra.mrb[0].mxu0 %v1090
        %v1186 = vpop.f32.mrb[0].mxu0
        %v1187 = vadd.f32 0.0, %v1186
        %v1188 = vpop.f32.mrb[0].mxu0
        %v1189 = vpop.f32.mrb[0].mxu0
        %v1190 = vadd.f32 0.0, %v1189
        %v1191 = vpop.f32.mrb[0].mxu0
        %1192 = vmatprep.mubr.bf16.mxu0 0
        %1193 = vmatmul.mubr.bf16.gmra.mrb[0].mxu0 %v1093
        %v1194 = vpop.f32.mrb[0].mxu0
        %v1195 = vadd.f32 0.0, %v1194
        %v1196 = vpop.f32.mrb[0].mxu0
        %v1197 = vpop.f32.mrb[0].mxu0
        %v1198 = vadd.f32 0.0, %v1197
        %v1199 = vpop.f32.mrb[0].mxu0
        %1200 = vmatprep.mubr.bf16.mxu0 0
        %1201 = vmatmul.mubr.bf16.gmra.mrb[0].mxu0 %v1096
        %v1202 = vpop.f32.mrb[0].mxu0
        %v1203 = vadd.f32 0.0, %v1202
        %v1204 = vpop.f32.mrb[0].mxu0
        %v1205 = vpop.f32.mrb[0].mxu0
        %v1206 = vadd.f32 0.0, %v1205
        %v1207 = vpop.f32.mrb[0].mxu0
        %1208 = vmatprep.mubr.bf16.mxu0 0
        %1209 = vmatmul.mubr.bf16.gmra.mrb[0].mxu0 %v1099
        %v1210 = vpop.f32.mrb[0].mxu0
        %v1211 = vadd.f32 0.0, %v1210
        %v1212 = vpop.f32.mrb[0].mxu0
        %v1213 = vpop.f32.mrb[0].mxu0
        %v1214 = vadd.f32 0.0, %v1213
        %v1215 = vpop.f32.mrb[0].mxu0
        %1216 = vmatprep.mubr.bf16.mxu0 0
        %1217 = vmatmul.mubr.bf16.gmra.mrb[0].mxu0 %v1102
        %v1218 = vpop.f32.mrb[0].mxu0
        %v1219 = vadd.f32 0.0, %v1218
        %v1220 = vpop.f32.mrb[0].mxu0
        %v1221 = vpop.f32.mrb[0].mxu0
        %v1222 = vadd.f32 0.0, %v1221
        %v1223 = vpop.f32.mrb[0].mxu0
        %1224 = vmatprep.mubr.bf16.mxu0 0
        %1225 = vmatmul.mubr.bf16.gmra.mrb[0].mxu0 %v1105
        %v1226 = vpop.f32.mrb[0].mxu0
        %v1227 = vadd.f32 0.0, %v1226
        %v1228 = vpop.f32.mrb[0].mxu0
        %v1229 = vpop.f32.mrb[0].mxu0
        %v1230 = vadd.f32 0.0, %v1229
        %v1231 = vpop.f32.mrb[0].mxu0
        %1232 = vmatprep.mubr.bf16.mxu0 0
        %1233 = vmatmul.mubr.bf16.gmra.mrb[0].mxu0 %v1108
        %v1234 = vpop.f32.mrb[0].mxu0
        %v1235 = vadd.f32 0.0, %v1234
        %v1236 = vpop.f32.mrb[0].mxu0
        %v1237 = vpop.f32.mrb[0].mxu0
        %v1238 = vadd.f32 0.0, %v1237
        %v1239 = vpop.f32.mrb[0].mxu0
        %1240 = vmatprep.mubr.bf16.mxu0 0
        %1241 = vmatmul.mubr.bf16.gmra.mrb[0].mxu0 %v1111
        %v1242 = vpop.f32.mrb[0].mxu0
        %v1243 = vadd.f32 0.0, %v1242
        %v1244 = vpop.f32.mrb[0].mxu0
        %v1245 = vpop.f32.mrb[0].mxu0
        %v1246 = vadd.f32 0.0, %v1245
        %v1247 = vpop.f32.mrb[0].mxu0
        %1248 = vmatprep.mubr.bf16.mxu0 0
        %1249 = vmatmul.mubr.bf16.gmra.mrb[0].mxu0 %v1114
        %v1250 = vpop.f32.mrb[0].mxu0
        %v1251 = vadd.f32 0.0, %v1250
        %v1252 = vpop.f32.mrb[0].mxu0
        %v1253 = vpop.f32.mrb[0].mxu0
        %v1254 = vadd.f32 0.0, %v1253
        %v1255 = vpop.f32.mrb[0].mxu0
        %1256 = vmatprep.mubr.bf16.mxu0 0
        %1257 = vmatmul.mubr.bf16.gmra.mrb[0].mxu0 %v1117
        %v1258 = vpop.f32.mrb[0].mxu0
        %v1259 = vadd.f32 0.0, %v1258
        %v1260 = vpop.f32.mrb[0].mxu0
        %v1261 = vpop.f32.mrb[0].mxu0
        %v1262 = vadd.f32 0.0, %v1261
        %v1263 = vpop.f32.mrb[0].mxu0
        %1264 = vmatprep.mubr.bf16.mxu0 0
        %1265 = vmatmul.mubr.bf16.gmra.mrb[0].mxu0 %v1120
        %v1266 = vpop.f32.mrb[0].mxu0
        %v1267 = vadd.f32 0.0, %v1266
        %v1268 = vpop.f32.mrb[0].mxu0
        %v1269 = vpop.f32.mrb[0].mxu0
        %v1270 = vadd.f32 0.0, %v1269
        %v1271 = vpop.f32.mrb[0].mxu0
        %1272 = vmatprep.mubr.bf16.mxu0 0
        %1273 = vmatmul.mubr.bf16.gmra.mrb[0].mxu0 %v1123
        %v1274 = vpop.f32.mrb[0].mxu0
        %v1275 = vadd.f32 0.0, %v1274
        %v1276 = vpop.f32.mrb[0].mxu0
        %v1277 = vpop.f32.mrb[0].mxu0
        %v1278 = vadd.f32 0.0, %v1277
        %v1279 = vpop.f32.mrb[0].mxu0
        %1280 = vmatprep.mubr.bf16.mxu0 0
        %1281 = vmatmul.mubr.bf16.gmra.mrb[0].mxu0 %v1126
        %v1282 = vpop.f32.mrb[0].mxu0
        %v1283 = vadd.f32 0.0, %v1282
        %v1284 = vpop.f32.mrb[0].mxu0
        %v1285 = vpop.f32.mrb[0].mxu0
        %v1286 = vadd.f32 0.0, %v1285
        %v1287 = vpop.f32.mrb[0].mxu0
        %1288 = vdwg.mxu0
        %v1297 = vunpack.c.l.b16 %v991
        %v1298 = vunpack.c.l.b16 %v992
        %v1299 = vunpack.c.l.b16 %v993
        %v1300 = vunpack.c.l.b16 %v994
        %v1301 = vunpack.c.l.b16 %v995
        %v1302 = vunpack.c.l.b16 %v996
        %v1303 = vunpack.c.l.b16 %v997
        %v1304 = vunpack.c.l.b16 %v998
        %v1305 = vpack.c.b16 %v1298, %v1297
        %v1306 = vpack.c.b16 %v1300, %v1299
        %v1307 = vpack.c.b16 %v1302, %v1301
        %v1308 = vpack.c.b16 %v1304, %v1303
        %v1314 = vsel %vm854, %v975, 0
        %v1317 = vsel %vm854, %v976, 0
        %v1320 = vsel %vm854, %v977, 0
        %v1323 = vsel %vm854, %v978, 0
        %v1326 = vsel %vm854, %v979, 0
        %v1329 = vsel %vm854, %v980, 0
        %v1332 = vsel %vm854, %v981, 0
        %v1335 = vsel %vm854, %v982, 0
        %v1338 = vsel %vm854, %v983, 0
        %v1341 = vsel %vm854, %v984, 0
        %v1344 = vsel %vm854, %v985, 0
        %v1347 = vsel %vm854, %v986, 0
        %v1350 = vsel %vm854, %v987, 0
        %v1353 = vsel %vm854, %v988, 0
        %v1356 = vsel %vm854, %v989, 0
        %v1359 = vsel %vm854, %v990, 0
        %1361 = vmatprep.subr.bf16.mxu0 0
        %1362 = vmatpush1.bf16.msra.mxu0 %v1305
        %1363 = vmatprep.subr.bf16.mxu0 0
        %1364 = vmatpush1.bf16.msra.mxu0 %v1306
        %1365 = vmatprep.subr.bf16.mxu0 0
        %1366 = vmatpush1.bf16.msra.mxu0 %v1307
        %1367 = vmatprep.subr.bf16.mxu0 0
        %1368 = vmatpush1.bf16.msra.mxu0 %v1308
        %1369 = vmatprep.subr.bf16.mxu0 0
        %1370 = vmatpush1.bf16.msra.mxu0 0
        %1371 = vmatprep.subr.bf16.mxu0 0
        %1372 = vmatpush1.bf16.msra.mxu0 0
        %1373 = vmatprep.subr.bf16.mxu0 0
        %1374 = vmatpush1.bf16.msra.mxu0 0
        %1375 = vmatprep.subr.bf16.mxu0 0
        %1376 = vmatpush1.bf16.msra.mxu0 0
        %1377 = vmatprep.subr.bf16.mxu0 0
        %1378 = vmatpush1.bf16.msra.mxu0 0
        %1379 = vmatprep.subr.bf16.mxu0 0
        %1380 = vmatpush1.bf16.msra.mxu0 0
        %1381 = vmatprep.subr.bf16.mxu0 0
        %1382 = vmatpush1.bf16.msra.mxu0 0
        %1383 = vmatprep.subr.bf16.mxu0 0
        %1384 = vmatpush1.bf16.msra.mxu0 0
        %1385 = vmatprep.subr.bf16.mxu0 0
        %1386 = vmatpush1.bf16.msra.mxu0 0
        %1387 = vmatprep.subr.bf16.mxu0 0
        %1388 = vmatpush1.bf16.msra.mxu0 0
        %1389 = vmatprep.subr.bf16.mxu0 0
        %1390 = vmatpush1.bf16.msra.mxu0 0
        %1391 = vmatprep.subr.bf16.mxu0 0
        %1392 = vmatpush1.bf16.msra.mxu0 0
        %1393 = vmatprep.mubr.bf16.mxu0 0
        %1394 = vmatmul.mubr.bf16.gmra.mrb[0].mxu0 %v1314
        %v1395 = vpop.f32.mrb[0].mxu0
        %v1396 = vadd.f32 %v1163, %v1395
        %v1397 = vpop.f32.mrb[0].mxu0
        %v1398 = vpop.f32.mrb[0].mxu0
        %v1399 = vadd.f32 %v1166, %v1398
        %v1400 = vpop.f32.mrb[0].mxu0
        %1401 = vmatprep.mubr.bf16.mxu0 0
        %1402 = vmatmul.mubr.bf16.gmra.mrb[0].mxu0 %v1317
        %v1403 = vpop.f32.mrb[0].mxu0
        %v1404 = vadd.f32 %v1171, %v1403
        %v1405 = vpop.f32.mrb[0].mxu0
        %v1406 = vpop.f32.mrb[0].mxu0
        %v1407 = vadd.f32 %v1174, %v1406
        %v1408 = vpop.f32.mrb[0].mxu0
        %1409 = vmatprep.mubr.bf16.mxu0 0
        %1410 = vmatmul.mubr.bf16.gmra.mrb[0].mxu0 %v1320
        %v1411 = vpop.f32.mrb[0].mxu0
        %v1412 = vadd.f32 %v1179, %v1411
        %v1413 = vpop.f32.mrb[0].mxu0
        %v1414 = vpop.f32.mrb[0].mxu0
        %v1415 = vadd.f32 %v1182, %v1414
        %v1416 = vpop.f32.mrb[0].mxu0
        %1417 = vmatprep.mubr.bf16.mxu0 0
        %1418 = vmatmul.mubr.bf16.gmra.mrb[0].mxu0 %v1323
        %v1419 = vpop.f32.mrb[0].mxu0
        %v1420 = vadd.f32 %v1187, %v1419
        %v1421 = vpop.f32.mrb[0].mxu0
        %v1422 = vpop.f32.mrb[0].mxu0
        %v1423 = vadd.f32 %v1190, %v1422
        %v1424 = vpop.f32.mrb[0].mxu0
        %1425 = vmatprep.mubr.bf16.mxu0 0
        %1426 = vmatmul.mubr.bf16.gmra.mrb[0].mxu0 %v1326
        %v1427 = vpop.f32.mrb[0].mxu0
        %v1428 = vadd.f32 %v1195, %v1427
        %v1429 = vpop.f32.mrb[0].mxu0
        %v1430 = vpop.f32.mrb[0].mxu0
        %v1431 = vadd.f32 %v1198, %v1430
        %v1432 = vpop.f32.mrb[0].mxu0
        %1433 = vmatprep.mubr.bf16.mxu0 0
        %1434 = vmatmul.mubr.bf16.gmra.mrb[0].mxu0 %v1329
        %v1435 = vpop.f32.mrb[0].mxu0
        %v1436 = vadd.f32 %v1203, %v1435
        %v1437 = vpop.f32.mrb[0].mxu0
        %v1438 = vpop.f32.mrb[0].mxu0
        %v1439 = vadd.f32 %v1206, %v1438
        %v1440 = vpop.f32.mrb[0].mxu0
        %1441 = vmatprep.mubr.bf16.mxu0 0
        %1442 = vmatmul.mubr.bf16.gmra.mrb[0].mxu0 %v1332
        %v1443 = vpop.f32.mrb[0].mxu0
        %v1444 = vadd.f32 %v1211, %v1443
        %v1445 = vpop.f32.mrb[0].mxu0
        %v1446 = vpop.f32.mrb[0].mxu0
        %v1447 = vadd.f32 %v1214, %v1446
        %v1448 = vpop.f32.mrb[0].mxu0
        %1449 = vmatprep.mubr.bf16.mxu0 0
        %1450 = vmatmul.mubr.bf16.gmra.mrb[0].mxu0 %v1335
        %v1451 = vpop.f32.mrb[0].mxu0
        %v1452 = vadd.f32 %v1219, %v1451
        %v1453 = vpop.f32.mrb[0].mxu0
        %v1454 = vpop.f32.mrb[0].mxu0
        %v1455 = vadd.f32 %v1222, %v1454
        %v1456 = vpop.f32.mrb[0].mxu0
        %1457 = vmatprep.mubr.bf16.mxu0 0
        %1458 = vmatmul.mubr.bf16.gmra.mrb[0].mxu0 %v1338
        %v1459 = vpop.f32.mrb[0].mxu0
        %v1460 = vadd.f32 %v1227, %v1459
        %v1461 = vpop.f32.mrb[0].mxu0
        %v1462 = vpop.f32.mrb[0].mxu0
        %v1463 = vadd.f32 %v1230, %v1462
        %v1464 = vpop.f32.mrb[0].mxu0
        %1465 = vmatprep.mubr.bf16.mxu0 0
        %1466 = vmatmul.mubr.bf16.gmra.mrb[0].mxu0 %v1341
        %v1467 = vpop.f32.mrb[0].mxu0
        %v1468 = vadd.f32 %v1235, %v1467
        %v1469 = vpop.f32.mrb[0].mxu0
        %v1470 = vpop.f32.mrb[0].mxu0
        %v1471 = vadd.f32 %v1238, %v1470
        %v1472 = vpop.f32.mrb[0].mxu0
        %1473 = vmatprep.mubr.bf16.mxu0 0
        %1474 = vmatmul.mubr.bf16.gmra.mrb[0].mxu0 %v1344
        %v1475 = vpop.f32.mrb[0].mxu0
        %v1476 = vadd.f32 %v1243, %v1475
        %v1477 = vpop.f32.mrb[0].mxu0
        %v1478 = vpop.f32.mrb[0].mxu0
        %v1479 = vadd.f32 %v1246, %v1478
        %v1480 = vpop.f32.mrb[0].mxu0
        %1481 = vmatprep.mubr.bf16.mxu0 0
        %1482 = vmatmul.mubr.bf16.gmra.mrb[0].mxu0 %v1347
        %v1483 = vpop.f32.mrb[0].mxu0
        %v1484 = vadd.f32 %v1251, %v1483
        %v1485 = vpop.f32.mrb[0].mxu0
        %v1486 = vpop.f32.mrb[0].mxu0
        %v1487 = vadd.f32 %v1254, %v1486
        %v1488 = vpop.f32.mrb[0].mxu0
        %1489 = vmatprep.mubr.bf16.mxu0 0
        %1490 = vmatmul.mubr.bf16.gmra.mrb[0].mxu0 %v1350
        %v1491 = vpop.f32.mrb[0].mxu0
        %v1492 = vadd.f32 %v1259, %v1491
        %v1493 = vpop.f32.mrb[0].mxu0
        %v1494 = vpop.f32.mrb[0].mxu0
        %v1495 = vadd.f32 %v1262, %v1494
        %v1496 = vpop.f32.mrb[0].mxu0
        %1497 = vmatprep.mubr.bf16.mxu0 0
        %1498 = vmatmul.mubr.bf16.gmra.mrb[0].mxu0 %v1353
        %v1499 = vpop.f32.mrb[0].mxu0
        %v1500 = vadd.f32 %v1267, %v1499
        %v1501 = vpop.f32.mrb[0].mxu0
        %v1502 = vpop.f32.mrb[0].mxu0
        %v1503 = vadd.f32 %v1270, %v1502
        %v1504 = vpop.f32.mrb[0].mxu0
        %1505 = vmatprep.mubr.bf16.mxu0 0
        %1506 = vmatmul.mubr.bf16.gmra.mrb[0].mxu0 %v1356
        %v1507 = vpop.f32.mrb[0].mxu0
        %v1508 = vadd.f32 %v1275, %v1507
        %v1509 = vpop.f32.mrb[0].mxu0
        %v1510 = vpop.f32.mrb[0].mxu0
        %v1511 = vadd.f32 %v1278, %v1510
        %v1512 = vpop.f32.mrb[0].mxu0
        %1513 = vmatprep.mubr.bf16.mxu0 0
        %1514 = vmatmul.mubr.bf16.gmra.mrb[0].mxu0 %v1359
        %v1515 = vpop.f32.mrb[0].mxu0
        %v1516 = vadd.f32 %v1283, %v1515
        %v1517 = vpop.f32.mrb[0].mxu0
        %v1518 = vpop.f32.mrb[0].mxu0
        %v1519 = vadd.f32 %v1286, %v1518
        %v1520 = vpop.f32.mrb[0].mxu0
        %1521 = vdwg.mxu0
        %v1522 = vld [vmem:[#allocation2 + $0x2] sm:$0xff]
        %v1523 = vld [vmem:[#allocation2 + $0xa] sm:$0xff]
        %v1524 = vld [vmem:[#allocation2 + $0x1a] sm:$0xff]
        %v1525 = vld [vmem:[#allocation2 + $0x22] sm:$0xff]
        %v1526 = vld [vmem:[#allocation2 + $0x32] sm:$0xff]
        %v1527 = vld [vmem:[#allocation2 + $0x3a] sm:$0xff]
        %v1528 = vld [vmem:[#allocation2 + $0x4a] sm:$0xff]
        %v1529 = vld [vmem:[#allocation2 + $0x52] sm:$0xff]
        %v1530 = vld [vmem:[#allocation2 + $0x62] sm:$0xff]
        %v1531 = vld [vmem:[#allocation2 + $0x6a] sm:$0xff]
        %v1532 = vld [vmem:[#allocation2 + $0x7a] sm:$0xff]
        %v1533 = vld [vmem:[#allocation2 + $0x82] sm:$0xff]
        %v1534 = vld [vmem:[#allocation2 + $0x92] sm:$0xff]
        %v1535 = vld [vmem:[#allocation2 + $0x9a] sm:$0xff]
        %v1536 = vld [vmem:[#allocation2 + $0xaa] sm:$0xff]
        %v1537 = vld [vmem:[#allocation2 + $0xb2] sm:$0xff]
        %v1538 = vld [vmem:[#allocation2 + $0xc2] sm:$0xff]
        %v1539 = vld [vmem:[#allocation2 + $0xca] sm:$0xff]
        %v1540 = vld [vmem:[#allocation2 + $0xda] sm:$0xff]
        %v1541 = vld [vmem:[#allocation2 + $0xe2] sm:$0xff]
        %v1542 = vld [vmem:[#allocation2 + $0xf2] sm:$0xff]
        %v1543 = vld [vmem:[#allocation2 + $0xfa] sm:$0xff]
        %v1544 = vld [vmem:[#allocation2 + $0x10a] sm:$0xff]
        %v1545 = vld [vmem:[#allocation2 + $0x112] sm:$0xff]
        %v1546 = vld [vmem:[#allocation2 + $0x122] sm:$0xff]
        %v1547 = vld [vmem:[#allocation2 + $0x12a] sm:$0xff]
        %v1548 = vld [vmem:[#allocation2 + $0x13a] sm:$0xff]
        %v1549 = vld [vmem:[#allocation2 + $0x142] sm:$0xff]
        %v1550 = vld [vmem:[#allocation2 + $0x152] sm:$0xff]
        %v1551 = vld [vmem:[#allocation2 + $0x15a] sm:$0xff]
        %v1552 = vld [vmem:[#allocation2 + $0x16a] sm:$0xff]
        %v1553 = vld [vmem:[#allocation2 + $0x172] sm:$0xff]
        %v1554 = vpack.c.bf16 %v1523, %v1522
        %v1555 = vpack.c.bf16 %v1525, %v1524
        %v1556 = vpack.c.bf16 %v1527, %v1526
        %v1557 = vpack.c.bf16 %v1529, %v1528
        %v1558 = vpack.c.bf16 %v1531, %v1530
        %v1559 = vpack.c.bf16 %v1533, %v1532
        %v1560 = vpack.c.bf16 %v1535, %v1534
        %v1561 = vpack.c.bf16 %v1537, %v1536
        %v1562 = vpack.c.bf16 %v1539, %v1538
        %v1563 = vpack.c.bf16 %v1541, %v1540
        %v1564 = vpack.c.bf16 %v1543, %v1542
        %v1565 = vpack.c.bf16 %v1545, %v1544
        %v1566 = vpack.c.bf16 %v1547, %v1546
        %v1567 = vpack.c.bf16 %v1549, %v1548
        %v1568 = vpack.c.bf16 %v1551, %v1550
        %v1569 = vpack.c.bf16 %v1553, %v1552
        %s1570 = scalar_lea.vmem %s2, 64
        %v1571 = vld [vmem:[%s1570] sm:$0xf]
        %v1572 = vld [vmem:[%s1570 + $0x4] sm:$0xf]
        %v1573 = vld [vmem:[%s1570 + $0x8] sm:$0xf]
        %v1574 = vld [vmem:[%s1570 + $0xc] sm:$0xf]
        %v1575 = vld [vmem:[%s1570 + $0x10] sm:$0xf]
        %v1576 = vld [vmem:[%s1570 + $0x14] sm:$0xf]
        %v1577 = vld [vmem:[%s1570 + $0x18] sm:$0xf]
        %v1578 = vld [vmem:[%s1570 + $0x1c] sm:$0xf]
        %v1587 = vunpack.c.l.b16 %v1571
        %v1588 = vunpack.c.l.b16 %v1572
        %v1589 = vunpack.c.l.b16 %v1573
        %v1590 = vunpack.c.l.b16 %v1574
        %v1591 = vunpack.c.l.b16 %v1575
        %v1592 = vunpack.c.l.b16 %v1576
        %v1593 = vunpack.c.l.b16 %v1577
        %v1594 = vunpack.c.l.b16 %v1578
        %v1595 = vpack.c.b16 %v1588, %v1587
        %v1596 = vpack.c.b16 %v1590, %v1589
        %v1597 = vpack.c.b16 %v1592, %v1591
        %v1598 = vpack.c.b16 %v1594, %v1593
        %v1604 = vsel %vm854, %v1554, 0
        %v1607 = vsel %vm854, %v1555, 0
        %v1610 = vsel %vm854, %v1556, 0
        %v1613 = vsel %vm854, %v1557, 0
        %v1616 = vsel %vm854, %v1558, 0
        %v1619 = vsel %vm854, %v1559, 0
        %v1622 = vsel %vm854, %v1560, 0
        %v1625 = vsel %vm854, %v1561, 0
        %v1628 = vsel %vm854, %v1562, 0
        %v1631 = vsel %vm854, %v1563, 0
        %v1634 = vsel %vm854, %v1564, 0
        %v1637 = vsel %vm854, %v1565, 0
        %v1640 = vsel %vm854, %v1566, 0
        %v1643 = vsel %vm854, %v1567, 0
        %v1646 = vsel %vm854, %v1568, 0
        %v1649 = vsel %vm854, %v1569, 0
        %1651 = vmatprep.subr.bf16.mxu0 0
        %1652 = vmatpush1.bf16.msra.mxu0 %v1595
        %1653 = vmatprep.subr.bf16.mxu0 0
        %1654 = vmatpush1.bf16.msra.mxu0 %v1596
        %1655 = vmatprep.subr.bf16.mxu0 0
        %1656 = vmatpush1.bf16.msra.mxu0 %v1597
        %1657 = vmatprep.subr.bf16.mxu0 0
        %1658 = vmatpush1.bf16.msra.mxu0 %v1598
        %1659 = vmatprep.subr.bf16.mxu0 0
        %1660 = vmatpush1.bf16.msra.mxu0 0
        %1661 = vmatprep.subr.bf16.mxu0 0
        %1662 = vmatpush1.bf16.msra.mxu0 0
        %1663 = vmatprep.subr.bf16.mxu0 0
        %1664 = vmatpush1.bf16.msra.mxu0 0
        %1665 = vmatprep.subr.bf16.mxu0 0
        %1666 = vmatpush1.bf16.msra.mxu0 0
        %1667 = vmatprep.subr.bf16.mxu0 0
        %1668 = vmatpush1.bf16.msra.mxu0 0
        %1669 = vmatprep.subr.bf16.mxu0 0
        %1670 = vmatpush1.bf16.msra.mxu0 0
        %1671 = vmatprep.subr.bf16.mxu0 0
        %1672 = vmatpush1.bf16.msra.mxu0 0
        %1673 = vmatprep.subr.bf16.mxu0 0
        %1674 = vmatpush1.bf16.msra.mxu0 0
        %1675 = vmatprep.subr.bf16.mxu0 0
        %1676 = vmatpush1.bf16.msra.mxu0 0
        %1677 = vmatprep.subr.bf16.mxu0 0
        %1678 = vmatpush1.bf16.msra.mxu0 0
        %1679 = vmatprep.subr.bf16.mxu0 0
        %1680 = vmatpush1.bf16.msra.mxu0 0
        %1681 = vmatprep.subr.bf16.mxu0 0
        %1682 = vmatpush1.bf16.msra.mxu0 0
        %1683 = vmatprep.mubr.bf16.mxu0 0
        %1684 = vmatmul.mubr.bf16.gmra.mrb[0].mxu0 %v1604
        %v1685 = vpop.f32.mrb[0].mxu0
        %v1686 = vadd.f32 0.0, %v1685
        %v1687 = vpop.f32.mrb[0].mxu0
        %v1688 = vpop.f32.mrb[0].mxu0
        %v1689 = vadd.f32 0.0, %v1688
        %v1690 = vpop.f32.mrb[0].mxu0
        %1691 = vmatprep.mubr.bf16.mxu0 0
        %1692 = vmatmul.mubr.bf16.gmra.mrb[0].mxu0 %v1607
        %v1693 = vpop.f32.mrb[0].mxu0
        %v1694 = vadd.f32 0.0, %v1693
        %v1695 = vpop.f32.mrb[0].mxu0
        %v1696 = vpop.f32.mrb[0].mxu0
        %v1697 = vadd.f32 0.0, %v1696
        %v1698 = vpop.f32.mrb[0].mxu0
        %1699 = vmatprep.mubr.bf16.mxu0 0
        %1700 = vmatmul.mubr.bf16.gmra.mrb[0].mxu0 %v1610
        %v1701 = vpop.f32.mrb[0].mxu0
        %v1702 = vadd.f32 0.0, %v1701
        %v1703 = vpop.f32.mrb[0].mxu0
        %v1704 = vpop.f32.mrb[0].mxu0
        %v1705 = vadd.f32 0.0, %v1704
        %v1706 = vpop.f32.mrb[0].mxu0
        %1707 = vmatprep.mubr.bf16.mxu0 0
        %1708 = vmatmul.mubr.bf16.gmra.mrb[0].mxu0 %v1613
        %v1709 = vpop.f32.mrb[0].mxu0
        %v1710 = vadd.f32 0.0, %v1709
        %v1711 = vpop.f32.mrb[0].mxu0
        %v1712 = vpop.f32.mrb[0].mxu0
        %v1713 = vadd.f32 0.0, %v1712
        %v1714 = vpop.f32.mrb[0].mxu0
        %1715 = vmatprep.mubr.bf16.mxu0 0
        %1716 = vmatmul.mubr.bf16.gmra.mrb[0].mxu0 %v1616
        %v1717 = vpop.f32.mrb[0].mxu0
        %v1718 = vadd.f32 0.0, %v1717
        %v1719 = vpop.f32.mrb[0].mxu0
        %v1720 = vpop.f32.mrb[0].mxu0
        %v1721 = vadd.f32 0.0, %v1720
        %v1722 = vpop.f32.mrb[0].mxu0
        %1723 = vmatprep.mubr.bf16.mxu0 0
        %1724 = vmatmul.mubr.bf16.gmra.mrb[0].mxu0 %v1619
        %v1725 = vpop.f32.mrb[0].mxu0
        %v1726 = vadd.f32 0.0, %v1725
        %v1727 = vpop.f32.mrb[0].mxu0
        %v1728 = vpop.f32.mrb[0].mxu0
        %v1729 = vadd.f32 0.0, %v1728
        %v1730 = vpop.f32.mrb[0].mxu0
        %1731 = vmatprep.mubr.bf16.mxu0 0
        %1732 = vmatmul.mubr.bf16.gmra.mrb[0].mxu0 %v1622
        %v1733 = vpop.f32.mrb[0].mxu0
        %v1734 = vadd.f32 0.0, %v1733
        %v1735 = vpop.f32.mrb[0].mxu0
        %v1736 = vpop.f32.mrb[0].mxu0
        %v1737 = vadd.f32 0.0, %v1736
        %v1738 = vpop.f32.mrb[0].mxu0
        %1739 = vmatprep.mubr.bf16.mxu0 0
        %1740 = vmatmul.mubr.bf16.gmra.mrb[0].mxu0 %v1625
        %v1741 = vpop.f32.mrb[0].mxu0
        %v1742 = vadd.f32 0.0, %v1741
        %v1743 = vpop.f32.mrb[0].mxu0
        %v1744 = vpop.f32.mrb[0].mxu0
        %v1745 = vadd.f32 0.0, %v1744
        %v1746 = vpop.f32.mrb[0].mxu0
        %1747 = vmatprep.mubr.bf16.mxu0 0
        %1748 = vmatmul.mubr.bf16.gmra.mrb[0].mxu0 %v1628
        %v1749 = vpop.f32.mrb[0].mxu0
        %v1750 = vadd.f32 0.0, %v1749
        %v1751 = vpop.f32.mrb[0].mxu0
        %v1752 = vpop.f32.mrb[0].mxu0
        %v1753 = vadd.f32 0.0, %v1752
        %v1754 = vpop.f32.mrb[0].mxu0
        %1755 = vmatprep.mubr.bf16.mxu0 0
        %1756 = vmatmul.mubr.bf16.gmra.mrb[0].mxu0 %v1631
        %v1757 = vpop.f32.mrb[0].mxu0
        %v1758 = vadd.f32 0.0, %v1757
        %v1759 = vpop.f32.mrb[0].mxu0
        %v1760 = vpop.f32.mrb[0].mxu0
        %v1761 = vadd.f32 0.0, %v1760
        %v1762 = vpop.f32.mrb[0].mxu0
        %1763 = vmatprep.mubr.bf16.mxu0 0
        %1764 = vmatmul.mubr.bf16.gmra.mrb[0].mxu0 %v1634
        %v1765 = vpop.f32.mrb[0].mxu0
        %v1766 = vadd.f32 0.0, %v1765
        %v1767 = vpop.f32.mrb[0].mxu0
        %v1768 = vpop.f32.mrb[0].mxu0
        %v1769 = vadd.f32 0.0, %v1768
        %v1770 = vpop.f32.mrb[0].mxu0
        %1771 = vmatprep.mubr.bf16.mxu0 0
        %1772 = vmatmul.mubr.bf16.gmra.mrb[0].mxu0 %v1637
        %v1773 = vpop.f32.mrb[0].mxu0
        %v1774 = vadd.f32 0.0, %v1773
        %v1775 = vpop.f32.mrb[0].mxu0
        %v1776 = vpop.f32.mrb[0].mxu0
        %v1777 = vadd.f32 0.0, %v1776
        %v1778 = vpop.f32.mrb[0].mxu0
        %1779 = vmatprep.mubr.bf16.mxu0 0
        %1780 = vmatmul.mubr.bf16.gmra.mrb[0].mxu0 %v1640
        %v1781 = vpop.f32.mrb[0].mxu0
        %v1782 = vadd.f32 0.0, %v1781
        %v1783 = vpop.f32.mrb[0].mxu0
        %v1784 = vpop.f32.mrb[0].mxu0
        %v1785 = vadd.f32 0.0, %v1784
        %v1786 = vpop.f32.mrb[0].mxu0
        %1787 = vmatprep.mubr.bf16.mxu0 0
        %1788 = vmatmul.mubr.bf16.gmra.mrb[0].mxu0 %v1643
        %v1789 = vpop.f32.mrb[0].mxu0
        %v1790 = vadd.f32 0.0, %v1789
        %v1791 = vpop.f32.mrb[0].mxu0
        %v1792 = vpop.f32.mrb[0].mxu0
        %v1793 = vadd.f32 0.0, %v1792
        %v1794 = vpop.f32.mrb[0].mxu0
        %1795 = vmatprep.mubr.bf16.mxu0 0
        %1796 = vmatmul.mubr.bf16.gmra.mrb[0].mxu0 %v1646
        %v1797 = vpop.f32.mrb[0].mxu0
        %v1798 = vadd.f32 0.0, %v1797
        %v1799 = vpop.f32.mrb[0].mxu0
        %v1800 = vpop.f32.mrb[0].mxu0
        %v1801 = vadd.f32 0.0, %v1800
        %v1802 = vpop.f32.mrb[0].mxu0
        %1803 = vmatprep.mubr.bf16.mxu0 0
        %1804 = vmatmul.mubr.bf16.gmra.mrb[0].mxu0 %v1649
        %v1805 = vpop.f32.mrb[0].mxu0
        %v1806 = vadd.f32 0.0, %v1805
        %v1807 = vpop.f32.mrb[0].mxu0
        %v1808 = vpop.f32.mrb[0].mxu0
        %v1809 = vadd.f32 0.0, %v1808
        %v1810 = vpop.f32.mrb[0].mxu0
        %1811 = vdwg.mxu0
        %v1812 = vadd.f32 %v1396, %v1686
        %v1813 = vadd.f32 %v1399, %v1689
        %v1814 = vadd.f32 %v1404, %v1694
        %v1815 = vadd.f32 %v1407, %v1697
        %v1816 = vadd.f32 %v1412, %v1702
        %v1817 = vadd.f32 %v1415, %v1705
        %v1818 = vadd.f32 %v1420, %v1710
        %v1819 = vadd.f32 %v1423, %v1713
        %v1820 = vadd.f32 %v1428, %v1718
        %v1821 = vadd.f32 %v1431, %v1721
        %v1822 = vadd.f32 %v1436, %v1726
        %v1823 = vadd.f32 %v1439, %v1729
        %v1824 = vadd.f32 %v1444, %v1734
        %v1825 = vadd.f32 %v1447, %v1737
        %v1826 = vadd.f32 %v1452, %v1742
        %v1827 = vadd.f32 %v1455, %v1745
        %v1828 = vadd.f32 %v1460, %v1750
        %v1829 = vadd.f32 %v1463, %v1753
        %v1830 = vadd.f32 %v1468, %v1758
        %v1831 = vadd.f32 %v1471, %v1761
        %v1832 = vadd.f32 %v1476, %v1766
        %v1833 = vadd.f32 %v1479, %v1769
        %v1834 = vadd.f32 %v1484, %v1774
        %v1835 = vadd.f32 %v1487, %v1777
        %v1836 = vadd.f32 %v1492, %v1782
        %v1837 = vadd.f32 %v1495, %v1785
        %v1838 = vadd.f32 %v1500, %v1790
        %v1839 = vadd.f32 %v1503, %v1793
        %v1840 = vadd.f32 %v1508, %v1798
        %v1841 = vadd.f32 %v1511, %v1801
        %v1842 = vadd.f32 %v1516, %v1806
        %v1843 = vadd.f32 %v1519, %v1809
        %v1844 = vld [vmem:[%s910] sm:$0xff]
        %v1845 = vld [vmem:[%s910 + $0x8] sm:$0xff]
        %v1846 = vld [vmem:[%s910 + $0x18] sm:$0xff]
        %v1847 = vld [vmem:[%s910 + $0x20] sm:$0xff]
        %v1848 = vld [vmem:[%s910 + $0x30] sm:$0xff]
        %v1849 = vld [vmem:[%s910 + $0x38] sm:$0xff]
        %v1850 = vld [vmem:[%s910 + $0x48] sm:$0xff]
        %v1851 = vld [vmem:[%s910 + $0x50] sm:$0xff]
        %v1852 = vld [vmem:[%s910 + $0x60] sm:$0xff]
        %v1853 = vld [vmem:[%s910 + $0x68] sm:$0xff]
        %v1854 = vld [vmem:[%s910 + $0x78] sm:$0xff]
        %v1855 = vld [vmem:[%s910 + $0x80] sm:$0xff]
        %v1856 = vld [vmem:[%s910 + $0x90] sm:$0xff]
        %v1857 = vld [vmem:[%s910 + $0x98] sm:$0xff]
        %v1858 = vld [vmem:[%s910 + $0xa8] sm:$0xff]
        %v1859 = vld [vmem:[%s910 + $0xb0] sm:$0xff]
        %v1860 = vld [vmem:[%s910 + $0xc0] sm:$0xff]
        %v1861 = vld [vmem:[%s910 + $0xc8] sm:$0xff]
        %v1862 = vld [vmem:[%s910 + $0xd8] sm:$0xff]
        %v1863 = vld [vmem:[%s910 + $0xe0] sm:$0xff]
        %v1864 = vld [vmem:[%s910 + $0xf0] sm:$0xff]
        %v1865 = vld [vmem:[%s910 + $0xf8] sm:$0xff]
        %v1866 = vld [vmem:[%s910 + $0x108] sm:$0xff]
        %v1867 = vld [vmem:[%s910 + $0x110] sm:$0xff]
        %v1868 = vld [vmem:[%s910 + $0x120] sm:$0xff]
        %v1869 = vld [vmem:[%s910 + $0x128] sm:$0xff]
        %v1870 = vld [vmem:[%s910 + $0x138] sm:$0xff]
        %v1871 = vld [vmem:[%s910 + $0x140] sm:$0xff]
        %v1872 = vld [vmem:[%s910 + $0x150] sm:$0xff]
        %v1873 = vld [vmem:[%s910 + $0x158] sm:$0xff]
        %v1874 = vld [vmem:[%s910 + $0x168] sm:$0xff]
        %v1875 = vld [vmem:[%s910 + $0x170] sm:$0xff]
        %v1876 = vpack.c.bf16 %v1845, %v1844
        %v1877 = vpack.c.bf16 %v1847, %v1846
        %v1878 = vpack.c.bf16 %v1849, %v1848
        %v1879 = vpack.c.bf16 %v1851, %v1850
        %v1880 = vpack.c.bf16 %v1853, %v1852
        %v1881 = vpack.c.bf16 %v1855, %v1854
        %v1882 = vpack.c.bf16 %v1857, %v1856
        %v1883 = vpack.c.bf16 %v1859, %v1858
        %v1884 = vpack.c.bf16 %v1861, %v1860
        %v1885 = vpack.c.bf16 %v1863, %v1862
        %v1886 = vpack.c.bf16 %v1865, %v1864
        %v1887 = vpack.c.bf16 %v1867, %v1866
        %v1888 = vpack.c.bf16 %v1869, %v1868
        %v1889 = vpack.c.bf16 %v1871, %v1870
        %v1890 = vpack.c.bf16 %v1873, %v1872
        %v1891 = vpack.c.bf16 %v1875, %v1874
        %s1892 = scalar_lea.vmem %s2, 96
        %v1893 = vld [vmem:[%s1892] sm:$0xf]
        %v1894 = vld [vmem:[%s1892 + $0x4] sm:$0xf]
        %v1895 = vld [vmem:[%s1892 + $0x8] sm:$0xf]
        %v1896 = vld [vmem:[%s1892 + $0xc] sm:$0xf]
        %v1897 = vld [vmem:[%s1892 + $0x10] sm:$0xf]
        %v1898 = vld [vmem:[%s1892 + $0x14] sm:$0xf]
        %v1899 = vld [vmem:[%s1892 + $0x18] sm:$0xf]
        %v1900 = vld [vmem:[%s1892 + $0x1c] sm:$0xf]
        %v1909 = vunpack.c.l.b16 %v1893
        %v1910 = vunpack.c.l.b16 %v1894
        %v1911 = vunpack.c.l.b16 %v1895
        %v1912 = vunpack.c.l.b16 %v1896
        %v1913 = vunpack.c.l.b16 %v1897
        %v1914 = vunpack.c.l.b16 %v1898
        %v1915 = vunpack.c.l.b16 %v1899
        %v1916 = vunpack.c.l.b16 %v1900
        %v1917 = vpack.c.b16 %v1910, %v1909
        %v1918 = vpack.c.b16 %v1912, %v1911
        %v1919 = vpack.c.b16 %v1914, %v1913
        %v1920 = vpack.c.b16 %v1916, %v1915
        %v1926 = vsel %vm854, %v1876, 0
        %v1929 = vsel %vm854, %v1877, 0
        %v1932 = vsel %vm854, %v1878, 0
        %v1935 = vsel %vm854, %v1879, 0
        %v1938 = vsel %vm854, %v1880, 0
        %v1941 = vsel %vm854, %v1881, 0
        %v1944 = vsel %vm854, %v1882, 0
        %v1947 = vsel %vm854, %v1883, 0
        %v1950 = vsel %vm854, %v1884, 0
        %v1953 = vsel %vm854, %v1885, 0
        %v1956 = vsel %vm854, %v1886, 0
        %v1959 = vsel %vm854, %v1887, 0
        %v1962 = vsel %vm854, %v1888, 0
        %v1965 = vsel %vm854, %v1889, 0
        %v1968 = vsel %vm854, %v1890, 0
        %v1971 = vsel %vm854, %v1891, 0
        %1973 = vmatprep.subr.bf16.mxu0 0
        %1974 = vmatpush1.bf16.msra.mxu0 %v1917
        %1975 = vmatprep.subr.bf16.mxu0 0
        %1976 = vmatpush1.bf16.msra.mxu0 %v1918
        %1977 = vmatprep.subr.bf16.mxu0 0
        %1978 = vmatpush1.bf16.msra.mxu0 %v1919
        %1979 = vmatprep.subr.bf16.mxu0 0
        %1980 = vmatpush1.bf16.msra.mxu0 %v1920
        %1981 = vmatprep.subr.bf16.mxu0 0
        %1982 = vmatpush1.bf16.msra.mxu0 0
        %1983 = vmatprep.subr.bf16.mxu0 0
        %1984 = vmatpush1.bf16.msra.mxu0 0
        %1985 = vmatprep.subr.bf16.mxu0 0
        %1986 = vmatpush1.bf16.msra.mxu0 0
        %1987 = vmatprep.subr.bf16.mxu0 0
        %1988 = vmatpush1.bf16.msra.mxu0 0
        %1989 = vmatprep.subr.bf16.mxu0 0
        %1990 = vmatpush1.bf16.msra.mxu0 0
        %1991 = vmatprep.subr.bf16.mxu0 0
        %1992 = vmatpush1.bf16.msra.mxu0 0
        %1993 = vmatprep.subr.bf16.mxu0 0
        %1994 = vmatpush1.bf16.msra.mxu0 0
        %1995 = vmatprep.subr.bf16.mxu0 0
        %1996 = vmatpush1.bf16.msra.mxu0 0
        %1997 = vmatprep.subr.bf16.mxu0 0
        %1998 = vmatpush1.bf16.msra.mxu0 0
        %1999 = vmatprep.subr.bf16.mxu0 0
        %2000 = vmatpush1.bf16.msra.mxu0 0
        %2001 = vmatprep.subr.bf16.mxu0 0
        %2002 = vmatpush1.bf16.msra.mxu0 0
        %2003 = vmatprep.subr.bf16.mxu0 0
        %2004 = vmatpush1.bf16.msra.mxu0 0
        %2005 = vmatprep.mubr.bf16.mxu0 0
        %2006 = vmatmul.mubr.bf16.gmra.mrb[0].mxu0 %v1926
        %v2007 = vpop.f32.mrb[0].mxu0
        %v2008 = vadd.f32 0.0, %v2007
        %v2009 = vpop.f32.mrb[0].mxu0
        %v2010 = vpop.f32.mrb[0].mxu0
        %v2011 = vadd.f32 0.0, %v2010
        %v2012 = vpop.f32.mrb[0].mxu0
        %2013 = vmatprep.mubr.bf16.mxu0 0
        %2014 = vmatmul.mubr.bf16.gmra.mrb[0].mxu0 %v1929
        %v2015 = vpop.f32.mrb[0].mxu0
        %v2016 = vadd.f32 0.0, %v2015
        %v2017 = vpop.f32.mrb[0].mxu0
        %v2018 = vpop.f32.mrb[0].mxu0
        %v2019 = vadd.f32 0.0, %v2018
        %v2020 = vpop.f32.mrb[0].mxu0
        %2021 = vmatprep.mubr.bf16.mxu0 0
        %2022 = vmatmul.mubr.bf16.gmra.mrb[0].mxu0 %v1932
        %v2023 = vpop.f32.mrb[0].mxu0
        %v2024 = vadd.f32 0.0, %v2023
        %v2025 = vpop.f32.mrb[0].mxu0
        %v2026 = vpop.f32.mrb[0].mxu0
        %v2027 = vadd.f32 0.0, %v2026
        %v2028 = vpop.f32.mrb[0].mxu0
        %2029 = vmatprep.mubr.bf16.mxu0 0
        %2030 = vmatmul.mubr.bf16.gmra.mrb[0].mxu0 %v1935
        %v2031 = vpop.f32.mrb[0].mxu0
        %v2032 = vadd.f32 0.0, %v2031
        %v2033 = vpop.f32.mrb[0].mxu0
        %v2034 = vpop.f32.mrb[0].mxu0
        %v2035 = vadd.f32 0.0, %v2034
        %v2036 = vpop.f32.mrb[0].mxu0
        %2037 = vmatprep.mubr.bf16.mxu0 0
        %2038 = vmatmul.mubr.bf16.gmra.mrb[0].mxu0 %v1938
        %v2039 = vpop.f32.mrb[0].mxu0
        %v2040 = vadd.f32 0.0, %v2039
        %v2041 = vpop.f32.mrb[0].mxu0
        %v2042 = vpop.f32.mrb[0].mxu0
        %v2043 = vadd.f32 0.0, %v2042
        %v2044 = vpop.f32.mrb[0].mxu0
        %2045 = vmatprep.mubr.bf16.mxu0 0
        %2046 = vmatmul.mubr.bf16.gmra.mrb[0].mxu0 %v1941
        %v2047 = vpop.f32.mrb[0].mxu0
        %v2048 = vadd.f32 0.0, %v2047
        %v2049 = vpop.f32.mrb[0].mxu0
        %v2050 = vpop.f32.mrb[0].mxu0
        %v2051 = vadd.f32 0.0, %v2050
        %v2052 = vpop.f32.mrb[0].mxu0
        %2053 = vmatprep.mubr.bf16.mxu0 0
        %2054 = vmatmul.mubr.bf16.gmra.mrb[0].mxu0 %v1944
        %v2055 = vpop.f32.mrb[0].mxu0
        %v2056 = vadd.f32 0.0, %v2055
        %v2057 = vpop.f32.mrb[0].mxu0
        %v2058 = vpop.f32.mrb[0].mxu0
        %v2059 = vadd.f32 0.0, %v2058
        %v2060 = vpop.f32.mrb[0].mxu0
        %2061 = vmatprep.mubr.bf16.mxu0 0
        %2062 = vmatmul.mubr.bf16.gmra.mrb[0].mxu0 %v1947
        %v2063 = vpop.f32.mrb[0].mxu0
        %v2064 = vadd.f32 0.0, %v2063
        %v2065 = vpop.f32.mrb[0].mxu0
        %v2066 = vpop.f32.mrb[0].mxu0
        %v2067 = vadd.f32 0.0, %v2066
        %v2068 = vpop.f32.mrb[0].mxu0
        %2069 = vmatprep.mubr.bf16.mxu0 0
        %2070 = vmatmul.mubr.bf16.gmra.mrb[0].mxu0 %v1950
        %v2071 = vpop.f32.mrb[0].mxu0
        %v2072 = vadd.f32 0.0, %v2071
        %v2073 = vpop.f32.mrb[0].mxu0
        %v2074 = vpop.f32.mrb[0].mxu0
        %v2075 = vadd.f32 0.0, %v2074
        %v2076 = vpop.f32.mrb[0].mxu0
        %2077 = vmatprep.mubr.bf16.mxu0 0
        %2078 = vmatmul.mubr.bf16.gmra.mrb[0].mxu0 %v1953
        %v2079 = vpop.f32.mrb[0].mxu0
        %v2080 = vadd.f32 0.0, %v2079
        %v2081 = vpop.f32.mrb[0].mxu0
        %v2082 = vpop.f32.mrb[0].mxu0
        %v2083 = vadd.f32 0.0, %v2082
        %v2084 = vpop.f32.mrb[0].mxu0
        %2085 = vmatprep.mubr.bf16.mxu0 0
        %2086 = vmatmul.mubr.bf16.gmra.mrb[0].mxu0 %v1956
        %v2087 = vpop.f32.mrb[0].mxu0
        %v2088 = vadd.f32 0.0, %v2087
        %v2089 = vpop.f32.mrb[0].mxu0
        %v2090 = vpop.f32.mrb[0].mxu0
        %v2091 = vadd.f32 0.0, %v2090
        %v2092 = vpop.f32.mrb[0].mxu0
        %2093 = vmatprep.mubr.bf16.mxu0 0
        %2094 = vmatmul.mubr.bf16.gmra.mrb[0].mxu0 %v1959
        %v2095 = vpop.f32.mrb[0].mxu0
        %v2096 = vadd.f32 0.0, %v2095
        %v2097 = vpop.f32.mrb[0].mxu0
        %v2098 = vpop.f32.mrb[0].mxu0
        %v2099 = vadd.f32 0.0, %v2098
        %v2100 = vpop.f32.mrb[0].mxu0
        %2101 = vmatprep.mubr.bf16.mxu0 0
        %2102 = vmatmul.mubr.bf16.gmra.mrb[0].mxu0 %v1962
        %v2103 = vpop.f32.mrb[0].mxu0
        %v2104 = vadd.f32 0.0, %v2103
        %v2105 = vpop.f32.mrb[0].mxu0
        %v2106 = vpop.f32.mrb[0].mxu0
        %v2107 = vadd.f32 0.0, %v2106
        %v2108 = vpop.f32.mrb[0].mxu0
        %2109 = vmatprep.mubr.bf16.mxu0 0
        %2110 = vmatmul.mubr.bf16.gmra.mrb[0].mxu0 %v1965
        %v2111 = vpop.f32.mrb[0].mxu0
        %v2112 = vadd.f32 0.0, %v2111
        %v2113 = vpop.f32.mrb[0].mxu0
        %v2114 = vpop.f32.mrb[0].mxu0
        %v2115 = vadd.f32 0.0, %v2114
        %v2116 = vpop.f32.mrb[0].mxu0
        %2117 = vmatprep.mubr.bf16.mxu0 0
        %2118 = vmatmul.mubr.bf16.gmra.mrb[0].mxu0 %v1968
        %v2119 = vpop.f32.mrb[0].mxu0
        %v2120 = vadd.f32 0.0, %v2119
        %v2121 = vpop.f32.mrb[0].mxu0
        %v2122 = vpop.f32.mrb[0].mxu0
        %v2123 = vadd.f32 0.0, %v2122
        %v2124 = vpop.f32.mrb[0].mxu0
        %2125 = vmatprep.mubr.bf16.mxu0 0
        %2126 = vmatmul.mubr.bf16.gmra.mrb[0].mxu0 %v1971
        %v2127 = vpop.f32.mrb[0].mxu0
        %v2128 = vadd.f32 0.0, %v2127
        %v2129 = vpop.f32.mrb[0].mxu0
        %v2130 = vpop.f32.mrb[0].mxu0
        %v2131 = vadd.f32 0.0, %v2130
        %v2132 = vpop.f32.mrb[0].mxu0
        %2133 = vdwg.mxu0
        %v2134 = vadd.f32 %v1812, %v2008
        %v2135 = vadd.f32 %v1813, %v2011
        %v2136 = vadd.f32 %v1814, %v2016
        %v2137 = vadd.f32 %v1815, %v2019
        %v2138 = vadd.f32 %v1816, %v2024
        %v2139 = vadd.f32 %v1817, %v2027
        %v2140 = vadd.f32 %v1818, %v2032
        %v2141 = vadd.f32 %v1819, %v2035
        %v2142 = vadd.f32 %v1820, %v2040
        %v2143 = vadd.f32 %v1821, %v2043
        %v2144 = vadd.f32 %v1822, %v2048
        %v2145 = vadd.f32 %v1823, %v2051
        %v2146 = vadd.f32 %v1824, %v2056
        %v2147 = vadd.f32 %v1825, %v2059
        %v2148 = vadd.f32 %v1826, %v2064
        %v2149 = vadd.f32 %v1827, %v2067
        %v2150 = vadd.f32 %v1828, %v2072
        %v2151 = vadd.f32 %v1829, %v2075
        %v2152 = vadd.f32 %v1830, %v2080
        %v2153 = vadd.f32 %v1831, %v2083
        %v2154 = vadd.f32 %v1832, %v2088
        %v2155 = vadd.f32 %v1833, %v2091
        %v2156 = vadd.f32 %v1834, %v2096
        %v2157 = vadd.f32 %v1835, %v2099
        %v2158 = vadd.f32 %v1836, %v2104
        %v2159 = vadd.f32 %v1837, %v2107
        %v2160 = vadd.f32 %v1838, %v2112
        %v2161 = vadd.f32 %v1839, %v2115
        %v2162 = vadd.f32 %v1840, %v2120
        %v2163 = vadd.f32 %v1841, %v2123
        %v2164 = vadd.f32 %v1842, %v2128
        %v2165 = vadd.f32 %v1843, %v2131
        %v2166 = vld [vmem:[%s910 + $0x1] sm:$0xff]
        %v2167 = vld [vmem:[%s910 + $0x9] sm:$0xff]
        %v2168 = vld [vmem:[%s910 + $0x19] sm:$0xff]
        %v2169 = vld [vmem:[%s910 + $0x21] sm:$0xff]
        %v2170 = vld [vmem:[%s910 + $0x31] sm:$0xff]
        %v2171 = vld [vmem:[%s910 + $0x39] sm:$0xff]
        %v2172 = vld [vmem:[%s910 + $0x49] sm:$0xff]
        %v2173 = vld [vmem:[%s910 + $0x51] sm:$0xff]
        %v2174 = vld [vmem:[%s910 + $0x61] sm:$0xff]
        %v2175 = vld [vmem:[%s910 + $0x69] sm:$0xff]
        %v2176 = vld [vmem:[%s910 + $0x79] sm:$0xff]
        %v2177 = vld [vmem:[%s910 + $0x81] sm:$0xff]
        %v2178 = vld [vmem:[%s910 + $0x91] sm:$0xff]
        %v2179 = vld [vmem:[%s910 + $0x99] sm:$0xff]
        %v2180 = vld [vmem:[%s910 + $0xa9] sm:$0xff]
        %v2181 = vld [vmem:[%s910 + $0xb1] sm:$0xff]
        %v2182 = vld [vmem:[%s910 + $0xc1] sm:$0xff]
        %v2183 = vld [vmem:[%s910 + $0xc9] sm:$0xff]
        %v2184 = vld [vmem:[%s910 + $0xd9] sm:$0xff]
        %v2185 = vld [vmem:[%s910 + $0xe1] sm:$0xff]
        %v2186 = vld [vmem:[%s910 + $0xf1] sm:$0xff]
        %v2187 = vld [vmem:[%s910 + $0xf9] sm:$0xff]
        %v2188 = vld [vmem:[%s910 + $0x109] sm:$0xff]
        %v2189 = vld [vmem:[%s910 + $0x111] sm:$0xff]
        %v2190 = vld [vmem:[%s910 + $0x121] sm:$0xff]
        %v2191 = vld [vmem:[%s910 + $0x129] sm:$0xff]
        %v2192 = vld [vmem:[%s910 + $0x139] sm:$0xff]
        %v2193 = vld [vmem:[%s910 + $0x141] sm:$0xff]
        %v2194 = vld [vmem:[%s910 + $0x151] sm:$0xff]
        %v2195 = vld [vmem:[%s910 + $0x159] sm:$0xff]
        %v2196 = vld [vmem:[%s910 + $0x169] sm:$0xff]
        %v2197 = vld [vmem:[%s910 + $0x171] sm:$0xff]
        %v2198 = vpack.c.bf16 %v2167, %v2166
        %v2199 = vpack.c.bf16 %v2169, %v2168
        %v2200 = vpack.c.bf16 %v2171, %v2170
        %v2201 = vpack.c.bf16 %v2173, %v2172
        %v2202 = vpack.c.bf16 %v2175, %v2174
        %v2203 = vpack.c.bf16 %v2177, %v2176
        %v2204 = vpack.c.bf16 %v2179, %v2178
        %v2205 = vpack.c.bf16 %v2181, %v2180
        %v2206 = vpack.c.bf16 %v2183, %v2182
        %v2207 = vpack.c.bf16 %v2185, %v2184
        %v2208 = vpack.c.bf16 %v2187, %v2186
        %v2209 = vpack.c.bf16 %v2189, %v2188
        %v2210 = vpack.c.bf16 %v2191, %v2190
        %v2211 = vpack.c.bf16 %v2193, %v2192
        %v2212 = vpack.c.bf16 %v2195, %v2194
        %v2213 = vpack.c.bf16 %v2197, %v2196
        %s2214 = scalar_lea.vmem %s2, 128
        %v2215 = vld [vmem:[%s2214] sm:$0xf]
        %v2216 = vld [vmem:[%s2214 + $0x4] sm:$0xf]
        %v2217 = vld [vmem:[%s2214 + $0x8] sm:$0xf]
        %v2218 = vld [vmem:[%s2214 + $0xc] sm:$0xf]
        %v2219 = vld [vmem:[%s2214 + $0x10] sm:$0xf]
        %v2220 = vld [vmem:[%s2214 + $0x14] sm:$0xf]
        %v2221 = vld [vmem:[%s2214 + $0x18] sm:$0xf]
        %v2222 = vld [vmem:[%s2214 + $0x1c] sm:$0xf]
        %v2231 = vunpack.c.l.b16 %v2215
        %v2232 = vunpack.c.l.b16 %v2216
        %v2233 = vunpack.c.l.b16 %v2217
        %v2234 = vunpack.c.l.b16 %v2218
        %v2235 = vunpack.c.l.b16 %v2219
        %v2236 = vunpack.c.l.b16 %v2220
        %v2237 = vunpack.c.l.b16 %v2221
        %v2238 = vunpack.c.l.b16 %v2222
        %v2239 = vpack.c.b16 %v2232, %v2231
        %v2240 = vpack.c.b16 %v2234, %v2233
        %v2241 = vpack.c.b16 %v2236, %v2235
        %v2242 = vpack.c.b16 %v2238, %v2237
        %v2248 = vsel %vm854, %v2198, 0
        %v2251 = vsel %vm854, %v2199, 0
        %v2254 = vsel %vm854, %v2200, 0
        %v2257 = vsel %vm854, %v2201, 0
        %v2260 = vsel %vm854, %v2202, 0
        %v2263 = vsel %vm854, %v2203, 0
        %v2266 = vsel %vm854, %v2204, 0
        %v2269 = vsel %vm854, %v2205, 0
        %v2272 = vsel %vm854, %v2206, 0
        %v2275 = vsel %vm854, %v2207, 0
        %v2278 = vsel %vm854, %v2208, 0
        %v2281 = vsel %vm854, %v2209, 0
        %v2284 = vsel %vm854, %v2210, 0
        %v2287 = vsel %vm854, %v2211, 0
        %v2290 = vsel %vm854, %v2212, 0
        %v2293 = vsel %vm854, %v2213, 0
        %2295 = vmatprep.subr.bf16.mxu0 0
        %2296 = vmatpush1.bf16.msra.mxu0 %v2239
        %2297 = vmatprep.subr.bf16.mxu0 0
        %2298 = vmatpush1.bf16.msra.mxu0 %v2240
        %2299 = vmatprep.subr.bf16.mxu0 0
        %2300 = vmatpush1.bf16.msra.mxu0 %v2241
        %2301 = vmatprep.subr.bf16.mxu0 0
        %2302 = vmatpush1.bf16.msra.mxu0 %v2242
        %2303 = vmatprep.subr.bf16.mxu0 0
        %2304 = vmatpush1.bf16.msra.mxu0 0
        %2305 = vmatprep.subr.bf16.mxu0 0
        %2306 = vmatpush1.bf16.msra.mxu0 0
        %2307 = vmatprep.subr.bf16.mxu0 0
        %2308 = vmatpush1.bf16.msra.mxu0 0
        %2309 = vmatprep.subr.bf16.mxu0 0
        %2310 = vmatpush1.bf16.msra.mxu0 0
        %2311 = vmatprep.subr.bf16.mxu0 0
        %2312 = vmatpush1.bf16.msra.mxu0 0
        %2313 = vmatprep.subr.bf16.mxu0 0
        %2314 = vmatpush1.bf16.msra.mxu0 0
        %2315 = vmatprep.subr.bf16.mxu0 0
        %2316 = vmatpush1.bf16.msra.mxu0 0
        %2317 = vmatprep.subr.bf16.mxu0 0
        %2318 = vmatpush1.bf16.msra.mxu0 0
        %2319 = vmatprep.subr.bf16.mxu0 0
        %2320 = vmatpush1.bf16.msra.mxu0 0
        %2321 = vmatprep.subr.bf16.mxu0 0
        %2322 = vmatpush1.bf16.msra.mxu0 0
        %2323 = vmatprep.subr.bf16.mxu0 0
        %2324 = vmatpush1.bf16.msra.mxu0 0
        %2325 = vmatprep.subr.bf16.mxu0 0
        %2326 = vmatpush1.bf16.msra.mxu0 0
        %2327 = vmatprep.mubr.bf16.mxu0 0
        %2328 = vmatmul.mubr.bf16.gmra.mrb[0].mxu0 %v2248
        %v2329 = vpop.f32.mrb[0].mxu0
        %v2330 = vadd.f32 0.0, %v2329
        %v2331 = vpop.f32.mrb[0].mxu0
        %v2332 = vpop.f32.mrb[0].mxu0
        %v2333 = vadd.f32 0.0, %v2332
        %v2334 = vpop.f32.mrb[0].mxu0
        %2335 = vmatprep.mubr.bf16.mxu0 0
        %2336 = vmatmul.mubr.bf16.gmra.mrb[0].mxu0 %v2251
        %v2337 = vpop.f32.mrb[0].mxu0
        %v2338 = vadd.f32 0.0, %v2337
        %v2339 = vpop.f32.mrb[0].mxu0
        %v2340 = vpop.f32.mrb[0].mxu0
        %v2341 = vadd.f32 0.0, %v2340
        %v2342 = vpop.f32.mrb[0].mxu0
        %2343 = vmatprep.mubr.bf16.mxu0 0
        %2344 = vmatmul.mubr.bf16.gmra.mrb[0].mxu0 %v2254
        %v2345 = vpop.f32.mrb[0].mxu0
        %v2346 = vadd.f32 0.0, %v2345
        %v2347 = vpop.f32.mrb[0].mxu0
        %v2348 = vpop.f32.mrb[0].mxu0
        %v2349 = vadd.f32 0.0, %v2348
        %v2350 = vpop.f32.mrb[0].mxu0
        %2351 = vmatprep.mubr.bf16.mxu0 0
        %2352 = vmatmul.mubr.bf16.gmra.mrb[0].mxu0 %v2257
        %v2353 = vpop.f32.mrb[0].mxu0
        %v2354 = vadd.f32 0.0, %v2353
        %v2355 = vpop.f32.mrb[0].mxu0
        %v2356 = vpop.f32.mrb[0].mxu0
        %v2357 = vadd.f32 0.0, %v2356
        %v2358 = vpop.f32.mrb[0].mxu0
        %2359 = vmatprep.mubr.bf16.mxu0 0
        %2360 = vmatmul.mubr.bf16.gmra.mrb[0].mxu0 %v2260
        %v2361 = vpop.f32.mrb[0].mxu0
        %v2362 = vadd.f32 0.0, %v2361
        %v2363 = vpop.f32.mrb[0].mxu0
        %v2364 = vpop.f32.mrb[0].mxu0
        %v2365 = vadd.f32 0.0, %v2364
        %v2366 = vpop.f32.mrb[0].mxu0
        %2367 = vmatprep.mubr.bf16.mxu0 0
        %2368 = vmatmul.mubr.bf16.gmra.mrb[0].mxu0 %v2263
        %v2369 = vpop.f32.mrb[0].mxu0
        %v2370 = vadd.f32 0.0, %v2369
        %v2371 = vpop.f32.mrb[0].mxu0
        %v2372 = vpop.f32.mrb[0].mxu0
        %v2373 = vadd.f32 0.0, %v2372
        %v2374 = vpop.f32.mrb[0].mxu0
        %2375 = vmatprep.mubr.bf16.mxu0 0
        %2376 = vmatmul.mubr.bf16.gmra.mrb[0].mxu0 %v2266
        %v2377 = vpop.f32.mrb[0].mxu0
        %v2378 = vadd.f32 0.0, %v2377
        %v2379 = vpop.f32.mrb[0].mxu0
        %v2380 = vpop.f32.mrb[0].mxu0
        %v2381 = vadd.f32 0.0, %v2380
        %v2382 = vpop.f32.mrb[0].mxu0
        %2383 = vmatprep.mubr.bf16.mxu0 0
        %2384 = vmatmul.mubr.bf16.gmra.mrb[0].mxu0 %v2269
        %v2385 = vpop.f32.mrb[0].mxu0
        %v2386 = vadd.f32 0.0, %v2385
        %v2387 = vpop.f32.mrb[0].mxu0
        %v2388 = vpop.f32.mrb[0].mxu0
        %v2389 = vadd.f32 0.0, %v2388
        %v2390 = vpop.f32.mrb[0].mxu0
        %2391 = vmatprep.mubr.bf16.mxu0 0
        %2392 = vmatmul.mubr.bf16.gmra.mrb[0].mxu0 %v2272
        %v2393 = vpop.f32.mrb[0].mxu0
        %v2394 = vadd.f32 0.0, %v2393
        %v2395 = vpop.f32.mrb[0].mxu0
        %v2396 = vpop.f32.mrb[0].mxu0
        %v2397 = vadd.f32 0.0, %v2396
        %v2398 = vpop.f32.mrb[0].mxu0
        %2399 = vmatprep.mubr.bf16.mxu0 0
        %2400 = vmatmul.mubr.bf16.gmra.mrb[0].mxu0 %v2275
        %v2401 = vpop.f32.mrb[0].mxu0
        %v2402 = vadd.f32 0.0, %v2401
        %v2403 = vpop.f32.mrb[0].mxu0
        %v2404 = vpop.f32.mrb[0].mxu0
        %v2405 = vadd.f32 0.0, %v2404
        %v2406 = vpop.f32.mrb[0].mxu0
        %2407 = vmatprep.mubr.bf16.mxu0 0
        %2408 = vmatmul.mubr.bf16.gmra.mrb[0].mxu0 %v2278
        %v2409 = vpop.f32.mrb[0].mxu0
        %v2410 = vadd.f32 0.0, %v2409
        %v2411 = vpop.f32.mrb[0].mxu0
        %v2412 = vpop.f32.mrb[0].mxu0
        %v2413 = vadd.f32 0.0, %v2412
        %v2414 = vpop.f32.mrb[0].mxu0
        %2415 = vmatprep.mubr.bf16.mxu0 0
        %2416 = vmatmul.mubr.bf16.gmra.mrb[0].mxu0 %v2281
        %v2417 = vpop.f32.mrb[0].mxu0
        %v2418 = vadd.f32 0.0, %v2417
        %v2419 = vpop.f32.mrb[0].mxu0
        %v2420 = vpop.f32.mrb[0].mxu0
        %v2421 = vadd.f32 0.0, %v2420
        %v2422 = vpop.f32.mrb[0].mxu0
        %2423 = vmatprep.mubr.bf16.mxu0 0
        %2424 = vmatmul.mubr.bf16.gmra.mrb[0].mxu0 %v2284
        %v2425 = vpop.f32.mrb[0].mxu0
        %v2426 = vadd.f32 0.0, %v2425
        %v2427 = vpop.f32.mrb[0].mxu0
        %v2428 = vpop.f32.mrb[0].mxu0
        %v2429 = vadd.f32 0.0, %v2428
        %v2430 = vpop.f32.mrb[0].mxu0
        %2431 = vmatprep.mubr.bf16.mxu0 0
        %2432 = vmatmul.mubr.bf16.gmra.mrb[0].mxu0 %v2287
        %v2433 = vpop.f32.mrb[0].mxu0
        %v2434 = vadd.f32 0.0, %v2433
        %v2435 = vpop.f32.mrb[0].mxu0
        %v2436 = vpop.f32.mrb[0].mxu0
        %v2437 = vadd.f32 0.0, %v2436
        %v2438 = vpop.f32.mrb[0].mxu0
        %2439 = vmatprep.mubr.bf16.mxu0 0
        %2440 = vmatmul.mubr.bf16.gmra.mrb[0].mxu0 %v2290
        %v2441 = vpop.f32.mrb[0].mxu0
        %v2442 = vadd.f32 0.0, %v2441
        %v2443 = vpop.f32.mrb[0].mxu0
        %v2444 = vpop.f32.mrb[0].mxu0
        %v2445 = vadd.f32 0.0, %v2444
        %v2446 = vpop.f32.mrb[0].mxu0
        %2447 = vmatprep.mubr.bf16.mxu0 0
        %2448 = vmatmul.mubr.bf16.gmra.mrb[0].mxu0 %v2293
        %v2449 = vpop.f32.mrb[0].mxu0
        %v2450 = vadd.f32 0.0, %v2449
        %v2451 = vpop.f32.mrb[0].mxu0
        %v2452 = vpop.f32.mrb[0].mxu0
        %v2453 = vadd.f32 0.0, %v2452
        %v2454 = vpop.f32.mrb[0].mxu0
        %2455 = vdwg.mxu0
        %v2456 = vadd.f32 %v2134, %v2330
        %v2457 = vadd.f32 %v2135, %v2333
        %v2458 = vadd.f32 %v2136, %v2338
        %v2459 = vadd.f32 %v2137, %v2341
        %v2460 = vadd.f32 %v2138, %v2346
        %v2461 = vadd.f32 %v2139, %v2349
        %v2462 = vadd.f32 %v2140, %v2354
        %v2463 = vadd.f32 %v2141, %v2357
        %v2464 = vadd.f32 %v2142, %v2362
        %v2465 = vadd.f32 %v2143, %v2365
        %v2466 = vadd.f32 %v2144, %v2370
        %v2467 = vadd.f32 %v2145, %v2373
        %v2468 = vadd.f32 %v2146, %v2378
        %v2469 = vadd.f32 %v2147, %v2381
        %v2470 = vadd.f32 %v2148, %v2386
        %v2471 = vadd.f32 %v2149, %v2389
        %v2472 = vadd.f32 %v2150, %v2394
        %v2473 = vadd.f32 %v2151, %v2397
        %v2474 = vadd.f32 %v2152, %v2402
        %v2475 = vadd.f32 %v2153, %v2405
        %v2476 = vadd.f32 %v2154, %v2410
        %v2477 = vadd.f32 %v2155, %v2413
        %v2478 = vadd.f32 %v2156, %v2418
        %v2479 = vadd.f32 %v2157, %v2421
        %v2480 = vadd.f32 %v2158, %v2426
        %v2481 = vadd.f32 %v2159, %v2429
        %v2482 = vadd.f32 %v2160, %v2434
        %v2483 = vadd.f32 %v2161, %v2437
        %v2484 = vadd.f32 %v2162, %v2442
        %v2485 = vadd.f32 %v2163, %v2445
        %v2486 = vadd.f32 %v2164, %v2450
        %v2487 = vadd.f32 %v2165, %v2453
        %v2488 = vld [vmem:[%s910 + $0x2] sm:$0xff]
        %v2489 = vld [vmem:[%s910 + $0xa] sm:$0xff]
        %v2490 = vld [vmem:[%s910 + $0x1a] sm:$0xff]
        %v2491 = vld [vmem:[%s910 + $0x22] sm:$0xff]
        %v2492 = vld [vmem:[%s910 + $0x32] sm:$0xff]
        %v2493 = vld [vmem:[%s910 + $0x3a] sm:$0xff]
        %v2494 = vld [vmem:[%s910 + $0x4a] sm:$0xff]
        %v2495 = vld [vmem:[%s910 + $0x52] sm:$0xff]
        %v2496 = vld [vmem:[%s910 + $0x62] sm:$0xff]
        %v2497 = vld [vmem:[%s910 + $0x6a] sm:$0xff]
        %v2498 = vld [vmem:[%s910 + $0x7a] sm:$0xff]
        %v2499 = vld [vmem:[%s910 + $0x82] sm:$0xff]
        %v2500 = vld [vmem:[%s910 + $0x92] sm:$0xff]
        %v2501 = vld [vmem:[%s910 + $0x9a] sm:$0xff]
        %v2502 = vld [vmem:[%s910 + $0xaa] sm:$0xff]
        %v2503 = vld [vmem:[%s910 + $0xb2] sm:$0xff]
        %v2504 = vld [vmem:[%s910 + $0xc2] sm:$0xff]
        %v2505 = vld [vmem:[%s910 + $0xca] sm:$0xff]
        %v2506 = vld [vmem:[%s910 + $0xda] sm:$0xff]
        %v2507 = vld [vmem:[%s910 + $0xe2] sm:$0xff]
        %v2508 = vld [vmem:[%s910 + $0xf2] sm:$0xff]
        %v2509 = vld [vmem:[%s910 + $0xfa] sm:$0xff]
        %v2510 = vld [vmem:[%s910 + $0x10a] sm:$0xff]
        %v2511 = vld [vmem:[%s910 + $0x112] sm:$0xff]
        %v2512 = vld [vmem:[%s910 + $0x122] sm:$0xff]
        %v2513 = vld [vmem:[%s910 + $0x12a] sm:$0xff]
        %v2514 = vld [vmem:[%s910 + $0x13a] sm:$0xff]
        %v2515 = vld [vmem:[%s910 + $0x142] sm:$0xff]
        %v2516 = vld [vmem:[%s910 + $0x152] sm:$0xff]
        %v2517 = vld [vmem:[%s910 + $0x15a] sm:$0xff]
        %v2518 = vld [vmem:[%s910 + $0x16a] sm:$0xff]
        %v2519 = vld [vmem:[%s910 + $0x172] sm:$0xff]
        %v2520 = vpack.c.bf16 %v2489, %v2488
        %v2521 = vpack.c.bf16 %v2491, %v2490
        %v2522 = vpack.c.bf16 %v2493, %v2492
        %v2523 = vpack.c.bf16 %v2495, %v2494
        %v2524 = vpack.c.bf16 %v2497, %v2496
        %v2525 = vpack.c.bf16 %v2499, %v2498
        %v2526 = vpack.c.bf16 %v2501, %v2500
        %v2527 = vpack.c.bf16 %v2503, %v2502
        %v2528 = vpack.c.bf16 %v2505, %v2504
        %v2529 = vpack.c.bf16 %v2507, %v2506
        %v2530 = vpack.c.bf16 %v2509, %v2508
        %v2531 = vpack.c.bf16 %v2511, %v2510
        %v2532 = vpack.c.bf16 %v2513, %v2512
        %v2533 = vpack.c.bf16 %v2515, %v2514
        %v2534 = vpack.c.bf16 %v2517, %v2516
        %v2535 = vpack.c.bf16 %v2519, %v2518
        %s2536 = scalar_lea.vmem %s2, 160
        %v2537 = vld [vmem:[%s2536] sm:$0xf]
        %v2538 = vld [vmem:[%s2536 + $0x4] sm:$0xf]
        %v2539 = vld [vmem:[%s2536 + $0x8] sm:$0xf]
        %v2540 = vld [vmem:[%s2536 + $0xc] sm:$0xf]
        %v2541 = vld [vmem:[%s2536 + $0x10] sm:$0xf]
        %v2542 = vld [vmem:[%s2536 + $0x14] sm:$0xf]
        %v2543 = vld [vmem:[%s2536 + $0x18] sm:$0xf]
        %v2544 = vld [vmem:[%s2536 + $0x1c] sm:$0xf]
        %v2553 = vunpack.c.l.b16 %v2537
        %v2554 = vunpack.c.l.b16 %v2538
        %v2555 = vunpack.c.l.b16 %v2539
        %v2556 = vunpack.c.l.b16 %v2540
        %v2557 = vunpack.c.l.b16 %v2541
        %v2558 = vunpack.c.l.b16 %v2542
        %v2559 = vunpack.c.l.b16 %v2543
        %v2560 = vunpack.c.l.b16 %v2544
        %v2561 = vpack.c.b16 %v2554, %v2553
        %v2562 = vpack.c.b16 %v2556, %v2555
        %v2563 = vpack.c.b16 %v2558, %v2557
        %v2564 = vpack.c.b16 %v2560, %v2559
        %v2570 = vsel %vm854, %v2520, 0
        %v2573 = vsel %vm854, %v2521, 0
        %v2576 = vsel %vm854, %v2522, 0
        %v2579 = vsel %vm854, %v2523, 0
        %v2582 = vsel %vm854, %v2524, 0
        %v2585 = vsel %vm854, %v2525, 0
        %v2588 = vsel %vm854, %v2526, 0
        %v2591 = vsel %vm854, %v2527, 0
        %v2594 = vsel %vm854, %v2528, 0
        %v2597 = vsel %vm854, %v2529, 0
        %v2600 = vsel %vm854, %v2530, 0
        %v2603 = vsel %vm854, %v2531, 0
        %v2606 = vsel %vm854, %v2532, 0
        %v2609 = vsel %vm854, %v2533, 0
        %v2612 = vsel %vm854, %v2534, 0
        %v2615 = vsel %vm854, %v2535, 0
        %2617 = vmatprep.subr.bf16.mxu0 0
        %2618 = vmatpush1.bf16.msra.mxu0 %v2561
        %2619 = vmatprep.subr.bf16.mxu0 0
        %2620 = vmatpush1.bf16.msra.mxu0 %v2562
        %2621 = vmatprep.subr.bf16.mxu0 0
        %2622 = vmatpush1.bf16.msra.mxu0 %v2563
        %2623 = vmatprep.subr.bf16.mxu0 0
        %2624 = vmatpush1.bf16.msra.mxu0 %v2564
        %2625 = vmatprep.subr.bf16.mxu0 0
        %2626 = vmatpush1.bf16.msra.mxu0 0
        %2627 = vmatprep.subr.bf16.mxu0 0
        %2628 = vmatpush1.bf16.msra.mxu0 0
        %2629 = vmatprep.subr.bf16.mxu0 0
        %2630 = vmatpush1.bf16.msra.mxu0 0
        %2631 = vmatprep.subr.bf16.mxu0 0
        %2632 = vmatpush1.bf16.msra.mxu0 0
        %2633 = vmatprep.subr.bf16.mxu0 0
        %2634 = vmatpush1.bf16.msra.mxu0 0
        %2635 = vmatprep.subr.bf16.mxu0 0
        %2636 = vmatpush1.bf16.msra.mxu0 0
        %2637 = vmatprep.subr.bf16.mxu0 0
        %2638 = vmatpush1.bf16.msra.mxu0 0
        %2639 = vmatprep.subr.bf16.mxu0 0
        %2640 = vmatpush1.bf16.msra.mxu0 0
        %2641 = vmatprep.subr.bf16.mxu0 0
        %2642 = vmatpush1.bf16.msra.mxu0 0
        %2643 = vmatprep.subr.bf16.mxu0 0
        %2644 = vmatpush1.bf16.msra.mxu0 0
        %2645 = vmatprep.subr.bf16.mxu0 0
        %2646 = vmatpush1.bf16.msra.mxu0 0
        %2647 = vmatprep.subr.bf16.mxu0 0
        %2648 = vmatpush1.bf16.msra.mxu0 0
        %2649 = vmatprep.mubr.bf16.mxu0 0
        %2650 = vmatmul.mubr.bf16.gmra.mrb[0].mxu0 %v2570
        %v2651 = vpop.f32.mrb[0].mxu0
        %v2652 = vadd.f32 0.0, %v2651
        %v2653 = vpop.f32.mrb[0].mxu0
        %v2654 = vpop.f32.mrb[0].mxu0
        %v2655 = vadd.f32 0.0, %v2654
        %v2656 = vpop.f32.mrb[0].mxu0
        %2657 = vmatprep.mubr.bf16.mxu0 0
        %2658 = vmatmul.mubr.bf16.gmra.mrb[0].mxu0 %v2573
        %v2659 = vpop.f32.mrb[0].mxu0
        %v2660 = vadd.f32 0.0, %v2659
        %v2661 = vpop.f32.mrb[0].mxu0
        %v2662 = vpop.f32.mrb[0].mxu0
        %v2663 = vadd.f32 0.0, %v2662
        %v2664 = vpop.f32.mrb[0].mxu0
        %2665 = vmatprep.mubr.bf16.mxu0 0
        %2666 = vmatmul.mubr.bf16.gmra.mrb[0].mxu0 %v2576
        %v2667 = vpop.f32.mrb[0].mxu0
        %v2668 = vadd.f32 0.0, %v2667
        %v2669 = vpop.f32.mrb[0].mxu0
        %v2670 = vpop.f32.mrb[0].mxu0
        %v2671 = vadd.f32 0.0, %v2670
        %v2672 = vpop.f32.mrb[0].mxu0
        %2673 = vmatprep.mubr.bf16.mxu0 0
        %2674 = vmatmul.mubr.bf16.gmra.mrb[0].mxu0 %v2579
        %v2675 = vpop.f32.mrb[0].mxu0
        %v2676 = vadd.f32 0.0, %v2675
        %v2677 = vpop.f32.mrb[0].mxu0
        %v2678 = vpop.f32.mrb[0].mxu0
        %v2679 = vadd.f32 0.0, %v2678
        %v2680 = vpop.f32.mrb[0].mxu0
        %2681 = vmatprep.mubr.bf16.mxu0 0
        %2682 = vmatmul.mubr.bf16.gmra.mrb[0].mxu0 %v2582
        %v2683 = vpop.f32.mrb[0].mxu0
        %v2684 = vadd.f32 0.0, %v2683
        %v2685 = vpop.f32.mrb[0].mxu0
        %v2686 = vpop.f32.mrb[0].mxu0
        %v2687 = vadd.f32 0.0, %v2686
        %v2688 = vpop.f32.mrb[0].mxu0
        %2689 = vmatprep.mubr.bf16.mxu0 0
        %2690 = vmatmul.mubr.bf16.gmra.mrb[0].mxu0 %v2585
        %v2691 = vpop.f32.mrb[0].mxu0
        %v2692 = vadd.f32 0.0, %v2691
        %v2693 = vpop.f32.mrb[0].mxu0
        %v2694 = vpop.f32.mrb[0].mxu0
        %v2695 = vadd.f32 0.0, %v2694
        %v2696 = vpop.f32.mrb[0].mxu0
        %2697 = vmatprep.mubr.bf16.mxu0 0
        %2698 = vmatmul.mubr.bf16.gmra.mrb[0].mxu0 %v2588
        %v2699 = vpop.f32.mrb[0].mxu0
        %v2700 = vadd.f32 0.0, %v2699
        %v2701 = vpop.f32.mrb[0].mxu0
        %v2702 = vpop.f32.mrb[0].mxu0
        %v2703 = vadd.f32 0.0, %v2702
        %v2704 = vpop.f32.mrb[0].mxu0
        %2705 = vmatprep.mubr.bf16.mxu0 0
        %2706 = vmatmul.mubr.bf16.gmra.mrb[0].mxu0 %v2591
        %v2707 = vpop.f32.mrb[0].mxu0
        %v2708 = vadd.f32 0.0, %v2707
        %v2709 = vpop.f32.mrb[0].mxu0
        %v2710 = vpop.f32.mrb[0].mxu0
        %v2711 = vadd.f32 0.0, %v2710
        %v2712 = vpop.f32.mrb[0].mxu0
        %2713 = vmatprep.mubr.bf16.mxu0 0
        %2714 = vmatmul.mubr.bf16.gmra.mrb[0].mxu0 %v2594
        %v2715 = vpop.f32.mrb[0].mxu0
        %v2716 = vadd.f32 0.0, %v2715
        %v2717 = vpop.f32.mrb[0].mxu0
        %v2718 = vpop.f32.mrb[0].mxu0
        %v2719 = vadd.f32 0.0, %v2718
        %v2720 = vpop.f32.mrb[0].mxu0
        %2721 = vmatprep.mubr.bf16.mxu0 0
        %2722 = vmatmul.mubr.bf16.gmra.mrb[0].mxu0 %v2597
        %v2723 = vpop.f32.mrb[0].mxu0
        %v2724 = vadd.f32 0.0, %v2723
        %v2725 = vpop.f32.mrb[0].mxu0
        %v2726 = vpop.f32.mrb[0].mxu0
        %v2727 = vadd.f32 0.0, %v2726
        %v2728 = vpop.f32.mrb[0].mxu0
        %2729 = vmatprep.mubr.bf16.mxu0 0
        %2730 = vmatmul.mubr.bf16.gmra.mrb[0].mxu0 %v2600
        %v2731 = vpop.f32.mrb[0].mxu0
        %v2732 = vadd.f32 0.0, %v2731
        %v2733 = vpop.f32.mrb[0].mxu0
        %v2734 = vpop.f32.mrb[0].mxu0
        %v2735 = vadd.f32 0.0, %v2734
        %v2736 = vpop.f32.mrb[0].mxu0
        %2737 = vmatprep.mubr.bf16.mxu0 0
        %2738 = vmatmul.mubr.bf16.gmra.mrb[0].mxu0 %v2603
        %v2739 = vpop.f32.mrb[0].mxu0
        %v2740 = vadd.f32 0.0, %v2739
        %v2741 = vpop.f32.mrb[0].mxu0
        %v2742 = vpop.f32.mrb[0].mxu0
        %v2743 = vadd.f32 0.0, %v2742
        %v2744 = vpop.f32.mrb[0].mxu0
        %2745 = vmatprep.mubr.bf16.mxu0 0
        %2746 = vmatmul.mubr.bf16.gmra.mrb[0].mxu0 %v2606
        %v2747 = vpop.f32.mrb[0].mxu0
        %v2748 = vadd.f32 0.0, %v2747
        %v2749 = vpop.f32.mrb[0].mxu0
        %v2750 = vpop.f32.mrb[0].mxu0
        %v2751 = vadd.f32 0.0, %v2750
        %v2752 = vpop.f32.mrb[0].mxu0
        %2753 = vmatprep.mubr.bf16.mxu0 0
        %2754 = vmatmul.mubr.bf16.gmra.mrb[0].mxu0 %v2609
        %v2755 = vpop.f32.mrb[0].mxu0
        %v2756 = vadd.f32 0.0, %v2755
        %v2757 = vpop.f32.mrb[0].mxu0
        %v2758 = vpop.f32.mrb[0].mxu0
        %v2759 = vadd.f32 0.0, %v2758
        %v2760 = vpop.f32.mrb[0].mxu0
        %2761 = vmatprep.mubr.bf16.mxu0 0
        %2762 = vmatmul.mubr.bf16.gmra.mrb[0].mxu0 %v2612
        %v2763 = vpop.f32.mrb[0].mxu0
        %v2764 = vadd.f32 0.0, %v2763
        %v2765 = vpop.f32.mrb[0].mxu0
        %v2766 = vpop.f32.mrb[0].mxu0
        %v2767 = vadd.f32 0.0, %v2766
        %v2768 = vpop.f32.mrb[0].mxu0
        %2769 = vmatprep.mubr.bf16.mxu0 0
        %2770 = vmatmul.mubr.bf16.gmra.mrb[0].mxu0 %v2615
        %v2771 = vpop.f32.mrb[0].mxu0
        %v2772 = vadd.f32 0.0, %v2771
        %v2773 = vpop.f32.mrb[0].mxu0
        %v2774 = vpop.f32.mrb[0].mxu0
        %v2775 = vadd.f32 0.0, %v2774
        %v2776 = vpop.f32.mrb[0].mxu0
        %2777 = vdwg.mxu0
        %v2778 = vadd.f32 %v2456, %v2652
        %v2779 = vadd.f32 %v2457, %v2655
        %v2780 = vadd.f32 %v2458, %v2660
        %v2781 = vadd.f32 %v2459, %v2663
        %v2782 = vadd.f32 %v2460, %v2668
        %v2783 = vadd.f32 %v2461, %v2671
        %v2784 = vadd.f32 %v2462, %v2676
        %v2785 = vadd.f32 %v2463, %v2679
        %v2786 = vadd.f32 %v2464, %v2684
        %v2787 = vadd.f32 %v2465, %v2687
        %v2788 = vadd.f32 %v2466, %v2692
        %v2789 = vadd.f32 %v2467, %v2695
        %v2790 = vadd.f32 %v2468, %v2700
        %v2791 = vadd.f32 %v2469, %v2703
        %v2792 = vadd.f32 %v2470, %v2708
        %v2793 = vadd.f32 %v2471, %v2711
        %v2794 = vadd.f32 %v2472, %v2716
        %v2795 = vadd.f32 %v2473, %v2719
        %v2796 = vadd.f32 %v2474, %v2724
        %v2797 = vadd.f32 %v2475, %v2727
        %v2798 = vadd.f32 %v2476, %v2732
        %v2799 = vadd.f32 %v2477, %v2735
        %v2800 = vadd.f32 %v2478, %v2740
        %v2801 = vadd.f32 %v2479, %v2743
        %v2802 = vadd.f32 %v2480, %v2748
        %v2803 = vadd.f32 %v2481, %v2751
        %v2804 = vadd.f32 %v2482, %v2756
        %v2805 = vadd.f32 %v2483, %v2759
        %v2806 = vadd.f32 %v2484, %v2764
        %v2807 = vadd.f32 %v2485, %v2767
        %v2808 = vadd.f32 %v2486, %v2772
        %v2809 = vadd.f32 %v2487, %v2775
        %s2810 = scalar_lea.vmem [#allocation2], 48
        %v2811 = vld [vmem:[%s2810] sm:$0xff]
        %v2812 = vld [vmem:[%s2810 + $0x8] sm:$0xff]
        %v2813 = vld [vmem:[%s2810 + $0x18] sm:$0xff]
        %v2814 = vld [vmem:[%s2810 + $0x20] sm:$0xff]
        %v2815 = vld [vmem:[%s2810 + $0x30] sm:$0xff]
        %v2816 = vld [vmem:[%s2810 + $0x38] sm:$0xff]
        %v2817 = vld [vmem:[%s2810 + $0x48] sm:$0xff]
        %v2818 = vld [vmem:[%s2810 + $0x50] sm:$0xff]
        %v2819 = vld [vmem:[%s2810 + $0x60] sm:$0xff]
        %v2820 = vld [vmem:[%s2810 + $0x68] sm:$0xff]
        %v2821 = vld [vmem:[%s2810 + $0x78] sm:$0xff]
        %v2822 = vld [vmem:[%s2810 + $0x80] sm:$0xff]
        %v2823 = vld [vmem:[%s2810 + $0x90] sm:$0xff]
        %v2824 = vld [vmem:[%s2810 + $0x98] sm:$0xff]
        %v2825 = vld [vmem:[%s2810 + $0xa8] sm:$0xff]
        %v2826 = vld [vmem:[%s2810 + $0xb0] sm:$0xff]
        %v2827 = vld [vmem:[%s2810 + $0xc0] sm:$0xff]
        %v2828 = vld [vmem:[%s2810 + $0xc8] sm:$0xff]
        %v2829 = vld [vmem:[%s2810 + $0xd8] sm:$0xff]
        %v2830 = vld [vmem:[%s2810 + $0xe0] sm:$0xff]
        %v2831 = vld [vmem:[%s2810 + $0xf0] sm:$0xff]
        %v2832 = vld [vmem:[%s2810 + $0xf8] sm:$0xff]
        %v2833 = vld [vmem:[%s2810 + $0x108] sm:$0xff]
        %v2834 = vld [vmem:[%s2810 + $0x110] sm:$0xff]
        %v2835 = vld [vmem:[%s2810 + $0x120] sm:$0xff]
        %v2836 = vld [vmem:[%s2810 + $0x128] sm:$0xff]
        %v2837 = vld [vmem:[%s2810 + $0x138] sm:$0xff]
        %v2838 = vld [vmem:[%s2810 + $0x140] sm:$0xff]
        %v2839 = vld [vmem:[%s2810 + $0x150] sm:$0xff]
        %v2840 = vld [vmem:[%s2810 + $0x158] sm:$0xff]
        %v2841 = vld [vmem:[%s2810 + $0x168] sm:$0xff]
        %v2842 = vld [vmem:[%s2810 + $0x170] sm:$0xff]
        %v2843 = vpack.c.bf16 %v2812, %v2811
        %v2844 = vpack.c.bf16 %v2814, %v2813
        %v2845 = vpack.c.bf16 %v2816, %v2815
        %v2846 = vpack.c.bf16 %v2818, %v2817
        %v2847 = vpack.c.bf16 %v2820, %v2819
        %v2848 = vpack.c.bf16 %v2822, %v2821
        %v2849 = vpack.c.bf16 %v2824, %v2823
        %v2850 = vpack.c.bf16 %v2826, %v2825
        %v2851 = vpack.c.bf16 %v2828, %v2827
        %v2852 = vpack.c.bf16 %v2830, %v2829
        %v2853 = vpack.c.bf16 %v2832, %v2831
        %v2854 = vpack.c.bf16 %v2834, %v2833
        %v2855 = vpack.c.bf16 %v2836, %v2835
        %v2856 = vpack.c.bf16 %v2838, %v2837
        %v2857 = vpack.c.bf16 %v2840, %v2839
        %v2858 = vpack.c.bf16 %v2842, %v2841
        %s2859 = scalar_lea.vmem %s2, 192
        %v2860 = vld [vmem:[%s2859] sm:$0xf]
        %v2861 = vld [vmem:[%s2859 + $0x4] sm:$0xf]
        %v2862 = vld [vmem:[%s2859 + $0x8] sm:$0xf]
        %v2863 = vld [vmem:[%s2859 + $0xc] sm:$0xf]
        %v2864 = vld [vmem:[%s2859 + $0x10] sm:$0xf]
        %v2865 = vld [vmem:[%s2859 + $0x14] sm:$0xf]
        %v2866 = vld [vmem:[%s2859 + $0x18] sm:$0xf]
        %v2867 = vld [vmem:[%s2859 + $0x1c] sm:$0xf]
        %v2876 = vunpack.c.l.b16 %v2860
        %v2877 = vunpack.c.l.b16 %v2861
        %v2878 = vunpack.c.l.b16 %v2862
        %v2879 = vunpack.c.l.b16 %v2863
        %v2880 = vunpack.c.l.b16 %v2864
        %v2881 = vunpack.c.l.b16 %v2865
        %v2882 = vunpack.c.l.b16 %v2866
        %v2883 = vunpack.c.l.b16 %v2867
        %v2884 = vpack.c.b16 %v2877, %v2876
        %v2885 = vpack.c.b16 %v2879, %v2878
        %v2886 = vpack.c.b16 %v2881, %v2880
        %v2887 = vpack.c.b16 %v2883, %v2882
        %v2893 = vsel %vm854, %v2843, 0
        %v2896 = vsel %vm854, %v2844, 0
        %v2899 = vsel %vm854, %v2845, 0
        %v2902 = vsel %vm854, %v2846, 0
        %v2905 = vsel %vm854, %v2847, 0
        %v2908 = vsel %vm854, %v2848, 0
        %v2911 = vsel %vm854, %v2849, 0
        %v2914 = vsel %vm854, %v2850, 0
        %v2917 = vsel %vm854, %v2851, 0
        %v2920 = vsel %vm854, %v2852, 0
        %v2923 = vsel %vm854, %v2853, 0
        %v2926 = vsel %vm854, %v2854, 0
        %v2929 = vsel %vm854, %v2855, 0
        %v2932 = vsel %vm854, %v2856, 0
        %v2935 = vsel %vm854, %v2857, 0
        %v2938 = vsel %vm854, %v2858, 0
        %2940 = vmatprep.subr.bf16.mxu0 0
        %2941 = vmatpush1.bf16.msra.mxu0 %v2884
        %2942 = vmatprep.subr.bf16.mxu0 0
        %2943 = vmatpush1.bf16.msra.mxu0 %v2885
        %2944 = vmatprep.subr.bf16.mxu0 0
        %2945 = vmatpush1.bf16.msra.mxu0 %v2886
        %2946 = vmatprep.subr.bf16.mxu0 0
        %2947 = vmatpush1.bf16.msra.mxu0 %v2887
        %2948 = vmatprep.subr.bf16.mxu0 0
        %2949 = vmatpush1.bf16.msra.mxu0 0
        %2950 = vmatprep.subr.bf16.mxu0 0
        %2951 = vmatpush1.bf16.msra.mxu0 0
        %2952 = vmatprep.subr.bf16.mxu0 0
        %2953 = vmatpush1.bf16.msra.mxu0 0
        %2954 = vmatprep.subr.bf16.mxu0 0
        %2955 = vmatpush1.bf16.msra.mxu0 0
        %2956 = vmatprep.subr.bf16.mxu0 0
        %2957 = vmatpush1.bf16.msra.mxu0 0
        %2958 = vmatprep.subr.bf16.mxu0 0
        %2959 = vmatpush1.bf16.msra.mxu0 0
        %2960 = vmatprep.subr.bf16.mxu0 0
        %2961 = vmatpush1.bf16.msra.mxu0 0
        %2962 = vmatprep.subr.bf16.mxu0 0
        %2963 = vmatpush1.bf16.msra.mxu0 0
        %2964 = vmatprep.subr.bf16.mxu0 0
        %2965 = vmatpush1.bf16.msra.mxu0 0
        %2966 = vmatprep.subr.bf16.mxu0 0
        %2967 = vmatpush1.bf16.msra.mxu0 0
        %2968 = vmatprep.subr.bf16.mxu0 0
        %2969 = vmatpush1.bf16.msra.mxu0 0
        %2970 = vmatprep.subr.bf16.mxu0 0
        %2971 = vmatpush1.bf16.msra.mxu0 0
        %2972 = vmatprep.mubr.bf16.mxu0 0
        %2973 = vmatmul.mubr.bf16.gmra.mrb[0].mxu0 %v2893
        %v2974 = vpop.f32.mrb[0].mxu0
        %v2975 = vadd.f32 0.0, %v2974
        %v2976 = vpop.f32.mrb[0].mxu0
        %v2977 = vpop.f32.mrb[0].mxu0
        %v2978 = vadd.f32 0.0, %v2977
        %v2979 = vpop.f32.mrb[0].mxu0
        %2980 = vmatprep.mubr.bf16.mxu0 0
        %2981 = vmatmul.mubr.bf16.gmra.mrb[0].mxu0 %v2896
        %v2982 = vpop.f32.mrb[0].mxu0
        %v2983 = vadd.f32 0.0, %v2982
        %v2984 = vpop.f32.mrb[0].mxu0
        %v2985 = vpop.f32.mrb[0].mxu0
        %v2986 = vadd.f32 0.0, %v2985
        %v2987 = vpop.f32.mrb[0].mxu0
        %2988 = vmatprep.mubr.bf16.mxu0 0
        %2989 = vmatmul.mubr.bf16.gmra.mrb[0].mxu0 %v2899
        %v2990 = vpop.f32.mrb[0].mxu0
        %v2991 = vadd.f32 0.0, %v2990
        %v2992 = vpop.f32.mrb[0].mxu0
        %v2993 = vpop.f32.mrb[0].mxu0
        %v2994 = vadd.f32 0.0, %v2993
        %v2995 = vpop.f32.mrb[0].mxu0
        %2996 = vmatprep.mubr.bf16.mxu0 0
        %2997 = vmatmul.mubr.bf16.gmra.mrb[0].mxu0 %v2902
        %v2998 = vpop.f32.mrb[0].mxu0
        %v2999 = vadd.f32 0.0, %v2998
        %v3000 = vpop.f32.mrb[0].mxu0
        %v3001 = vpop.f32.mrb[0].mxu0
        %v3002 = vadd.f32 0.0, %v3001
        %v3003 = vpop.f32.mrb[0].mxu0
        %3004 = vmatprep.mubr.bf16.mxu0 0
        %3005 = vmatmul.mubr.bf16.gmra.mrb[0].mxu0 %v2905
        %v3006 = vpop.f32.mrb[0].mxu0
        %v3007 = vadd.f32 0.0, %v3006
        %v3008 = vpop.f32.mrb[0].mxu0
        %v3009 = vpop.f32.mrb[0].mxu0
        %v3010 = vadd.f32 0.0, %v3009
        %v3011 = vpop.f32.mrb[0].mxu0
        %3012 = vmatprep.mubr.bf16.mxu0 0
        %3013 = vmatmul.mubr.bf16.gmra.mrb[0].mxu0 %v2908
        %v3014 = vpop.f32.mrb[0].mxu0
        %v3015 = vadd.f32 0.0, %v3014
        %v3016 = vpop.f32.mrb[0].mxu0
        %v3017 = vpop.f32.mrb[0].mxu0
        %v3018 = vadd.f32 0.0, %v3017
        %v3019 = vpop.f32.mrb[0].mxu0
        %3020 = vmatprep.mubr.bf16.mxu0 0
        %3021 = vmatmul.mubr.bf16.gmra.mrb[0].mxu0 %v2911
        %v3022 = vpop.f32.mrb[0].mxu0
        %v3023 = vadd.f32 0.0, %v3022
        %v3024 = vpop.f32.mrb[0].mxu0
        %v3025 = vpop.f32.mrb[0].mxu0
        %v3026 = vadd.f32 0.0, %v3025
        %v3027 = vpop.f32.mrb[0].mxu0
        %3028 = vmatprep.mubr.bf16.mxu0 0
        %3029 = vmatmul.mubr.bf16.gmra.mrb[0].mxu0 %v2914
        %v3030 = vpop.f32.mrb[0].mxu0
        %v3031 = vadd.f32 0.0, %v3030
        %v3032 = vpop.f32.mrb[0].mxu0
        %v3033 = vpop.f32.mrb[0].mxu0
        %v3034 = vadd.f32 0.0, %v3033
        %v3035 = vpop.f32.mrb[0].mxu0
        %3036 = vmatprep.mubr.bf16.mxu0 0
        %3037 = vmatmul.mubr.bf16.gmra.mrb[0].mxu0 %v2917
        %v3038 = vpop.f32.mrb[0].mxu0
        %v3039 = vadd.f32 0.0, %v3038
        %v3040 = vpop.f32.mrb[0].mxu0
        %v3041 = vpop.f32.mrb[0].mxu0
        %v3042 = vadd.f32 0.0, %v3041
        %v3043 = vpop.f32.mrb[0].mxu0
        %3044 = vmatprep.mubr.bf16.mxu0 0
        %3045 = vmatmul.mubr.bf16.gmra.mrb[0].mxu0 %v2920
        %v3046 = vpop.f32.mrb[0].mxu0
        %v3047 = vadd.f32 0.0, %v3046
        %v3048 = vpop.f32.mrb[0].mxu0
        %v3049 = vpop.f32.mrb[0].mxu0
        %v3050 = vadd.f32 0.0, %v3049
        %v3051 = vpop.f32.mrb[0].mxu0
        %3052 = vmatprep.mubr.bf16.mxu0 0
        %3053 = vmatmul.mubr.bf16.gmra.mrb[0].mxu0 %v2923
        %v3054 = vpop.f32.mrb[0].mxu0
        %v3055 = vadd.f32 0.0, %v3054
        %v3056 = vpop.f32.mrb[0].mxu0
        %v3057 = vpop.f32.mrb[0].mxu0
        %v3058 = vadd.f32 0.0, %v3057
        %v3059 = vpop.f32.mrb[0].mxu0
        %3060 = vmatprep.mubr.bf16.mxu0 0
        %3061 = vmatmul.mubr.bf16.gmra.mrb[0].mxu0 %v2926
        %v3062 = vpop.f32.mrb[0].mxu0
        %v3063 = vadd.f32 0.0, %v3062
        %v3064 = vpop.f32.mrb[0].mxu0
        %v3065 = vpop.f32.mrb[0].mxu0
        %v3066 = vadd.f32 0.0, %v3065
        %v3067 = vpop.f32.mrb[0].mxu0
        %3068 = vmatprep.mubr.bf16.mxu0 0
        %3069 = vmatmul.mubr.bf16.gmra.mrb[0].mxu0 %v2929
        %v3070 = vpop.f32.mrb[0].mxu0
        %v3071 = vadd.f32 0.0, %v3070
        %v3072 = vpop.f32.mrb[0].mxu0
        %v3073 = vpop.f32.mrb[0].mxu0
        %v3074 = vadd.f32 0.0, %v3073
        %v3075 = vpop.f32.mrb[0].mxu0
        %3076 = vmatprep.mubr.bf16.mxu0 0
        %3077 = vmatmul.mubr.bf16.gmra.mrb[0].mxu0 %v2932
        %v3078 = vpop.f32.mrb[0].mxu0
        %v3079 = vadd.f32 0.0, %v3078
        %v3080 = vpop.f32.mrb[0].mxu0
        %v3081 = vpop.f32.mrb[0].mxu0
        %v3082 = vadd.f32 0.0, %v3081
        %v3083 = vpop.f32.mrb[0].mxu0
        %3084 = vmatprep.mubr.bf16.mxu0 0
        %3085 = vmatmul.mubr.bf16.gmra.mrb[0].mxu0 %v2935
        %v3086 = vpop.f32.mrb[0].mxu0
        %v3087 = vadd.f32 0.0, %v3086
        %v3088 = vpop.f32.mrb[0].mxu0
        %v3089 = vpop.f32.mrb[0].mxu0
        %v3090 = vadd.f32 0.0, %v3089
        %v3091 = vpop.f32.mrb[0].mxu0
        %3092 = vmatprep.mubr.bf16.mxu0 0
        %3093 = vmatmul.mubr.bf16.gmra.mrb[0].mxu0 %v2938
        %v3094 = vpop.f32.mrb[0].mxu0
        %v3095 = vadd.f32 0.0, %v3094
        %v3096 = vpop.f32.mrb[0].mxu0
        %v3097 = vpop.f32.mrb[0].mxu0
        %v3098 = vadd.f32 0.0, %v3097
        %v3099 = vpop.f32.mrb[0].mxu0
        %3100 = vdwg.mxu0
        %v3101 = vadd.f32 %v2778, %v2975
        %v3102 = vadd.f32 %v2779, %v2978
        %v3103 = vadd.f32 %v2780, %v2983
        %v3104 = vadd.f32 %v2781, %v2986
        %v3105 = vadd.f32 %v2782, %v2991
        %v3106 = vadd.f32 %v2783, %v2994
        %v3107 = vadd.f32 %v2784, %v2999
        %v3108 = vadd.f32 %v2785, %v3002
        %v3109 = vadd.f32 %v2786, %v3007
        %v3110 = vadd.f32 %v2787, %v3010
        %v3111 = vadd.f32 %v2788, %v3015
        %v3112 = vadd.f32 %v2789, %v3018
        %v3113 = vadd.f32 %v2790, %v3023
        %v3114 = vadd.f32 %v2791, %v3026
        %v3115 = vadd.f32 %v2792, %v3031
        %v3116 = vadd.f32 %v2793, %v3034
        %v3117 = vadd.f32 %v2794, %v3039
        %v3118 = vadd.f32 %v2795, %v3042
        %v3119 = vadd.f32 %v2796, %v3047
        %v3120 = vadd.f32 %v2797, %v3050
        %v3121 = vadd.f32 %v2798, %v3055
        %v3122 = vadd.f32 %v2799, %v3058
        %v3123 = vadd.f32 %v2800, %v3063
        %v3124 = vadd.f32 %v2801, %v3066
        %v3125 = vadd.f32 %v2802, %v3071
        %v3126 = vadd.f32 %v2803, %v3074
        %v3127 = vadd.f32 %v2804, %v3079
        %v3128 = vadd.f32 %v2805, %v3082
        %v3129 = vadd.f32 %v2806, %v3087
        %v3130 = vadd.f32 %v2807, %v3090
        %v3131 = vadd.f32 %v2808, %v3095
        %v3132 = vadd.f32 %v2809, %v3098
        %v3133 = vld [vmem:[%s2810 + $0x1] sm:$0xff]
        %v3134 = vld [vmem:[%s2810 + $0x9] sm:$0xff]
        %v3135 = vld [vmem:[%s2810 + $0x19] sm:$0xff]
        %v3136 = vld [vmem:[%s2810 + $0x21] sm:$0xff]
        %v3137 = vld [vmem:[%s2810 + $0x31] sm:$0xff]
        %v3138 = vld [vmem:[%s2810 + $0x39] sm:$0xff]
        %v3139 = vld [vmem:[%s2810 + $0x49] sm:$0xff]
        %v3140 = vld [vmem:[%s2810 + $0x51] sm:$0xff]
        %v3141 = vld [vmem:[%s2810 + $0x61] sm:$0xff]
        %v3142 = vld [vmem:[%s2810 + $0x69] sm:$0xff]
        %v3143 = vld [vmem:[%s2810 + $0x79] sm:$0xff]
        %v3144 = vld [vmem:[%s2810 + $0x81] sm:$0xff]
        %v3145 = vld [vmem:[%s2810 + $0x91] sm:$0xff]
        %v3146 = vld [vmem:[%s2810 + $0x99] sm:$0xff]
        %v3147 = vld [vmem:[%s2810 + $0xa9] sm:$0xff]
        %v3148 = vld [vmem:[%s2810 + $0xb1] sm:$0xff]
        %v3149 = vld [vmem:[%s2810 + $0xc1] sm:$0xff]
        %v3150 = vld [vmem:[%s2810 + $0xc9] sm:$0xff]
        %v3151 = vld [vmem:[%s2810 + $0xd9] sm:$0xff]
        %v3152 = vld [vmem:[%s2810 + $0xe1] sm:$0xff]
        %v3153 = vld [vmem:[%s2810 + $0xf1] sm:$0xff]
        %v3154 = vld [vmem:[%s2810 + $0xf9] sm:$0xff]
        %v3155 = vld [vmem:[%s2810 + $0x109] sm:$0xff]
        %v3156 = vld [vmem:[%s2810 + $0x111] sm:$0xff]
        %v3157 = vld [vmem:[%s2810 + $0x121] sm:$0xff]
        %v3158 = vld [vmem:[%s2810 + $0x129] sm:$0xff]
        %v3159 = vld [vmem:[%s2810 + $0x139] sm:$0xff]
        %v3160 = vld [vmem:[%s2810 + $0x141] sm:$0xff]
        %v3161 = vld [vmem:[%s2810 + $0x151] sm:$0xff]
        %v3162 = vld [vmem:[%s2810 + $0x159] sm:$0xff]
        %v3163 = vld [vmem:[%s2810 + $0x169] sm:$0xff]
        %v3164 = vld [vmem:[%s2810 + $0x171] sm:$0xff]
        %v3165 = vpack.c.bf16 %v3134, %v3133
        %v3166 = vpack.c.bf16 %v3136, %v3135
        %v3167 = vpack.c.bf16 %v3138, %v3137
        %v3168 = vpack.c.bf16 %v3140, %v3139
        %v3169 = vpack.c.bf16 %v3142, %v3141
        %v3170 = vpack.c.bf16 %v3144, %v3143
        %v3171 = vpack.c.bf16 %v3146, %v3145
        %v3172 = vpack.c.bf16 %v3148, %v3147
        %v3173 = vpack.c.bf16 %v3150, %v3149
        %v3174 = vpack.c.bf16 %v3152, %v3151
        %v3175 = vpack.c.bf16 %v3154, %v3153
        %v3176 = vpack.c.bf16 %v3156, %v3155
        %v3177 = vpack.c.bf16 %v3158, %v3157
        %v3178 = vpack.c.bf16 %v3160, %v3159
        %v3179 = vpack.c.bf16 %v3162, %v3161
        %v3180 = vpack.c.bf16 %v3164, %v3163
        %s3181 = scalar_lea.vmem %s2, 224
        %v3182 = vld [vmem:[%s3181] sm:$0xf]
        %v3183 = vld [vmem:[%s3181 + $0x4] sm:$0xf]
        %v3184 = vld [vmem:[%s3181 + $0x8] sm:$0xf]
        %v3185 = vld [vmem:[%s3181 + $0xc] sm:$0xf]
        %v3186 = vld [vmem:[%s3181 + $0x10] sm:$0xf]
        %v3187 = vld [vmem:[%s3181 + $0x14] sm:$0xf]
        %v3188 = vld [vmem:[%s3181 + $0x18] sm:$0xf]
        %v3189 = vld [vmem:[%s3181 + $0x1c] sm:$0xf]
        %v3198 = vunpack.c.l.b16 %v3182
        %v3199 = vunpack.c.l.b16 %v3183
        %v3200 = vunpack.c.l.b16 %v3184
        %v3201 = vunpack.c.l.b16 %v3185
        %v3202 = vunpack.c.l.b16 %v3186
        %v3203 = vunpack.c.l.b16 %v3187
        %v3204 = vunpack.c.l.b16 %v3188
        %v3205 = vunpack.c.l.b16 %v3189
        %v3206 = vpack.c.b16 %v3199, %v3198
        %v3207 = vpack.c.b16 %v3201, %v3200
        %v3208 = vpack.c.b16 %v3203, %v3202
        %v3209 = vpack.c.b16 %v3205, %v3204
        %v3215 = vsel %vm854, %v3165, 0
        %v3218 = vsel %vm854, %v3166, 0
        %v3221 = vsel %vm854, %v3167, 0
        %v3224 = vsel %vm854, %v3168, 0
        %v3227 = vsel %vm854, %v3169, 0
        %v3230 = vsel %vm854, %v3170, 0
        %v3233 = vsel %vm854, %v3171, 0
        %v3236 = vsel %vm854, %v3172, 0
        %v3239 = vsel %vm854, %v3173, 0
        %v3242 = vsel %vm854, %v3174, 0
        %v3245 = vsel %vm854, %v3175, 0
        %v3248 = vsel %vm854, %v3176, 0
        %v3251 = vsel %vm854, %v3177, 0
        %v3254 = vsel %vm854, %v3178, 0
        %v3257 = vsel %vm854, %v3179, 0
        %v3260 = vsel %vm854, %v3180, 0
        %3262 = vmatprep.subr.bf16.mxu0 0
        %3263 = vmatpush1.bf16.msra.mxu0 %v3206
        %3264 = vmatprep.subr.bf16.mxu0 0
        %3265 = vmatpush1.bf16.msra.mxu0 %v3207
        %3266 = vmatprep.subr.bf16.mxu0 0
        %3267 = vmatpush1.bf16.msra.mxu0 %v3208
        %3268 = vmatprep.subr.bf16.mxu0 0
        %3269 = vmatpush1.bf16.msra.mxu0 %v3209
        %3270 = vmatprep.subr.bf16.mxu0 0
        %3271 = vmatpush1.bf16.msra.mxu0 0
        %3272 = vmatprep.subr.bf16.mxu0 0
        %3273 = vmatpush1.bf16.msra.mxu0 0
        %3274 = vmatprep.subr.bf16.mxu0 0
        %3275 = vmatpush1.bf16.msra.mxu0 0
        %3276 = vmatprep.subr.bf16.mxu0 0
        %3277 = vmatpush1.bf16.msra.mxu0 0
        %3278 = vmatprep.subr.bf16.mxu0 0
        %3279 = vmatpush1.bf16.msra.mxu0 0
        %3280 = vmatprep.subr.bf16.mxu0 0
        %3281 = vmatpush1.bf16.msra.mxu0 0
        %3282 = vmatprep.subr.bf16.mxu0 0
        %3283 = vmatpush1.bf16.msra.mxu0 0
        %3284 = vmatprep.subr.bf16.mxu0 0
        %3285 = vmatpush1.bf16.msra.mxu0 0
        %3286 = vmatprep.subr.bf16.mxu0 0
        %3287 = vmatpush1.bf16.msra.mxu0 0
        %3288 = vmatprep.subr.bf16.mxu0 0
        %3289 = vmatpush1.bf16.msra.mxu0 0
        %3290 = vmatprep.subr.bf16.mxu0 0
        %3291 = vmatpush1.bf16.msra.mxu0 0
        %3292 = vmatprep.subr.bf16.mxu0 0
        %3293 = vmatpush1.bf16.msra.mxu0 0
        %3294 = vmatprep.mubr.bf16.mxu0 0
        %3295 = vmatmul.mubr.bf16.gmra.mrb[0].mxu0 %v3215
        %v3296 = vpop.f32.mrb[0].mxu0
        %v3297 = vadd.f32 0.0, %v3296
        %v3298 = vpop.f32.mrb[0].mxu0
        %v3299 = vpop.f32.mrb[0].mxu0
        %v3300 = vadd.f32 0.0, %v3299
        %v3301 = vpop.f32.mrb[0].mxu0
        %3302 = vmatprep.mubr.bf16.mxu0 0
        %3303 = vmatmul.mubr.bf16.gmra.mrb[0].mxu0 %v3218
        %v3304 = vpop.f32.mrb[0].mxu0
        %v3305 = vadd.f32 0.0, %v3304
        %v3306 = vpop.f32.mrb[0].mxu0
        %v3307 = vpop.f32.mrb[0].mxu0
        %v3308 = vadd.f32 0.0, %v3307
        %v3309 = vpop.f32.mrb[0].mxu0
        %3310 = vmatprep.mubr.bf16.mxu0 0
        %3311 = vmatmul.mubr.bf16.gmra.mrb[0].mxu0 %v3221
        %v3312 = vpop.f32.mrb[0].mxu0
        %v3313 = vadd.f32 0.0, %v3312
        %v3314 = vpop.f32.mrb[0].mxu0
        %v3315 = vpop.f32.mrb[0].mxu0
        %v3316 = vadd.f32 0.0, %v3315
        %v3317 = vpop.f32.mrb[0].mxu0
        %3318 = vmatprep.mubr.bf16.mxu0 0
        %3319 = vmatmul.mubr.bf16.gmra.mrb[0].mxu0 %v3224
        %v3320 = vpop.f32.mrb[0].mxu0
        %v3321 = vadd.f32 0.0, %v3320
        %v3322 = vpop.f32.mrb[0].mxu0
        %v3323 = vpop.f32.mrb[0].mxu0
        %v3324 = vadd.f32 0.0, %v3323
        %v3325 = vpop.f32.mrb[0].mxu0
        %3326 = vmatprep.mubr.bf16.mxu0 0
        %3327 = vmatmul.mubr.bf16.gmra.mrb[0].mxu0 %v3227
        %v3328 = vpop.f32.mrb[0].mxu0
        %v3329 = vadd.f32 0.0, %v3328
        %v3330 = vpop.f32.mrb[0].mxu0
        %v3331 = vpop.f32.mrb[0].mxu0
        %v3332 = vadd.f32 0.0, %v3331
        %v3333 = vpop.f32.mrb[0].mxu0
        %3334 = vmatprep.mubr.bf16.mxu0 0
        %3335 = vmatmul.mubr.bf16.gmra.mrb[0].mxu0 %v3230
        %v3336 = vpop.f32.mrb[0].mxu0
        %v3337 = vadd.f32 0.0, %v3336
        %v3338 = vpop.f32.mrb[0].mxu0
        %v3339 = vpop.f32.mrb[0].mxu0
        %v3340 = vadd.f32 0.0, %v3339
        %v3341 = vpop.f32.mrb[0].mxu0
        %3342 = vmatprep.mubr.bf16.mxu0 0
        %3343 = vmatmul.mubr.bf16.gmra.mrb[0].mxu0 %v3233
        %v3344 = vpop.f32.mrb[0].mxu0
        %v3345 = vadd.f32 0.0, %v3344
        %v3346 = vpop.f32.mrb[0].mxu0
        %v3347 = vpop.f32.mrb[0].mxu0
        %v3348 = vadd.f32 0.0, %v3347
        %v3349 = vpop.f32.mrb[0].mxu0
        %3350 = vmatprep.mubr.bf16.mxu0 0
        %3351 = vmatmul.mubr.bf16.gmra.mrb[0].mxu0 %v3236
        %v3352 = vpop.f32.mrb[0].mxu0
        %v3353 = vadd.f32 0.0, %v3352
        %v3354 = vpop.f32.mrb[0].mxu0
        %v3355 = vpop.f32.mrb[0].mxu0
        %v3356 = vadd.f32 0.0, %v3355
        %v3357 = vpop.f32.mrb[0].mxu0
        %3358 = vmatprep.mubr.bf16.mxu0 0
        %3359 = vmatmul.mubr.bf16.gmra.mrb[0].mxu0 %v3239
        %v3360 = vpop.f32.mrb[0].mxu0
        %v3361 = vadd.f32 0.0, %v3360
        %v3362 = vpop.f32.mrb[0].mxu0
        %v3363 = vpop.f32.mrb[0].mxu0
        %v3364 = vadd.f32 0.0, %v3363
        %v3365 = vpop.f32.mrb[0].mxu0
        %3366 = vmatprep.mubr.bf16.mxu0 0
        %3367 = vmatmul.mubr.bf16.gmra.mrb[0].mxu0 %v3242
        %v3368 = vpop.f32.mrb[0].mxu0
        %v3369 = vadd.f32 0.0, %v3368
        %v3370 = vpop.f32.mrb[0].mxu0
        %v3371 = vpop.f32.mrb[0].mxu0
        %v3372 = vadd.f32 0.0, %v3371
        %v3373 = vpop.f32.mrb[0].mxu0
        %3374 = vmatprep.mubr.bf16.mxu0 0
        %3375 = vmatmul.mubr.bf16.gmra.mrb[0].mxu0 %v3245
        %v3376 = vpop.f32.mrb[0].mxu0
        %v3377 = vadd.f32 0.0, %v3376
        %v3378 = vpop.f32.mrb[0].mxu0
        %v3379 = vpop.f32.mrb[0].mxu0
        %v3380 = vadd.f32 0.0, %v3379
        %v3381 = vpop.f32.mrb[0].mxu0
        %3382 = vmatprep.mubr.bf16.mxu0 0
        %3383 = vmatmul.mubr.bf16.gmra.mrb[0].mxu0 %v3248
        %v3384 = vpop.f32.mrb[0].mxu0
        %v3385 = vadd.f32 0.0, %v3384
        %v3386 = vpop.f32.mrb[0].mxu0
        %v3387 = vpop.f32.mrb[0].mxu0
        %v3388 = vadd.f32 0.0, %v3387
        %v3389 = vpop.f32.mrb[0].mxu0
        %3390 = vmatprep.mubr.bf16.mxu0 0
        %3391 = vmatmul.mubr.bf16.gmra.mrb[0].mxu0 %v3251
        %v3392 = vpop.f32.mrb[0].mxu0
        %v3393 = vadd.f32 0.0, %v3392
        %v3394 = vpop.f32.mrb[0].mxu0
        %v3395 = vpop.f32.mrb[0].mxu0
        %v3396 = vadd.f32 0.0, %v3395
        %v3397 = vpop.f32.mrb[0].mxu0
        %3398 = vmatprep.mubr.bf16.mxu0 0
        %3399 = vmatmul.mubr.bf16.gmra.mrb[0].mxu0 %v3254
        %v3400 = vpop.f32.mrb[0].mxu0
        %v3401 = vadd.f32 0.0, %v3400
        %v3402 = vpop.f32.mrb[0].mxu0
        %v3403 = vpop.f32.mrb[0].mxu0
        %v3404 = vadd.f32 0.0, %v3403
        %v3405 = vpop.f32.mrb[0].mxu0
        %3406 = vmatprep.mubr.bf16.mxu0 0
        %3407 = vmatmul.mubr.bf16.gmra.mrb[0].mxu0 %v3257
        %v3408 = vpop.f32.mrb[0].mxu0
        %v3409 = vadd.f32 0.0, %v3408
        %v3410 = vpop.f32.mrb[0].mxu0
        %v3411 = vpop.f32.mrb[0].mxu0
        %v3412 = vadd.f32 0.0, %v3411
        %v3413 = vpop.f32.mrb[0].mxu0
        %3414 = vmatprep.mubr.bf16.mxu0 0
        %3415 = vmatmul.mubr.bf16.gmra.mrb[0].mxu0 %v3260
        %v3416 = vpop.f32.mrb[0].mxu0
        %v3417 = vadd.f32 0.0, %v3416
        %v3418 = vpop.f32.mrb[0].mxu0
        %v3419 = vpop.f32.mrb[0].mxu0
        %v3420 = vadd.f32 0.0, %v3419
        %v3421 = vpop.f32.mrb[0].mxu0
        %3422 = vdwg.mxu0
        %v3423 = vadd.f32 %v3101, %v3297
        %v3424 = vadd.f32 %v3102, %v3300
        %v3425 = vadd.f32 %v3103, %v3305
        %v3426 = vadd.f32 %v3104, %v3308
        %v3427 = vadd.f32 %v3105, %v3313
        %v3428 = vadd.f32 %v3106, %v3316
        %v3429 = vadd.f32 %v3107, %v3321
        %v3430 = vadd.f32 %v3108, %v3324
        %v3431 = vadd.f32 %v3109, %v3329
        %v3432 = vadd.f32 %v3110, %v3332
        %v3433 = vadd.f32 %v3111, %v3337
        %v3434 = vadd.f32 %v3112, %v3340
        %v3435 = vadd.f32 %v3113, %v3345
        %v3436 = vadd.f32 %v3114, %v3348
        %v3437 = vadd.f32 %v3115, %v3353
        %v3438 = vadd.f32 %v3116, %v3356
        %v3439 = vadd.f32 %v3117, %v3361
        %v3440 = vadd.f32 %v3118, %v3364
        %v3441 = vadd.f32 %v3119, %v3369
        %v3442 = vadd.f32 %v3120, %v3372
        %v3443 = vadd.f32 %v3121, %v3377
        %v3444 = vadd.f32 %v3122, %v3380
        %v3445 = vadd.f32 %v3123, %v3385
        %v3446 = vadd.f32 %v3124, %v3388
        %v3447 = vadd.f32 %v3125, %v3393
        %v3448 = vadd.f32 %v3126, %v3396
        %v3449 = vadd.f32 %v3127, %v3401
        %v3450 = vadd.f32 %v3128, %v3404
        %v3451 = vadd.f32 %v3129, %v3409
        %v3452 = vadd.f32 %v3130, %v3412
        %v3453 = vadd.f32 %v3131, %v3417
        %v3454 = vadd.f32 %v3132, %v3420
        %v3455 = vld [vmem:[%s2810 + $0x2] sm:$0xff]
        %v3456 = vld [vmem:[%s2810 + $0xa] sm:$0xff]
        %v3457 = vld [vmem:[%s2810 + $0x1a] sm:$0xff]
        %v3458 = vld [vmem:[%s2810 + $0x22] sm:$0xff]
        %v3459 = vld [vmem:[%s2810 + $0x32] sm:$0xff]
        %v3460 = vld [vmem:[%s2810 + $0x3a] sm:$0xff]
        %v3461 = vld [vmem:[%s2810 + $0x4a] sm:$0xff]
        %v3462 = vld [vmem:[%s2810 + $0x52] sm:$0xff]
        %v3463 = vld [vmem:[%s2810 + $0x62] sm:$0xff]
        %v3464 = vld [vmem:[%s2810 + $0x6a] sm:$0xff]
        %v3465 = vld [vmem:[%s2810 + $0x7a] sm:$0xff]
        %v3466 = vld [vmem:[%s2810 + $0x82] sm:$0xff]
        %v3467 = vld [vmem:[%s2810 + $0x92] sm:$0xff]
        %v3468 = vld [vmem:[%s2810 + $0x9a] sm:$0xff]
        %v3469 = vld [vmem:[%s2810 + $0xaa] sm:$0xff]
        %v3470 = vld [vmem:[%s2810 + $0xb2] sm:$0xff]
        %v3471 = vld [vmem:[%s2810 + $0xc2] sm:$0xff]
        %v3472 = vld [vmem:[%s2810 + $0xca] sm:$0xff]
        %v3473 = vld [vmem:[%s2810 + $0xda] sm:$0xff]
        %v3474 = vld [vmem:[%s2810 + $0xe2] sm:$0xff]
        %v3475 = vld [vmem:[%s2810 + $0xf2] sm:$0xff]
        %v3476 = vld [vmem:[%s2810 + $0xfa] sm:$0xff]
        %v3477 = vld [vmem:[%s2810 + $0x10a] sm:$0xff]
        %v3478 = vld [vmem:[%s2810 + $0x112] sm:$0xff]
        %v3479 = vld [vmem:[%s2810 + $0x122] sm:$0xff]
        %v3480 = vld [vmem:[%s2810 + $0x12a] sm:$0xff]
        %v3481 = vld [vmem:[%s2810 + $0x13a] sm:$0xff]
        %v3482 = vld [vmem:[%s2810 + $0x142] sm:$0xff]
        %v3483 = vld [vmem:[%s2810 + $0x152] sm:$0xff]
        %v3484 = vld [vmem:[%s2810 + $0x15a] sm:$0xff]
        %v3485 = vld [vmem:[%s2810 + $0x16a] sm:$0xff]
        %v3486 = vld [vmem:[%s2810 + $0x172] sm:$0xff]
        %v3487 = vpack.c.bf16 %v3456, %v3455
        %v3488 = vpack.c.bf16 %v3458, %v3457
        %v3489 = vpack.c.bf16 %v3460, %v3459
        %v3490 = vpack.c.bf16 %v3462, %v3461
        %v3491 = vpack.c.bf16 %v3464, %v3463
        %v3492 = vpack.c.bf16 %v3466, %v3465
        %v3493 = vpack.c.bf16 %v3468, %v3467
        %v3494 = vpack.c.bf16 %v3470, %v3469
        %v3495 = vpack.c.bf16 %v3472, %v3471
        %v3496 = vpack.c.bf16 %v3474, %v3473
        %v3497 = vpack.c.bf16 %v3476, %v3475
        %v3498 = vpack.c.bf16 %v3478, %v3477
        %v3499 = vpack.c.bf16 %v3480, %v3479
        %v3500 = vpack.c.bf16 %v3482, %v3481
        %v3501 = vpack.c.bf16 %v3484, %v3483
        %v3502 = vpack.c.bf16 %v3486, %v3485
        %s3503 = scalar_lea.vmem %s2, 256
        %v3504 = vld [vmem:[%s3503] sm:$0xf]
        %v3505 = vld [vmem:[%s3503 + $0x4] sm:$0xf]
        %v3506 = vld [vmem:[%s3503 + $0x8] sm:$0xf]
        %v3507 = vld [vmem:[%s3503 + $0xc] sm:$0xf]
        %v3508 = vld [vmem:[%s3503 + $0x10] sm:$0xf]
        %v3509 = vld [vmem:[%s3503 + $0x14] sm:$0xf]
        %v3510 = vld [vmem:[%s3503 + $0x18] sm:$0xf]
        %v3511 = vld [vmem:[%s3503 + $0x1c] sm:$0xf]
        %v3520 = vunpack.c.l.b16 %v3504
        %v3521 = vunpack.c.l.b16 %v3505
        %v3522 = vunpack.c.l.b16 %v3506
        %v3523 = vunpack.c.l.b16 %v3507
        %v3524 = vunpack.c.l.b16 %v3508
        %v3525 = vunpack.c.l.b16 %v3509
        %v3526 = vunpack.c.l.b16 %v3510
        %v3527 = vunpack.c.l.b16 %v3511
        %v3528 = vpack.c.b16 %v3521, %v3520
        %v3529 = vpack.c.b16 %v3523, %v3522
        %v3530 = vpack.c.b16 %v3525, %v3524
        %v3531 = vpack.c.b16 %v3527, %v3526
        %v3537 = vsel %vm854, %v3487, 0
        %v3540 = vsel %vm854, %v3488, 0
        %v3543 = vsel %vm854, %v3489, 0
        %v3546 = vsel %vm854, %v3490, 0
        %v3549 = vsel %vm854, %v3491, 0
        %v3552 = vsel %vm854, %v3492, 0
        %v3555 = vsel %vm854, %v3493, 0
        %v3558 = vsel %vm854, %v3494, 0
        %v3561 = vsel %vm854, %v3495, 0
        %v3564 = vsel %vm854, %v3496, 0
        %v3567 = vsel %vm854, %v3497, 0
        %v3570 = vsel %vm854, %v3498, 0
        %v3573 = vsel %vm854, %v3499, 0
        %v3576 = vsel %vm854, %v3500, 0
        %v3579 = vsel %vm854, %v3501, 0
        %v3582 = vsel %vm854, %v3502, 0
        %3584 = vmatprep.subr.bf16.mxu0 0
        %3585 = vmatpush1.bf16.msra.mxu0 %v3528
        %3586 = vmatprep.subr.bf16.mxu0 0
        %3587 = vmatpush1.bf16.msra.mxu0 %v3529
        %3588 = vmatprep.subr.bf16.mxu0 0
        %3589 = vmatpush1.bf16.msra.mxu0 %v3530
        %3590 = vmatprep.subr.bf16.mxu0 0
        %3591 = vmatpush1.bf16.msra.mxu0 %v3531
        %3592 = vmatprep.subr.bf16.mxu0 0
        %3593 = vmatpush1.bf16.msra.mxu0 0
        %3594 = vmatprep.subr.bf16.mxu0 0
        %3595 = vmatpush1.bf16.msra.mxu0 0
        %3596 = vmatprep.subr.bf16.mxu0 0
        %3597 = vmatpush1.bf16.msra.mxu0 0
        %3598 = vmatprep.subr.bf16.mxu0 0
        %3599 = vmatpush1.bf16.msra.mxu0 0
        %3600 = vmatprep.subr.bf16.mxu0 0
        %3601 = vmatpush1.bf16.msra.mxu0 0
        %3602 = vmatprep.subr.bf16.mxu0 0
        %3603 = vmatpush1.bf16.msra.mxu0 0
        %3604 = vmatprep.subr.bf16.mxu0 0
        %3605 = vmatpush1.bf16.msra.mxu0 0
        %3606 = vmatprep.subr.bf16.mxu0 0
        %3607 = vmatpush1.bf16.msra.mxu0 0
        %3608 = vmatprep.subr.bf16.mxu0 0
        %3609 = vmatpush1.bf16.msra.mxu0 0
        %3610 = vmatprep.subr.bf16.mxu0 0
        %3611 = vmatpush1.bf16.msra.mxu0 0
        %3612 = vmatprep.subr.bf16.mxu0 0
        %3613 = vmatpush1.bf16.msra.mxu0 0
        %3614 = vmatprep.subr.bf16.mxu0 0
        %3615 = vmatpush1.bf16.msra.mxu0 0
        %3616 = vmatprep.mubr.bf16.mxu0 0
        %3617 = vmatmul.mubr.bf16.gmra.mrb[0].mxu0 %v3537
        %v3618 = vpop.f32.mrb[0].mxu0
        %v3619 = vadd.f32 0.0, %v3618
        %v3620 = vpop.f32.mrb[0].mxu0
        %v3621 = vpop.f32.mrb[0].mxu0
        %v3622 = vadd.f32 0.0, %v3621
        %v3623 = vpop.f32.mrb[0].mxu0
        %3624 = vmatprep.mubr.bf16.mxu0 0
        %3625 = vmatmul.mubr.bf16.gmra.mrb[0].mxu0 %v3540
        %v3626 = vpop.f32.mrb[0].mxu0
        %v3627 = vadd.f32 0.0, %v3626
        %v3628 = vpop.f32.mrb[0].mxu0
        %v3629 = vpop.f32.mrb[0].mxu0
        %v3630 = vadd.f32 0.0, %v3629
        %v3631 = vpop.f32.mrb[0].mxu0
        %3632 = vmatprep.mubr.bf16.mxu0 0
        %3633 = vmatmul.mubr.bf16.gmra.mrb[0].mxu0 %v3543
        %v3634 = vpop.f32.mrb[0].mxu0
        %v3635 = vadd.f32 0.0, %v3634
        %v3636 = vpop.f32.mrb[0].mxu0
        %v3637 = vpop.f32.mrb[0].mxu0
        %v3638 = vadd.f32 0.0, %v3637
        %v3639 = vpop.f32.mrb[0].mxu0
        %3640 = vmatprep.mubr.bf16.mxu0 0
        %3641 = vmatmul.mubr.bf16.gmra.mrb[0].mxu0 %v3546
        %v3642 = vpop.f32.mrb[0].mxu0
        %v3643 = vadd.f32 0.0, %v3642
        %v3644 = vpop.f32.mrb[0].mxu0
        %v3645 = vpop.f32.mrb[0].mxu0
        %v3646 = vadd.f32 0.0, %v3645
        %v3647 = vpop.f32.mrb[0].mxu0
        %3648 = vmatprep.mubr.bf16.mxu0 0
        %3649 = vmatmul.mubr.bf16.gmra.mrb[0].mxu0 %v3549
        %v3650 = vpop.f32.mrb[0].mxu0
        %v3651 = vadd.f32 0.0, %v3650
        %v3652 = vpop.f32.mrb[0].mxu0
        %v3653 = vpop.f32.mrb[0].mxu0
        %v3654 = vadd.f32 0.0, %v3653
        %v3655 = vpop.f32.mrb[0].mxu0
        %3656 = vmatprep.mubr.bf16.mxu0 0
        %3657 = vmatmul.mubr.bf16.gmra.mrb[0].mxu0 %v3552
        %v3658 = vpop.f32.mrb[0].mxu0
        %v3659 = vadd.f32 0.0, %v3658
        %v3660 = vpop.f32.mrb[0].mxu0
        %v3661 = vpop.f32.mrb[0].mxu0
        %v3662 = vadd.f32 0.0, %v3661
        %v3663 = vpop.f32.mrb[0].mxu0
        %3664 = vmatprep.mubr.bf16.mxu0 0
        %3665 = vmatmul.mubr.bf16.gmra.mrb[0].mxu0 %v3555
        %v3666 = vpop.f32.mrb[0].mxu0
        %v3667 = vadd.f32 0.0, %v3666
        %v3668 = vpop.f32.mrb[0].mxu0
        %v3669 = vpop.f32.mrb[0].mxu0
        %v3670 = vadd.f32 0.0, %v3669
        %v3671 = vpop.f32.mrb[0].mxu0
        %3672 = vmatprep.mubr.bf16.mxu0 0
        %3673 = vmatmul.mubr.bf16.gmra.mrb[0].mxu0 %v3558
        %v3674 = vpop.f32.mrb[0].mxu0
        %v3675 = vadd.f32 0.0, %v3674
        %v3676 = vpop.f32.mrb[0].mxu0
        %v3677 = vpop.f32.mrb[0].mxu0
        %v3678 = vadd.f32 0.0, %v3677
        %v3679 = vpop.f32.mrb[0].mxu0
        %3680 = vmatprep.mubr.bf16.mxu0 0
        %3681 = vmatmul.mubr.bf16.gmra.mrb[0].mxu0 %v3561
        %v3682 = vpop.f32.mrb[0].mxu0
        %v3683 = vadd.f32 0.0, %v3682
        %v3684 = vpop.f32.mrb[0].mxu0
        %v3685 = vpop.f32.mrb[0].mxu0
        %v3686 = vadd.f32 0.0, %v3685
        %v3687 = vpop.f32.mrb[0].mxu0
        %3688 = vmatprep.mubr.bf16.mxu0 0
        %3689 = vmatmul.mubr.bf16.gmra.mrb[0].mxu0 %v3564
        %v3690 = vpop.f32.mrb[0].mxu0
        %v3691 = vadd.f32 0.0, %v3690
        %v3692 = vpop.f32.mrb[0].mxu0
        %v3693 = vpop.f32.mrb[0].mxu0
        %v3694 = vadd.f32 0.0, %v3693
        %v3695 = vpop.f32.mrb[0].mxu0
        %3696 = vmatprep.mubr.bf16.mxu0 0
        %3697 = vmatmul.mubr.bf16.gmra.mrb[0].mxu0 %v3567
        %v3698 = vpop.f32.mrb[0].mxu0
        %v3699 = vadd.f32 0.0, %v3698
        %v3700 = vpop.f32.mrb[0].mxu0
        %v3701 = vpop.f32.mrb[0].mxu0
        %v3702 = vadd.f32 0.0, %v3701
        %v3703 = vpop.f32.mrb[0].mxu0
        %3704 = vmatprep.mubr.bf16.mxu0 0
        %3705 = vmatmul.mubr.bf16.gmra.mrb[0].mxu0 %v3570
        %v3706 = vpop.f32.mrb[0].mxu0
        %v3707 = vadd.f32 0.0, %v3706
        %v3708 = vpop.f32.mrb[0].mxu0
        %v3709 = vpop.f32.mrb[0].mxu0
        %v3710 = vadd.f32 0.0, %v3709
        %v3711 = vpop.f32.mrb[0].mxu0
        %3712 = vmatprep.mubr.bf16.mxu0 0
        %3713 = vmatmul.mubr.bf16.gmra.mrb[0].mxu0 %v3573
        %v3714 = vpop.f32.mrb[0].mxu0
        %v3715 = vadd.f32 0.0, %v3714
        %v3716 = vpop.f32.mrb[0].mxu0
        %v3717 = vpop.f32.mrb[0].mxu0
        %v3718 = vadd.f32 0.0, %v3717
        %v3719 = vpop.f32.mrb[0].mxu0
        %3720 = vmatprep.mubr.bf16.mxu0 0
        %3721 = vmatmul.mubr.bf16.gmra.mrb[0].mxu0 %v3576
        %v3722 = vpop.f32.mrb[0].mxu0
        %v3723 = vadd.f32 0.0, %v3722
        %v3724 = vpop.f32.mrb[0].mxu0
        %v3725 = vpop.f32.mrb[0].mxu0
        %v3726 = vadd.f32 0.0, %v3725
        %v3727 = vpop.f32.mrb[0].mxu0
        %3728 = vmatprep.mubr.bf16.mxu0 0
        %3729 = vmatmul.mubr.bf16.gmra.mrb[0].mxu0 %v3579
        %v3730 = vpop.f32.mrb[0].mxu0
        %v3731 = vadd.f32 0.0, %v3730
        %v3732 = vpop.f32.mrb[0].mxu0
        %v3733 = vpop.f32.mrb[0].mxu0
        %v3734 = vadd.f32 0.0, %v3733
        %v3735 = vpop.f32.mrb[0].mxu0
        %3736 = vmatprep.mubr.bf16.mxu0 0
        %3737 = vmatmul.mubr.bf16.gmra.mrb[0].mxu0 %v3582
        %v3738 = vpop.f32.mrb[0].mxu0
        %v3739 = vadd.f32 0.0, %v3738
        %v3740 = vpop.f32.mrb[0].mxu0
        %v3741 = vpop.f32.mrb[0].mxu0
        %v3742 = vadd.f32 0.0, %v3741
        %v3743 = vpop.f32.mrb[0].mxu0
        %3744 = vdwg.mxu0
        %v3745 = vadd.f32 %v3423, %v3619
        %v3746 = vadd.f32 %v3424, %v3622
        %v3747 = vadd.f32 %v3425, %v3627
        %v3748 = vadd.f32 %v3426, %v3630
        %v3749 = vadd.f32 %v3427, %v3635
        %v3750 = vadd.f32 %v3428, %v3638
        %v3751 = vadd.f32 %v3429, %v3643
        %v3752 = vadd.f32 %v3430, %v3646
        %v3753 = vadd.f32 %v3431, %v3651
        %v3754 = vadd.f32 %v3432, %v3654
        %v3755 = vadd.f32 %v3433, %v3659
        %v3756 = vadd.f32 %v3434, %v3662
        %v3757 = vadd.f32 %v3435, %v3667
        %v3758 = vadd.f32 %v3436, %v3670
        %v3759 = vadd.f32 %v3437, %v3675
        %v3760 = vadd.f32 %v3438, %v3678
        %v3761 = vadd.f32 %v3439, %v3683
        %v3762 = vadd.f32 %v3440, %v3686
        %v3763 = vadd.f32 %v3441, %v3691
        %v3764 = vadd.f32 %v3442, %v3694
        %v3765 = vadd.f32 %v3443, %v3699
        %v3766 = vadd.f32 %v3444, %v3702
        %v3767 = vadd.f32 %v3445, %v3707
        %v3768 = vadd.f32 %v3446, %v3710
        %v3769 = vadd.f32 %v3447, %v3715
        %v3770 = vadd.f32 %v3448, %v3718
        %v3771 = vadd.f32 %v3449, %v3723
        %v3772 = vadd.f32 %v3450, %v3726
        %v3773 = vadd.f32 %v3451, %v3731
        %v3774 = vadd.f32 %v3452, %v3734
        %v3775 = vadd.f32 %v3453, %v3739
        %v3776 = vadd.f32 %v3454, %v3742
        %v3777 = vld [vmem:[%s6] sm:$0x1]
        %v3779 = vlaneseq
        %v3780 = vshrl.u32 %v3779, 7
        %v3781 = vsub.s32 0, %v3780
        %v3782 = vrot.slane %v3777, %v3781
        %v3784 = vmul.f32 %v3745, %v3782
        %v3785 = vmul.f32 %v3746, %v3782
        %v3786 = vmul.f32 %v3747, %v3782
        %v3787 = vmul.f32 %v3748, %v3782
        %v3788 = vmul.f32 %v3749, %v3782
        %v3789 = vmul.f32 %v3750, %v3782
        %v3790 = vmul.f32 %v3751, %v3782
        %v3791 = vmul.f32 %v3752, %v3782
        %v3792 = vmul.f32 %v3753, %v3782
        %v3793 = vmul.f32 %v3754, %v3782
        %v3794 = vmul.f32 %v3755, %v3782
        %v3795 = vmul.f32 %v3756, %v3782
        %v3796 = vmul.f32 %v3757, %v3782
        %v3797 = vmul.f32 %v3758, %v3782
        %v3798 = vmul.f32 %v3759, %v3782
        %v3799 = vmul.f32 %v3760, %v3782
        %v3800 = vmul.f32 %v3761, %v3782
        %v3801 = vmul.f32 %v3762, %v3782
        %v3802 = vmul.f32 %v3763, %v3782
        %v3803 = vmul.f32 %v3764, %v3782
        %v3804 = vmul.f32 %v3765, %v3782
        %v3805 = vmul.f32 %v3766, %v3782
        %v3806 = vmul.f32 %v3767, %v3782
        %v3807 = vmul.f32 %v3768, %v3782
        %v3808 = vmul.f32 %v3769, %v3782
        %v3809 = vmul.f32 %v3770, %v3782
        %v3810 = vmul.f32 %v3771, %v3782
        %v3811 = vmul.f32 %v3772, %v3782
        %v3812 = vmul.f32 %v3773, %v3782
        %v3813 = vmul.f32 %v3774, %v3782
        %v3814 = vmul.f32 %v3775, %v3782
        %v3815 = vmul.f32 %v3776, %v3782
        %v3816 = vld [vmem:[%s7] sm:$0x1]
        %v3818 = vlaneseq
        %v3819 = vshrl.u32 %v3818, 7
        %v3820 = vsub.s32 0, %v3819
        %v3821 = vrot.slane %v3816, %v3820
        %v3823 = vadd.f32 %v3784, %v3821
        %v3824 = vadd.f32 %v3785, %v3821
        %v3825 = vadd.f32 %v3786, %v3821
        %v3826 = vadd.f32 %v3787, %v3821
        %v3827 = vadd.f32 %v3788, %v3821
        %v3828 = vadd.f32 %v3789, %v3821
        %v3829 = vadd.f32 %v3790, %v3821
        %v3830 = vadd.f32 %v3791, %v3821
        %v3831 = vadd.f32 %v3792, %v3821
        %v3832 = vadd.f32 %v3793, %v3821
        %v3833 = vadd.f32 %v3794, %v3821
        %v3834 = vadd.f32 %v3795, %v3821
        %v3835 = vadd.f32 %v3796, %v3821
        %v3836 = vadd.f32 %v3797, %v3821
        %v3837 = vadd.f32 %v3798, %v3821
        %v3838 = vadd.f32 %v3799, %v3821
        %v3839 = vadd.f32 %v3800, %v3821
        %v3840 = vadd.f32 %v3801, %v3821
        %v3841 = vadd.f32 %v3802, %v3821
        %v3842 = vadd.f32 %v3803, %v3821
        %v3843 = vadd.f32 %v3804, %v3821
        %v3844 = vadd.f32 %v3805, %v3821
        %v3845 = vadd.f32 %v3806, %v3821
        %v3846 = vadd.f32 %v3807, %v3821
        %v3847 = vadd.f32 %v3808, %v3821
        %v3848 = vadd.f32 %v3809, %v3821
        %v3849 = vadd.f32 %v3810, %v3821
        %v3850 = vadd.f32 %v3811, %v3821
        %v3851 = vadd.f32 %v3812, %v3821
        %v3852 = vadd.f32 %v3813, %v3821
        %v3853 = vadd.f32 %v3814, %v3821
        %v3854 = vadd.f32 %v3815, %v3821
        %v3855 = vmax.f32 %v3823, 0.0
        %v3856 = vmax.f32 %v3824, 0.0
        %v3857 = vmax.f32 %v3825, 0.0
        %v3858 = vmax.f32 %v3826, 0.0
        %v3859 = vmax.f32 %v3827, 0.0
        %v3860 = vmax.f32 %v3828, 0.0
        %v3861 = vmax.f32 %v3829, 0.0
        %v3862 = vmax.f32 %v3830, 0.0
        %v3863 = vmax.f32 %v3831, 0.0
        %v3864 = vmax.f32 %v3832, 0.0
        %v3865 = vmax.f32 %v3833, 0.0
        %v3866 = vmax.f32 %v3834, 0.0
        %v3867 = vmax.f32 %v3835, 0.0
        %v3868 = vmax.f32 %v3836, 0.0
        %v3869 = vmax.f32 %v3837, 0.0
        %v3870 = vmax.f32 %v3838, 0.0
        %v3871 = vmax.f32 %v3839, 0.0
        %v3872 = vmax.f32 %v3840, 0.0
        %v3873 = vmax.f32 %v3841, 0.0
        %v3874 = vmax.f32 %v3842, 0.0
        %v3875 = vmax.f32 %v3843, 0.0
        %v3876 = vmax.f32 %v3844, 0.0
        %v3877 = vmax.f32 %v3845, 0.0
        %v3878 = vmax.f32 %v3846, 0.0
        %v3879 = vmax.f32 %v3847, 0.0
        %v3880 = vmax.f32 %v3848, 0.0
        %v3881 = vmax.f32 %v3849, 0.0
        %v3882 = vmax.f32 %v3850, 0.0
        %v3883 = vmax.f32 %v3851, 0.0
        %v3884 = vmax.f32 %v3852, 0.0
        %v3885 = vmax.f32 %v3853, 0.0
        %v3886 = vmax.f32 %v3854, 0.0
        %v3887 = vpack.c.bf16 %v3856, %v3855
        %v3888 = vpack.c.bf16 %v3858, %v3857
        %v3889 = vpack.c.bf16 %v3860, %v3859
        %v3890 = vpack.c.bf16 %v3862, %v3861
        %v3891 = vpack.c.bf16 %v3864, %v3863
        %v3892 = vpack.c.bf16 %v3866, %v3865
        %v3893 = vpack.c.bf16 %v3868, %v3867
        %v3894 = vpack.c.bf16 %v3870, %v3869
        %v3895 = vpack.c.bf16 %v3872, %v3871
        %v3896 = vpack.c.bf16 %v3874, %v3873
        %v3897 = vpack.c.bf16 %v3876, %v3875
        %v3898 = vpack.c.bf16 %v3878, %v3877
        %v3899 = vpack.c.bf16 %v3880, %v3879
        %v3900 = vpack.c.bf16 %v3882, %v3881
        %v3901 = vpack.c.bf16 %v3884, %v3883
        %v3902 = vpack.c.bf16 %v3886, %v3885
        %v3903 = vld [vmem:[%s3] sm:$0xff]
        %v3904 = vld [vmem:[%s3 + $0x8] sm:$0xff]
        %v3905 = vld [vmem:[%s3 + $0x10] sm:$0xff]
        %v3906 = vld [vmem:[%s3 + $0x18] sm:$0xff]
        %v3907 = vld [vmem:[%s3 + $0x20] sm:$0xff]
        %v3908 = vld [vmem:[%s3 + $0x28] sm:$0xff]
        %v3909 = vld [vmem:[%s3 + $0x30] sm:$0xff]
        %v3910 = vld [vmem:[%s3 + $0x38] sm:$0xff]
        %v3919 = vunpack.c.l.b16 %v3903
        %v3920 = vunpack.c.h.b16 %v3903
        %v3921 = vunpack.c.l.b16 %v3904
        %v3922 = vunpack.c.h.b16 %v3904
        %v3923 = vunpack.c.l.b16 %v3905
        %v3924 = vunpack.c.h.b16 %v3905
        %v3925 = vunpack.c.l.b16 %v3906
        %v3926 = vunpack.c.h.b16 %v3906
        %v3927 = vunpack.c.l.b16 %v3907
        %v3928 = vunpack.c.h.b16 %v3907
        %v3929 = vunpack.c.l.b16 %v3908
        %v3930 = vunpack.c.h.b16 %v3908
        %v3931 = vunpack.c.l.b16 %v3909
        %v3932 = vunpack.c.h.b16 %v3909
        %v3933 = vunpack.c.l.b16 %v3910
        %v3934 = vunpack.c.h.b16 %v3910
        %v3935 = vpack.c.b16 %v3921, %v3919
        %v3936 = vpack.c.b16 %v3922, %v3920
        %v3937 = vpack.c.b16 %v3925, %v3923
        %v3938 = vpack.c.b16 %v3926, %v3924
        %v3939 = vpack.c.b16 %v3929, %v3927
        %v3940 = vpack.c.b16 %v3930, %v3928
        %v3941 = vpack.c.b16 %v3933, %v3931
        %v3942 = vpack.c.b16 %v3934, %v3932
        %v3952 = vsel %vm854, %v3887, 0
        %v3955 = vsel %vm854, %v3888, 0
        %v3958 = vsel %vm854, %v3889, 0
        %v3961 = vsel %vm854, %v3890, 0
        %v3964 = vsel %vm854, %v3891, 0
        %v3967 = vsel %vm854, %v3892, 0
        %v3970 = vsel %vm854, %v3893, 0
        %v3973 = vsel %vm854, %v3894, 0
        %v3976 = vsel %vm854, %v3895, 0
        %v3979 = vsel %vm854, %v3896, 0
        %v3982 = vsel %vm854, %v3897, 0
        %v3985 = vsel %vm854, %v3898, 0
        %v3988 = vsel %vm854, %v3899, 0
        %v3991 = vsel %vm854, %v3900, 0
        %v3994 = vsel %vm854, %v3901, 0
        %v3997 = vsel %vm854, %v3902, 0
        %3999 = vmatprep.subr.bf16.mxu0 %v3936
        %4000 = vmatpush1.bf16.msra.mxu0 %v3935
        %4001 = vmatprep.subr.bf16.mxu0 %v3938
        %4002 = vmatpush1.bf16.msra.mxu0 %v3937
        %4003 = vmatprep.subr.bf16.mxu0 %v3940
        %4004 = vmatpush1.bf16.msra.mxu0 %v3939
        %4005 = vmatprep.subr.bf16.mxu0 %v3942
        %4006 = vmatpush1.bf16.msra.mxu0 %v3941
        %4007 = vmatprep.subr.bf16.mxu0 0
        %4008 = vmatpush1.bf16.msra.mxu0 0
        %4009 = vmatprep.subr.bf16.mxu0 0
        %4010 = vmatpush1.bf16.msra.mxu0 0
        %4011 = vmatprep.subr.bf16.mxu0 0
        %4012 = vmatpush1.bf16.msra.mxu0 0
        %4013 = vmatprep.subr.bf16.mxu0 0
        %4014 = vmatpush1.bf16.msra.mxu0 0
        %4015 = vmatprep.subr.bf16.mxu0 0
        %4016 = vmatpush1.bf16.msra.mxu0 0
        %4017 = vmatprep.subr.bf16.mxu0 0
        %4018 = vmatpush1.bf16.msra.mxu0 0
        %4019 = vmatprep.subr.bf16.mxu0 0
        %4020 = vmatpush1.bf16.msra.mxu0 0
        %4021 = vmatprep.subr.bf16.mxu0 0
        %4022 = vmatpush1.bf16.msra.mxu0 0
        %4023 = vmatprep.subr.bf16.mxu0 0
        %4024 = vmatpush1.bf16.msra.mxu0 0
        %4025 = vmatprep.subr.bf16.mxu0 0
        %4026 = vmatpush1.bf16.msra.mxu0 0
        %4027 = vmatprep.subr.bf16.mxu0 0
        %4028 = vmatpush1.bf16.msra.mxu0 0
        %4029 = vmatprep.subr.bf16.mxu0 0
        %4030 = vmatpush1.bf16.msra.mxu0 0
        %4031 = vmatprep.mubr.bf16.mxu0 0
        %4032 = vmatmul.mubr.bf16.gmra.mrb[0].mxu0 %v3952
        %v4033 = vpop.f32.mrb[0].mxu0
        %v4034 = vadd.f32 0.0, %v4033
        %v4035 = vpop.f32.mrb[0].mxu0
        %v4036 = vadd.f32 0.0, %v4035
        %v4037 = vpop.f32.mrb[0].mxu0
        %v4038 = vadd.f32 0.0, %v4037
        %v4039 = vpop.f32.mrb[0].mxu0
        %v4040 = vadd.f32 0.0, %v4039
        %4041 = vmatprep.mubr.bf16.mxu0 0
        %4042 = vmatmul.mubr.bf16.gmra.mrb[0].mxu0 %v3955
        %v4043 = vpop.f32.mrb[0].mxu0
        %v4044 = vadd.f32 0.0, %v4043
        %v4045 = vpop.f32.mrb[0].mxu0
        %v4046 = vadd.f32 0.0, %v4045
        %v4047 = vpop.f32.mrb[0].mxu0
        %v4048 = vadd.f32 0.0, %v4047
        %v4049 = vpop.f32.mrb[0].mxu0
        %v4050 = vadd.f32 0.0, %v4049
        %4051 = vmatprep.mubr.bf16.mxu0 0
        %4052 = vmatmul.mubr.bf16.gmra.mrb[0].mxu0 %v3958
        %v4053 = vpop.f32.mrb[0].mxu0
        %v4054 = vadd.f32 0.0, %v4053
        %v4055 = vpop.f32.mrb[0].mxu0
        %v4056 = vadd.f32 0.0, %v4055
        %v4057 = vpop.f32.mrb[0].mxu0
        %v4058 = vadd.f32 0.0, %v4057
        %v4059 = vpop.f32.mrb[0].mxu0
        %v4060 = vadd.f32 0.0, %v4059
        %4061 = vmatprep.mubr.bf16.mxu0 0
        %4062 = vmatmul.mubr.bf16.gmra.mrb[0].mxu0 %v3961
        %v4063 = vpop.f32.mrb[0].mxu0
        %v4064 = vadd.f32 0.0, %v4063
        %v4065 = vpop.f32.mrb[0].mxu0
        %v4066 = vadd.f32 0.0, %v4065
        %v4067 = vpop.f32.mrb[0].mxu0
        %v4068 = vadd.f32 0.0, %v4067
        %v4069 = vpop.f32.mrb[0].mxu0
        %v4070 = vadd.f32 0.0, %v4069
        %4071 = vmatprep.mubr.bf16.mxu0 0
        %4072 = vmatmul.mubr.bf16.gmra.mrb[0].mxu0 %v3964
        %v4073 = vpop.f32.mrb[0].mxu0
        %v4074 = vadd.f32 0.0, %v4073
        %v4075 = vpop.f32.mrb[0].mxu0
        %v4076 = vadd.f32 0.0, %v4075
        %v4077 = vpop.f32.mrb[0].mxu0
        %v4078 = vadd.f32 0.0, %v4077
        %v4079 = vpop.f32.mrb[0].mxu0
        %v4080 = vadd.f32 0.0, %v4079
        %4081 = vmatprep.mubr.bf16.mxu0 0
        %4082 = vmatmul.mubr.bf16.gmra.mrb[0].mxu0 %v3967
        %v4083 = vpop.f32.mrb[0].mxu0
        %v4084 = vadd.f32 0.0, %v4083
        %v4085 = vpop.f32.mrb[0].mxu0
        %v4086 = vadd.f32 0.0, %v4085
        %v4087 = vpop.f32.mrb[0].mxu0
        %v4088 = vadd.f32 0.0, %v4087
        %v4089 = vpop.f32.mrb[0].mxu0
        %v4090 = vadd.f32 0.0, %v4089
        %4091 = vmatprep.mubr.bf16.mxu0 0
        %4092 = vmatmul.mubr.bf16.gmra.mrb[0].mxu0 %v3970
        %v4093 = vpop.f32.mrb[0].mxu0
        %v4094 = vadd.f32 0.0, %v4093
        %v4095 = vpop.f32.mrb[0].mxu0
        %v4096 = vadd.f32 0.0, %v4095
        %v4097 = vpop.f32.mrb[0].mxu0
        %v4098 = vadd.f32 0.0, %v4097
        %v4099 = vpop.f32.mrb[0].mxu0
        %v4100 = vadd.f32 0.0, %v4099
        %4101 = vmatprep.mubr.bf16.mxu0 0
        %4102 = vmatmul.mubr.bf16.gmra.mrb[0].mxu0 %v3973
        %v4103 = vpop.f32.mrb[0].mxu0
        %v4104 = vadd.f32 0.0, %v4103
        %v4105 = vpop.f32.mrb[0].mxu0
        %v4106 = vadd.f32 0.0, %v4105
        %v4107 = vpop.f32.mrb[0].mxu0
        %v4108 = vadd.f32 0.0, %v4107
        %v4109 = vpop.f32.mrb[0].mxu0
        %v4110 = vadd.f32 0.0, %v4109
        %4111 = vmatprep.mubr.bf16.mxu0 0
        %4112 = vmatmul.mubr.bf16.gmra.mrb[0].mxu0 %v3976
        %v4113 = vpop.f32.mrb[0].mxu0
        %v4114 = vadd.f32 0.0, %v4113
        %v4115 = vpop.f32.mrb[0].mxu0
        %v4116 = vadd.f32 0.0, %v4115
        %v4117 = vpop.f32.mrb[0].mxu0
        %v4118 = vadd.f32 0.0, %v4117
        %v4119 = vpop.f32.mrb[0].mxu0
        %v4120 = vadd.f32 0.0, %v4119
        %4121 = vmatprep.mubr.bf16.mxu0 0
        %4122 = vmatmul.mubr.bf16.gmra.mrb[0].mxu0 %v3979
        %v4123 = vpop.f32.mrb[0].mxu0
        %v4124 = vadd.f32 0.0, %v4123
        %v4125 = vpop.f32.mrb[0].mxu0
        %v4126 = vadd.f32 0.0, %v4125
        %v4127 = vpop.f32.mrb[0].mxu0
        %v4128 = vadd.f32 0.0, %v4127
        %v4129 = vpop.f32.mrb[0].mxu0
        %v4130 = vadd.f32 0.0, %v4129
        %4131 = vmatprep.mubr.bf16.mxu0 0
        %4132 = vmatmul.mubr.bf16.gmra.mrb[0].mxu0 %v3982
        %v4133 = vpop.f32.mrb[0].mxu0
        %v4134 = vadd.f32 0.0, %v4133
        %v4135 = vpop.f32.mrb[0].mxu0
        %v4136 = vadd.f32 0.0, %v4135
        %v4137 = vpop.f32.mrb[0].mxu0
        %v4138 = vadd.f32 0.0, %v4137
        %v4139 = vpop.f32.mrb[0].mxu0
        %v4140 = vadd.f32 0.0, %v4139
        %4141 = vmatprep.mubr.bf16.mxu0 0
        %4142 = vmatmul.mubr.bf16.gmra.mrb[0].mxu0 %v3985
        %v4143 = vpop.f32.mrb[0].mxu0
        %v4144 = vadd.f32 0.0, %v4143
        %v4145 = vpop.f32.mrb[0].mxu0
        %v4146 = vadd.f32 0.0, %v4145
        %v4147 = vpop.f32.mrb[0].mxu0
        %v4148 = vadd.f32 0.0, %v4147
        %v4149 = vpop.f32.mrb[0].mxu0
        %v4150 = vadd.f32 0.0, %v4149
        %4151 = vmatprep.mubr.bf16.mxu0 0
        %4152 = vmatmul.mubr.bf16.gmra.mrb[0].mxu0 %v3988
        %v4153 = vpop.f32.mrb[0].mxu0
        %v4154 = vadd.f32 0.0, %v4153
        %v4155 = vpop.f32.mrb[0].mxu0
        %v4156 = vadd.f32 0.0, %v4155
        %v4157 = vpop.f32.mrb[0].mxu0
        %v4158 = vadd.f32 0.0, %v4157
        %v4159 = vpop.f32.mrb[0].mxu0
        %v4160 = vadd.f32 0.0, %v4159
        %4161 = vmatprep.mubr.bf16.mxu0 0
        %4162 = vmatmul.mubr.bf16.gmra.mrb[0].mxu0 %v3991
        %v4163 = vpop.f32.mrb[0].mxu0
        %v4164 = vadd.f32 0.0, %v4163
        %v4165 = vpop.f32.mrb[0].mxu0
        %v4166 = vadd.f32 0.0, %v4165
        %v4167 = vpop.f32.mrb[0].mxu0
        %v4168 = vadd.f32 0.0, %v4167
        %v4169 = vpop.f32.mrb[0].mxu0
        %v4170 = vadd.f32 0.0, %v4169
        %4171 = vmatprep.mubr.bf16.mxu0 0
        %4172 = vmatmul.mubr.bf16.gmra.mrb[0].mxu0 %v3994
        %v4173 = vpop.f32.mrb[0].mxu0
        %v4174 = vadd.f32 0.0, %v4173
        %v4175 = vpop.f32.mrb[0].mxu0
        %v4176 = vadd.f32 0.0, %v4175
        %v4177 = vpop.f32.mrb[0].mxu0
        %v4178 = vadd.f32 0.0, %v4177
        %v4179 = vpop.f32.mrb[0].mxu0
        %v4180 = vadd.f32 0.0, %v4179
        %4181 = vmatprep.mubr.bf16.mxu0 0
        %4182 = vmatmul.mubr.bf16.gmra.mrb[0].mxu0 %v3997
        %v4183 = vpop.f32.mrb[0].mxu0
        %v4184 = vadd.f32 0.0, %v4183
        %v4185 = vpop.f32.mrb[0].mxu0
        %v4186 = vadd.f32 0.0, %v4185
        %v4187 = vpop.f32.mrb[0].mxu0
        %v4188 = vadd.f32 0.0, %v4187
        %v4189 = vpop.f32.mrb[0].mxu0
        %v4190 = vadd.f32 0.0, %v4189
        %4191 = vdwg.mxu0
        %v4192 = vld [vmem:[%s8] sm:$0x3]
        %v4194 = vlaneseq
        %v4195 = vshrl.u32 %v4194, 7
        %v4196 = vsub.s32 0, %v4195
        %v4197 = vrot.slane %v4192, %v4196
        %v4198 = vlaneseq
        %v4199 = vshrl.u32 %v4198, 7
        %v4200 = vsub.s32 1, %v4199
        %v4201 = vrot.slane %v4192, %v4200
        %v4204 = vmul.f32 %v4034, %v4197
        %v4205 = vmul.f32 %v4036, %v4201
        %v4206 = vmul.f32 %v4038, %v4197
        %v4207 = vmul.f32 %v4040, %v4201
        %v4208 = vmul.f32 %v4044, %v4197
        %v4209 = vmul.f32 %v4046, %v4201
        %v4210 = vmul.f32 %v4048, %v4197
        %v4211 = vmul.f32 %v4050, %v4201
        %v4212 = vmul.f32 %v4054, %v4197
        %v4213 = vmul.f32 %v4056, %v4201
        %v4214 = vmul.f32 %v4058, %v4197
        %v4215 = vmul.f32 %v4060, %v4201
        %v4216 = vmul.f32 %v4064, %v4197
        %v4217 = vmul.f32 %v4066, %v4201
        %v4218 = vmul.f32 %v4068, %v4197
        %v4219 = vmul.f32 %v4070, %v4201
        %v4220 = vmul.f32 %v4074, %v4197
        %v4221 = vmul.f32 %v4076, %v4201
        %v4222 = vmul.f32 %v4078, %v4197
        %v4223 = vmul.f32 %v4080, %v4201
        %v4224 = vmul.f32 %v4084, %v4197
        %v4225 = vmul.f32 %v4086, %v4201
        %v4226 = vmul.f32 %v4088, %v4197
        %v4227 = vmul.f32 %v4090, %v4201
        %v4228 = vmul.f32 %v4094, %v4197
        %v4229 = vmul.f32 %v4096, %v4201
        %v4230 = vmul.f32 %v4098, %v4197
        %v4231 = vmul.f32 %v4100, %v4201
        %v4232 = vmul.f32 %v4104, %v4197
        %v4233 = vmul.f32 %v4106, %v4201
        %v4234 = vmul.f32 %v4108, %v4197
        %v4235 = vmul.f32 %v4110, %v4201
        %v4236 = vmul.f32 %v4114, %v4197
        %v4237 = vmul.f32 %v4116, %v4201
        %v4238 = vmul.f32 %v4118, %v4197
        %v4239 = vmul.f32 %v4120, %v4201
        %v4240 = vmul.f32 %v4124, %v4197
        %v4241 = vmul.f32 %v4126, %v4201
        %v4242 = vmul.f32 %v4128, %v4197
        %v4243 = vmul.f32 %v4130, %v4201
        %v4244 = vmul.f32 %v4134, %v4197
        %v4245 = vmul.f32 %v4136, %v4201
        %v4246 = vmul.f32 %v4138, %v4197
        %v4247 = vmul.f32 %v4140, %v4201
        %v4248 = vmul.f32 %v4144, %v4197
        %v4249 = vmul.f32 %v4146, %v4201
        %v4250 = vmul.f32 %v4148, %v4197
        %v4251 = vmul.f32 %v4150, %v4201
        %v4252 = vmul.f32 %v4154, %v4197
        %v4253 = vmul.f32 %v4156, %v4201
        %v4254 = vmul.f32 %v4158, %v4197
        %v4255 = vmul.f32 %v4160, %v4201
        %v4256 = vmul.f32 %v4164, %v4197
        %v4257 = vmul.f32 %v4166, %v4201
        %v4258 = vmul.f32 %v4168, %v4197
        %v4259 = vmul.f32 %v4170, %v4201
        %v4260 = vmul.f32 %v4174, %v4197
        %v4261 = vmul.f32 %v4176, %v4201
        %v4262 = vmul.f32 %v4178, %v4197
        %v4263 = vmul.f32 %v4180, %v4201
        %v4264 = vmul.f32 %v4184, %v4197
        %v4265 = vmul.f32 %v4186, %v4201
        %v4266 = vmul.f32 %v4188, %v4197
        %v4267 = vmul.f32 %v4190, %v4201
        %v4268 = vld [vmem:[%s9] sm:$0x3]
        %v4270 = vlaneseq
        %v4271 = vshrl.u32 %v4270, 7
        %v4272 = vsub.s32 0, %v4271
        %v4273 = vrot.slane %v4268, %v4272
        %v4274 = vlaneseq
        %v4275 = vshrl.u32 %v4274, 7
        %v4276 = vsub.s32 1, %v4275
        %v4277 = vrot.slane %v4268, %v4276
        %v4280 = vadd.f32 %v4204, %v4273
        %v4281 = vadd.f32 %v4205, %v4277
        %v4282 = vadd.f32 %v4206, %v4273
        %v4283 = vadd.f32 %v4207, %v4277
        %v4284 = vadd.f32 %v4208, %v4273
        %v4285 = vadd.f32 %v4209, %v4277
        %v4286 = vadd.f32 %v4210, %v4273
        %v4287 = vadd.f32 %v4211, %v4277
        %v4288 = vadd.f32 %v4212, %v4273
        %v4289 = vadd.f32 %v4213, %v4277
        %v4290 = vadd.f32 %v4214, %v4273
        %v4291 = vadd.f32 %v4215, %v4277
        %v4292 = vadd.f32 %v4216, %v4273
        %v4293 = vadd.f32 %v4217, %v4277
        %v4294 = vadd.f32 %v4218, %v4273
        %v4295 = vadd.f32 %v4219, %v4277
        %v4296 = vadd.f32 %v4220, %v4273
        %v4297 = vadd.f32 %v4221, %v4277
        %v4298 = vadd.f32 %v4222, %v4273
        %v4299 = vadd.f32 %v4223, %v4277
        %v4300 = vadd.f32 %v4224, %v4273
        %v4301 = vadd.f32 %v4225, %v4277
        %v4302 = vadd.f32 %v4226, %v4273
        %v4303 = vadd.f32 %v4227, %v4277
        %v4304 = vadd.f32 %v4228, %v4273
        %v4305 = vadd.f32 %v4229, %v4277
        %v4306 = vadd.f32 %v4230, %v4273
        %v4307 = vadd.f32 %v4231, %v4277
        %v4308 = vadd.f32 %v4232, %v4273
        %v4309 = vadd.f32 %v4233, %v4277
        %v4310 = vadd.f32 %v4234, %v4273
        %v4311 = vadd.f32 %v4235, %v4277
        %v4312 = vadd.f32 %v4236, %v4273
        %v4313 = vadd.f32 %v4237, %v4277
        %v4314 = vadd.f32 %v4238, %v4273
        %v4315 = vadd.f32 %v4239, %v4277
        %v4316 = vadd.f32 %v4240, %v4273
        %v4317 = vadd.f32 %v4241, %v4277
        %v4318 = vadd.f32 %v4242, %v4273
        %v4319 = vadd.f32 %v4243, %v4277
        %v4320 = vadd.f32 %v4244, %v4273
        %v4321 = vadd.f32 %v4245, %v4277
        %v4322 = vadd.f32 %v4246, %v4273
        %v4323 = vadd.f32 %v4247, %v4277
        %v4324 = vadd.f32 %v4248, %v4273
        %v4325 = vadd.f32 %v4249, %v4277
        %v4326 = vadd.f32 %v4250, %v4273
        %v4327 = vadd.f32 %v4251, %v4277
        %v4328 = vadd.f32 %v4252, %v4273
        %v4329 = vadd.f32 %v4253, %v4277
        %v4330 = vadd.f32 %v4254, %v4273
        %v4331 = vadd.f32 %v4255, %v4277
        %v4332 = vadd.f32 %v4256, %v4273
        %v4333 = vadd.f32 %v4257, %v4277
        %v4334 = vadd.f32 %v4258, %v4273
        %v4335 = vadd.f32 %v4259, %v4277
        %v4336 = vadd.f32 %v4260, %v4273
        %v4337 = vadd.f32 %v4261, %v4277
        %v4338 = vadd.f32 %v4262, %v4273
        %v4339 = vadd.f32 %v4263, %v4277
        %v4340 = vadd.f32 %v4264, %v4273
        %v4341 = vadd.f32 %v4265, %v4277
        %v4342 = vadd.f32 %v4266, %v4273
        %v4343 = vadd.f32 %v4267, %v4277
        %v4344 = vadd.f32 %v4280, %v359
        %v4345 = vadd.f32 %v4281, %v360
        %v4346 = vadd.f32 %v4282, %v361
        %v4347 = vadd.f32 %v4283, %v362
        %v4348 = vadd.f32 %v4284, %v363
        %v4349 = vadd.f32 %v4285, %v364
        %v4350 = vadd.f32 %v4286, %v365
        %v4351 = vadd.f32 %v4287, %v366
        %v4352 = vadd.f32 %v4288, %v367
        %v4353 = vadd.f32 %v4289, %v368
        %v4354 = vadd.f32 %v4290, %v369
        %v4355 = vadd.f32 %v4291, %v370
        %v4356 = vadd.f32 %v4292, %v371
        %v4357 = vadd.f32 %v4293, %v372
        %v4358 = vadd.f32 %v4294, %v373
        %v4359 = vadd.f32 %v4295, %v374
        %v4360 = vadd.f32 %v4296, %v375
        %v4361 = vadd.f32 %v4297, %v376
        %v4362 = vadd.f32 %v4298, %v377
        %v4363 = vadd.f32 %v4299, %v378
        %v4364 = vadd.f32 %v4300, %v379
        %v4365 = vadd.f32 %v4301, %v380
        %v4366 = vadd.f32 %v4302, %v381
        %v4367 = vadd.f32 %v4303, %v382
        %v4368 = vadd.f32 %v4304, %v383
        %v4369 = vadd.f32 %v4305, %v384
        %v4370 = vadd.f32 %v4306, %v385
        %v4371 = vadd.f32 %v4307, %v386
        %v4372 = vadd.f32 %v4308, %v387
        %v4373 = vadd.f32 %v4309, %v388
        %v4374 = vadd.f32 %v4310, %v389
        %v4375 = vadd.f32 %v4311, %v390
        %v4376 = vadd.f32 %v4312, %v391
        %v4377 = vadd.f32 %v4313, %v392
        %v4378 = vadd.f32 %v4314, %v393
        %v4379 = vadd.f32 %v4315, %v394
        %v4380 = vadd.f32 %v4316, %v395
        %v4381 = vadd.f32 %v4317, %v396
        %v4382 = vadd.f32 %v4318, %v397
        %v4383 = vadd.f32 %v4319, %v398
        %v4384 = vadd.f32 %v4320, %v399
        %v4385 = vadd.f32 %v4321, %v400
        %v4386 = vadd.f32 %v4322, %v401
        %v4387 = vadd.f32 %v4323, %v402
        %v4388 = vadd.f32 %v4324, %v403
        %v4389 = vadd.f32 %v4325, %v404
        %v4390 = vadd.f32 %v4326, %v405
        %v4391 = vadd.f32 %v4327, %v406
        %v4392 = vadd.f32 %v4328, %v407
        %v4393 = vadd.f32 %v4329, %v408
        %v4394 = vadd.f32 %v4330, %v409
        %v4395 = vadd.f32 %v4331, %v410
        %v4396 = vadd.f32 %v4332, %v411
        %v4397 = vadd.f32 %v4333, %v412
        %v4398 = vadd.f32 %v4334, %v413
        %v4399 = vadd.f32 %v4335, %v414
        %v4400 = vadd.f32 %v4336, %v415
        %v4401 = vadd.f32 %v4337, %v416
        %v4402 = vadd.f32 %v4338, %v417
        %v4403 = vadd.f32 %v4339, %v418
        %v4404 = vadd.f32 %v4340, %v419
        %v4405 = vadd.f32 %v4341, %v420
        %v4406 = vadd.f32 %v4342, %v421
        %v4407 = vadd.f32 %v4343, %v422
        %v4408 = vmax.f32 %v4344, 0.0
        %v4409 = vmax.f32 %v4345, 0.0
        %v4410 = vmax.f32 %v4346, 0.0
        %v4411 = vmax.f32 %v4347, 0.0
        %v4412 = vmax.f32 %v4348, 0.0
        %v4413 = vmax.f32 %v4349, 0.0
        %v4414 = vmax.f32 %v4350, 0.0
        %v4415 = vmax.f32 %v4351, 0.0
        %v4416 = vmax.f32 %v4352, 0.0
        %v4417 = vmax.f32 %v4353, 0.0
        %v4418 = vmax.f32 %v4354, 0.0
        %v4419 = vmax.f32 %v4355, 0.0
        %v4420 = vmax.f32 %v4356, 0.0
        %v4421 = vmax.f32 %v4357, 0.0
        %v4422 = vmax.f32 %v4358, 0.0
        %v4423 = vmax.f32 %v4359, 0.0
        %v4424 = vmax.f32 %v4360, 0.0
        %v4425 = vmax.f32 %v4361, 0.0
        %v4426 = vmax.f32 %v4362, 0.0
        %v4427 = vmax.f32 %v4363, 0.0
        %v4428 = vmax.f32 %v4364, 0.0
        %v4429 = vmax.f32 %v4365, 0.0
        %v4430 = vmax.f32 %v4366, 0.0
        %v4431 = vmax.f32 %v4367, 0.0
        %v4432 = vmax.f32 %v4368, 0.0
        %v4433 = vmax.f32 %v4369, 0.0
        %v4434 = vmax.f32 %v4370, 0.0
        %v4435 = vmax.f32 %v4371, 0.0
        %v4436 = vmax.f32 %v4372, 0.0
        %v4437 = vmax.f32 %v4373, 0.0
        %v4438 = vmax.f32 %v4374, 0.0
        %v4439 = vmax.f32 %v4375, 0.0
        %v4440 = vmax.f32 %v4376, 0.0
        %v4441 = vmax.f32 %v4377, 0.0
        %v4442 = vmax.f32 %v4378, 0.0
        %v4443 = vmax.f32 %v4379, 0.0
        %v4444 = vmax.f32 %v4380, 0.0
        %v4445 = vmax.f32 %v4381, 0.0
        %v4446 = vmax.f32 %v4382, 0.0
        %v4447 = vmax.f32 %v4383, 0.0
        %v4448 = vmax.f32 %v4384, 0.0
        %v4449 = vmax.f32 %v4385, 0.0
        %v4450 = vmax.f32 %v4386, 0.0
        %v4451 = vmax.f32 %v4387, 0.0
        %v4452 = vmax.f32 %v4388, 0.0
        %v4453 = vmax.f32 %v4389, 0.0
        %v4454 = vmax.f32 %v4390, 0.0
        %v4455 = vmax.f32 %v4391, 0.0
        %v4456 = vmax.f32 %v4392, 0.0
        %v4457 = vmax.f32 %v4393, 0.0
        %v4458 = vmax.f32 %v4394, 0.0
        %v4459 = vmax.f32 %v4395, 0.0
        %v4460 = vmax.f32 %v4396, 0.0
        %v4461 = vmax.f32 %v4397, 0.0
        %v4462 = vmax.f32 %v4398, 0.0
        %v4463 = vmax.f32 %v4399, 0.0
        %v4464 = vmax.f32 %v4400, 0.0
        %v4465 = vmax.f32 %v4401, 0.0
        %v4466 = vmax.f32 %v4402, 0.0
        %v4467 = vmax.f32 %v4403, 0.0
        %v4468 = vmax.f32 %v4404, 0.0
        %v4469 = vmax.f32 %v4405, 0.0
        %v4470 = vmax.f32 %v4406, 0.0
        %v4471 = vmax.f32 %v4407, 0.0
        %4472 = vst [vmem:[%s352] sm:$0xff] %v4408
        %4473 = vst [vmem:[%s352 + $0x8] sm:$0xff] %v4409
        %4474 = vst [vmem:[%s352 + $0x10] sm:$0xff] %v4410
        %4475 = vst [vmem:[%s352 + $0x18] sm:$0xff] %v4411
        %4476 = vst [vmem:[%s352 + $0x20] sm:$0xff] %v4412
        %4477 = vst [vmem:[%s352 + $0x28] sm:$0xff] %v4413
        %4478 = vst [vmem:[%s352 + $0x30] sm:$0xff] %v4414
        %4479 = vst [vmem:[%s352 + $0x38] sm:$0xff] %v4415
        %4480 = vst [vmem:[%s352 + $0x40] sm:$0xff] %v4416
        %4481 = vst [vmem:[%s352 + $0x48] sm:$0xff] %v4417
        %4482 = vst [vmem:[%s352 + $0x50] sm:$0xff] %v4418
        %4483 = vst [vmem:[%s352 + $0x58] sm:$0xff] %v4419
        %4484 = vst [vmem:[%s352 + $0x60] sm:$0xff] %v4420
        %4485 = vst [vmem:[%s352 + $0x68] sm:$0xff] %v4421
        %4486 = vst [vmem:[%s352 + $0x70] sm:$0xff] %v4422
        %4487 = vst [vmem:[%s352 + $0x78] sm:$0xff] %v4423
        %4488 = vst [vmem:[%s352 + $0x80] sm:$0xff] %v4424
        %4489 = vst [vmem:[%s352 + $0x88] sm:$0xff] %v4425
        %4490 = vst [vmem:[%s352 + $0x90] sm:$0xff] %v4426
        %4491 = vst [vmem:[%s352 + $0x98] sm:$0xff] %v4427
        %4492 = vst [vmem:[%s352 + $0xa0] sm:$0xff] %v4428
        %4493 = vst [vmem:[%s352 + $0xa8] sm:$0xff] %v4429
        %4494 = vst [vmem:[%s352 + $0xb0] sm:$0xff] %v4430
        %4495 = vst [vmem:[%s352 + $0xb8] sm:$0xff] %v4431
        %4496 = vst [vmem:[%s352 + $0xc0] sm:$0xff] %v4432
        %4497 = vst [vmem:[%s352 + $0xc8] sm:$0xff] %v4433
        %4498 = vst [vmem:[%s352 + $0xd0] sm:$0xff] %v4434
        %4499 = vst [vmem:[%s352 + $0xd8] sm:$0xff] %v4435
        %4500 = vst [vmem:[%s352 + $0xe0] sm:$0xff] %v4436
        %4501 = vst [vmem:[%s352 + $0xe8] sm:$0xff] %v4437
        %4502 = vst [vmem:[%s352 + $0xf0] sm:$0xff] %v4438
        %4503 = vst [vmem:[%s352 + $0xf8] sm:$0xff] %v4439
        %4504 = vst [vmem:[%s352 + $0x100] sm:$0xff] %v4440
        %4505 = vst [vmem:[%s352 + $0x108] sm:$0xff] %v4441
        %4506 = vst [vmem:[%s352 + $0x110] sm:$0xff] %v4442
        %4507 = vst [vmem:[%s352 + $0x118] sm:$0xff] %v4443
        %4508 = vst [vmem:[%s352 + $0x120] sm:$0xff] %v4444
        %4509 = vst [vmem:[%s352 + $0x128] sm:$0xff] %v4445
        %4510 = vst [vmem:[%s352 + $0x130] sm:$0xff] %v4446
        %4511 = vst [vmem:[%s352 + $0x138] sm:$0xff] %v4447
        %4512 = vst [vmem:[%s352 + $0x140] sm:$0xff] %v4448
        %4513 = vst [vmem:[%s352 + $0x148] sm:$0xff] %v4449
        %4514 = vst [vmem:[%s352 + $0x150] sm:$0xff] %v4450
        %4515 = vst [vmem:[%s352 + $0x158] sm:$0xff] %v4451
        %4516 = vst [vmem:[%s352 + $0x160] sm:$0xff] %v4452
        %4517 = vst [vmem:[%s352 + $0x168] sm:$0xff] %v4453
        %4518 = vst [vmem:[%s352 + $0x170] sm:$0xff] %v4454
        %4519 = vst [vmem:[%s352 + $0x178] sm:$0xff] %v4455
        %4520 = vst [vmem:[%s352 + $0x180] sm:$0xff] %v4456
        %4521 = vst [vmem:[%s352 + $0x188] sm:$0xff] %v4457
        %4522 = vst [vmem:[%s352 + $0x190] sm:$0xff] %v4458
        %4523 = vst [vmem:[%s352 + $0x198] sm:$0xff] %v4459
        %4524 = vst [vmem:[%s352 + $0x1a0] sm:$0xff] %v4460
        %4525 = vst [vmem:[%s352 + $0x1a8] sm:$0xff] %v4461
        %4526 = vst [vmem:[%s352 + $0x1b0] sm:$0xff] %v4462
        %4527 = vst [vmem:[%s352 + $0x1b8] sm:$0xff] %v4463
        %4528 = vst [vmem:[%s352 + $0x1c0] sm:$0xff] %v4464
        %4529 = vst [vmem:[%s352 + $0x1c8] sm:$0xff] %v4465
        %4530 = vst [vmem:[%s352 + $0x1d0] sm:$0xff] %v4466
        %4531 = vst [vmem:[%s352 + $0x1d8] sm:$0xff] %v4467
        %4532 = vst [vmem:[%s352 + $0x1e0] sm:$0xff] %v4468
        %4533 = vst [vmem:[%s352 + $0x1e8] sm:$0xff] %v4469
        %4534 = vst [vmem:[%s352 + $0x1f0] sm:$0xff] %v4470
        %4535 = vst [vmem:[%s352 + $0x1f8] sm:$0xff] %v4471
        %s4536 = sand.u32 %s247, 1
        %s4537 = scalar_lea.sflag [#allocation4], %s4536
        %s4538 = sand.u32 %s247, 1
        %s4539 = smul.addr %s4538, 512
        %s4540 = scalar_lea.vmem [#allocation3], %s4539
        // Predicated region
        $region61: #{bottleneck_forward.1} parent=59 // pred_check
          %p4541 = pneg %p257
        $region62: #{bottleneck_forward.1} parent=59 // pred_check_branch
          %4543 = sbr.rel (%p4541) target = $region64
        $region63: #{bottleneck_forward.1} parent=59 // pred_region
          %s4545 = ssub.s32 8192, 8192
          %4546 = vsyncadd %s4537, %s4545
          %s4547 = smul.addr %s24, 64
          %s4548 = smul.addr %s4547, 128
          %s4549 = scalar_lea.hbm %s10, %s4548
          %s4550 = sshll.u32 %s4540, 4
          %s4551 = int_to_ptr.vmem [resolvable:$true] %s4550
          %4556 = dma.vmem_to_hbm [thread:$0]  %s4551, 8192, %s4549, %s4537, 256, 256, 16
        $region64: #{bottleneck_forward.1} parent=59 // pred_fallthru
          _
      $region60: #{bottleneck_forward.1} parent=5 // pred_fallthru
        _
      %p4557 = scmp.le.s32.totalorder 2, %s19
      // Predicated region
      $region65: #{bottleneck_forward.1} parent=5 // pred_check
        %p4558 = pneg %p4557
      $region66: #{bottleneck_forward.1} parent=5 // pred_check_branch
        %4560 = sbr.rel (%p4558) target = $region68
      $region67: #{bottleneck_forward.1} parent=5 // pred_region
        %s4561 = ssub.s32 %s19, 2
        // Predicated region
        $region69: #{bottleneck_forward.1} parent=67 // pred_check
          %p4562 = pneg %p263
        $region70: #{bottleneck_forward.1} parent=67 // pred_check_branch
          %4564 = sbr.rel (%p4562) target = $region72
        $region71: #{bottleneck_forward.1} parent=67 // pred_region
          %s4565 = sand.u32 %s248, 1
          %s4566 = scalar_lea.sflag [#allocation4], %s4565
          %s4567 = sand.u32 %s248, 1
          %s4568 = smul.addr %s4567, 512
          %s4569 = scalar_lea.vmem [#allocation3], %s4568
          %4570 = dma.done %s4566, 8192
        $region72: #{bottleneck_forward.1} parent=67 // pred_fallthru
          _
      $region68: #{bottleneck_forward.1} parent=5 // pred_fallthru
        _
    $region6: #{bottleneck_forward.1} parent=1 // loop_footer
      %s23 = sadd.s32 1, %s19
    $region7: #{bottleneck_forward.1} parent=1 // loop_footer_branch
      %18 = sbr.rel target = $region3
    $region8: #{bottleneck_forward.1} parent=1 // loop_exit
      _
    %4571 = vsyncpa [#allocation4], 1
    %s4572 = scalar_lea.sflag [#allocation4], 1
    %4573 = vsyncpa %s4572, 1

</llo_original>
